<compile_context>
chip_gen: v5e
topology: v5e:2x2
jax: 0.10.0
libtpu: 0.0.40
codegen_flags: <defaults>
</compile_context>

<pallas_src>
import numpy as np

import jax
import jax.numpy as jnp
from jax.experimental import pallas as pl
from jax.experimental.pallas import tpu as pltpu

EPS = 1e-5          # nn.GroupNorm default
NEG_SLOPE = 0.1     # nn.LeakyReLU(0.1)
NUM_GROUPS = 16     # nn.GroupNorm(16, ...)


# ----------------------------------------------------------------------------
# Static per-tap tables for a 3x3x3 / pad=1 conv on the flattened spatial axis:
#   offs[t]  : flat-index shift for tap t (kd, kh, kw in {-1,0,1})
#   masks[t] : 1.0 where the shifted (d,h,w) stays in bounds, else 0.0
# ----------------------------------------------------------------------------
def _tap_tables(D, H, W):
    HW = H * W
    d = np.arange(D)[:, None, None]
    h = np.arange(H)[None, :, None]
    w = np.arange(W)[None, None, :]
    offs, masks = [], []
    for kd in (-1, 0, 1):
        for kh in (-1, 0, 1):
            for kw in (-1, 0, 1):
                valid = ((d + kd >= 0) & (d + kd < D) &
                         (h + kh >= 0) & (h + kh < H) &
                         (w + kw >= 0) & (w + kw < W))
                masks.append(valid.reshape(-1).astype(np.float32))
                offs.append(kd * HW + kh * W + kw)
    return offs, np.stack(masks, axis=0)          # list[27 int], (27, S) f32


# ----------------------------------------------------------------------------
# Fused kernel: one grid step = one sample, everything in (C, S) layout.
# ----------------------------------------------------------------------------
def _make_fused_kernel(D, H, W, C, G, S):
    offs, _ = _tap_tables(D, H, W)
    Cg = C // G
    inv_n = 1.0 / float(Cg * S)

    def kernel(x_ref, g1_ref, b1_ref, w1_ref, g2_ref, b2_ref, w2_ref,
               mask_ref, o_ref, patch_ref):
        x = x_ref[0]                                            # (C, S) f32

        def gn_lrelu(v, g_ref, b_ref):
            # Single-pass GroupNorm (biased variance, PyTorch semantics) with
            # the affine folded into one per-channel scale/shift, then LeakyReLU.
            s1 = jnp.sum(v, axis=-1, keepdims=True)             # (C, 1) f32
            s2 = jnp.sum(v * v, axis=-1, keepdims=True)         # (C, 1) f32
            if Cg == 1:                                         # groups == channels
                mean = s1 * inv_n
                var = s2 * inv_n - mean * mean
            else:                                               # general (tiny) path
                gs1 = jnp.sum(s1.reshape(G, Cg, 1), axis=1, keepdims=True)
                gs2 = jnp.sum(s2.reshape(G, Cg, 1), axis=1, keepdims=True)
                mean = jnp.broadcast_to(gs1 * inv_n, (G, Cg, 1)).reshape(C, 1)
                var = (jnp.broadcast_to(gs2 * inv_n, (G, Cg, 1)).reshape(C, 1)
                       - mean * mean)
            var = jnp.maximum(var, 0.0)                         # guard cancellation
            a = g_ref[...] * jax.lax.rsqrt(var + EPS)           # (C, 1)
            b = b_ref[...] - mean * a                           # (C, 1)
            y = v * a + b
            return jnp.maximum(y, NEG_SLOPE * y)                # LeakyReLU(0.1)

        def conv3x3x3(v, w_ref):
            # 3x3x3 / pad=1 conv as chunked im2col + MXU matmuls:
            #  * each tap: static lane roll (XLU) + bf16 mask -> bf16 patch row
            #    block; no padded scratch, no unaligned lane slices.
            #  * 3 chunks of 9 taps (K = 9*C), partial dots accumulated in f32;
            #    patch double-buffered across chunks.
            out = None
            for c in range(3):                                  # kd = c - 1
                buf = patch_ref.at[c % 2]                       # (9*C, S) bf16 view
                for j in range(9):
                    t = 9 * c + j
                    off = offs[t]
                    if off == 0:
                        tap = v                                 # centre tap: mask == 1
                    else:
                        tap = (pltpu.roll(v, shift=(-off) % S, axis=1)
                               * mask_ref[t:t + 1, :])
                    buf[j * C:(j + 1) * C, :] = tap.astype(jnp.bfloat16)
                part = jnp.dot(w_ref[c], buf[...],
                               preferred_element_type=jnp.float32)  # (C, S) f32
                out = part if out is None else out + part
            return out

        h1 = gn_lrelu(x, g1_ref, b1_ref)
        c1 = conv3x3x3(h1, w1_ref)
        h2 = gn_lrelu(c1, g2_ref, b2_ref)
        c2 = conv3x3x3(h2, w2_ref)
        o_ref[0] = (c2 + x).astype(o_ref.dtype)                 # + residual

    return kernel


# ----------------------------------------------------------------------------
# Wrapper: NCDHW in / NCDHW out, one pallas_call for the whole block.
# ----------------------------------------------------------------------------
@jax.jit
def no_bottleneck_forward(x, params):
    """x: (N, C, D, H, W) float32. Returns the same layout/shape."""
    N, C, D, H, W = x.shape
    G = NUM_GROUPS
    S = D * H * W

    _, masks_np = _tap_tables(D, H, W)
    masks = jnp.asarray(masks_np, dtype=jnp.bfloat16)           # (27, S) bf16

    def pack_w(w_oidhw):
        # (Cout, Cin, 3,3,3) -> (3, Cout, 9*Cin) bf16, chunked along kD,
        # columns ordered (kh, kw) major / cin minor to match the patch rows.
        w = jnp.transpose(w_oidhw, (0, 2, 3, 4, 1)).reshape(C, 3, 9 * C)
        return jnp.transpose(w, (1, 0, 2)).astype(jnp.bfloat16)

    w1 = pack_w(params["w1"])
    w2 = pack_w(params["w2"])
    g1 = params["gn1_gamma"].reshape(C, 1).astype(jnp.float32)
    b1 = params["gn1_beta"].reshape(C, 1).astype(jnp.float32)
    g2 = params["gn2_gamma"].reshape(C, 1).astype(jnp.float32)
    b2 = params["gn2_beta"].reshape(C, 1).astype(jnp.float32)

    x_flat = x.reshape(N, C, S)                                 # free reshape

    kernel = _make_fused_kernel(D, H, W, C, G, S)
    const2 = lambda n: (0, 0)                                   # resident 2-D blocks
    const3 = lambda n: (0, 0, 0)                                # resident 3-D blocks

    out = pl.pallas_call(
        kernel,
        out_shape=jax.ShapeDtypeStruct((N, C, S), x.dtype),
        grid=(N,),
        in_specs=[
            pl.BlockSpec((1, C, S), lambda n: (n, 0, 0)),       # x   (per sample)
            pl.BlockSpec((C, 1), const2),                       # gn1 gamma
            pl.BlockSpec((C, 1), const2),                       # gn1 beta
            pl.BlockSpec((3, C, 9 * C), const3),                # w1  (bf16, chunked)
            pl.BlockSpec((C, 1), const2),                       # gn2 gamma
            pl.BlockSpec((C, 1), const2),                       # gn2 beta
            pl.BlockSpec((3, C, 9 * C), const3),                # w2  (bf16, chunked)
            pl.BlockSpec((27, S), const2),                      # tap masks (bf16)
        ],
        out_specs=pl.BlockSpec((1, C, S), lambda n: (n, 0, 0)),
        scratch_shapes=[
            pltpu.VMEM((2, 9 * C, S), jnp.bfloat16),            # double-buffered patch
        ],
        compiler_params=pltpu.CompilerParams(
            dimension_semantics=("parallel",)),
    )(x_flat, g1, b1, w1, g2, b2, w2, masks)
    return out.reshape(N, C, D, H, W)


# ----------------------------------------------------------------------------
# Pure-JAX reference (f32 convs) for a silent correctness check
# ----------------------------------------------------------------------------
def _ref_forward(x, params):
    def gn(v, gamma, beta):
        N, C, D, H, W = v.shape
        vr = v.reshape(N, NUM_GROUPS, -1)
        m = vr.mean(-1, keepdims=True)
        var = jnp.square(vr - m).mean(-1, keepdims=True)
        vn = ((vr - m) / jnp.sqrt(var + EPS)).reshape(N, C, D, H, W)
        return vn * gamma.reshape(1, C, 1, 1, 1) + beta.reshape(1, C, 1, 1, 1)

    def lrelu(v):
        return jnp.where(v > 0, v, NEG_SLOPE * v)

    def conv(v, w_oidhw):
        return jax.lax.conv_general_dilated(
            v, w_oidhw, window_strides=(1, 1, 1), padding=[(1, 1)] * 3,
            dimension_numbers=("NCDHW", "OIDHW", "NCDHW"))

    out = conv(lrelu(gn(x, params["gn1_gamma"], params["gn1_beta"])), params["w1"])
    out = conv(lrelu(gn(out, params["gn2_gamma"], params["gn2_beta"])), params["w2"])
    return out + x


if __name__ == "__main__":
    # Small shapes consistent with the module: GroupNorm(16, C) => C % 16 == 0,
    # inplanes = planes = 16, stride=1, downsample=None.
    N, C, D, H, W = 2, 16, 4, 8, 8

    key = jax.random.PRNGKey(0)
    k_x, k_w1, k_w2, k_g1, k_b1, k_g2, k_b2 = jax.random.split(key, 7)

    x = jax.random.normal(k_x, (N, C, D, H, W), jnp.float32)
    wscale = 1.0 / jnp.sqrt(27.0 * C)
    params = {
        # PyTorch Conv3d weight layout: (Cout, Cin, kD, kH, kW)
        "w1": jax.random.normal(k_w1, (C, C, 3, 3, 3), jnp.float32) * wscale,
        "w2": jax.random.normal(k_w2, (C, C, 3, 3, 3), jnp.float32) * wscale,
        "gn1_gamma": 1.0 + 0.1 * jax.random.normal(k_g1, (C,), jnp.float32),
        "gn1_beta": 0.1 * jax.random.normal(k_b1, (C,), jnp.float32),
        "gn2_gamma": 1.0 + 0.1 * jax.random.normal(k_g2, (C,), jnp.float32),
        "gn2_beta": 0.1 * jax.random.normal(k_b2, (C,), jnp.float32),
    }

    out = jax.block_until_ready(no_bottleneck_forward(x, params))
    ref = _ref_forward(x, params)

    assert out.shape == (N, C, D, H, W)
    diff = np.asarray(jnp.abs(out - ref))                   # (N, C, D, H, W)
    err = float(diff.max())

    # Boundary-shell check: a wrong tap mask / roll direction would give O(1)
    # errors on the outer faces, far above the bf16-driven tolerance.
    shell = np.zeros((D, H, W), bool)
    shell[0], shell[-1] = True, True
    shell[:, 0], shell[:, -1] = True, True
    shell[:, :, 0], shell[:, :, -1] = True, True
    err_bnd = float(diff[:, :, shell].max())

    # bf16 MXU inputs (f32 accumulation) vs a pure-f32 reference.
    assert err < 5e-2, f"mismatch vs reference: {err}"
    assert err_bnd < 5e-2, f"boundary mismatch vs reference: {err_bnd}"

    print("KERNEL_OK")
</pallas_src>

<mosaic_0001>
module attributes {stable_mosaic.version = 11 : i64} {
  func.func @kernel(%arg0: i32, %arg1: memref<1x16x256xf32, #tpu.memory_space<vmem>>, %arg2: memref<16x1xf32, #tpu.memory_space<vmem>>, %arg3: memref<16x1xf32, #tpu.memory_space<vmem>>, %arg4: memref<3x16x144xbf16, #tpu.memory_space<vmem>>, %arg5: memref<16x1xf32, #tpu.memory_space<vmem>>, %arg6: memref<16x1xf32, #tpu.memory_space<vmem>>, %arg7: memref<3x16x144xbf16, #tpu.memory_space<vmem>>, %arg8: memref<27x256xbf16, #tpu.memory_space<vmem>>, %arg9: memref<1x16x256xf32, #tpu.memory_space<vmem>>, %arg10: memref<2x144x256xbf16, #tpu.memory_space<vmem>>) attributes {dimension_semantics = [#tpu.dimension_semantics<parallel>], iteration_bounds = array<i64: 2>, scalar_prefetch = 0 : i64, scratch_operands = 1 : i64, tpu.core_type = #tpu.core_type<tc>, window_params = [{transform_indices = @transform_0, window_bounds = array<i64: 1, 16, 256>}, {pipeline_mode = #tpu.pipeline_mode<synchronous>, transform_indices = @transform_1, window_bounds = array<i64: 16, 1>}, {pipeline_mode = #tpu.pipeline_mode<synchronous>, transform_indices = @transform_2, window_bounds = array<i64: 16, 1>}, {pipeline_mode = #tpu.pipeline_mode<synchronous>, transform_indices = @transform_3, window_bounds = array<i64: 3, 16, 144>}, {pipeline_mode = #tpu.pipeline_mode<synchronous>, transform_indices = @transform_4, window_bounds = array<i64: 16, 1>}, {pipeline_mode = #tpu.pipeline_mode<synchronous>, transform_indices = @transform_5, window_bounds = array<i64: 16, 1>}, {pipeline_mode = #tpu.pipeline_mode<synchronous>, transform_indices = @transform_6, window_bounds = array<i64: 3, 16, 144>}, {pipeline_mode = #tpu.pipeline_mode<synchronous>, transform_indices = @transform_7, window_bounds = array<i64: 27, 256>}, {transform_indices = @transform_8, window_bounds = array<i64: 1, 16, 256>}]} {
    %c0 = arith.constant 0 : index
    %c0_0 = arith.constant 0 : index
    %c0_1 = arith.constant 0 : index
    %0 = vector.load %arg1[%c0, %c0_0, %c0_1] : memref<1x16x256xf32, #tpu.memory_space<vmem>>, vector<1x16x256xf32>
    %1 = vector.shape_cast %0 : vector<1x16x256xf32> to vector<16x256xf32>
    %cst = arith.constant dense<0.000000e+00> : vector<16xf32>
    %2 = vector.multi_reduction <add>, %1, %cst [1] : vector<16x256xf32> to vector<16xf32>
    %3 = vector.shape_cast %2 : vector<16xf32> to vector<16x1xf32>
    %4 = arith.mulf %1, %1 : vector<16x256xf32>
    %cst_2 = arith.constant dense<0.000000e+00> : vector<16xf32>
    %5 = vector.multi_reduction <add>, %4, %cst_2 [1] : vector<16x256xf32> to vector<16xf32>
    %6 = vector.shape_cast %5 : vector<16xf32> to vector<16x1xf32>
    %cst_3 = arith.constant 3.906250e-03 : f32
    %7 = vector.broadcast %cst_3 : f32 to vector<16x1xf32>
    %8 = arith.mulf %3, %7 : vector<16x1xf32>
    %cst_4 = arith.constant 3.906250e-03 : f32
    %9 = vector.broadcast %cst_4 : f32 to vector<16x1xf32>
    %10 = arith.mulf %6, %9 : vector<16x1xf32>
    %11 = arith.mulf %8, %8 : vector<16x1xf32>
    %12 = arith.subf %10, %11 : vector<16x1xf32>
    %cst_5 = arith.constant 0.000000e+00 : f32
    %13 = vector.broadcast %cst_5 : f32 to vector<16x1xf32>
    %14 = arith.maximumf %12, %13 : vector<16x1xf32>
    %c0_6 = arith.constant 0 : index
    %c0_7 = arith.constant 0 : index
    %15 = vector.load %arg2[%c0_6, %c0_7] : memref<16x1xf32, #tpu.memory_space<vmem>>, vector<16x1xf32>
    %cst_8 = arith.constant 9.99999974E-6 : f32
    %16 = vector.broadcast %cst_8 : f32 to vector<16x1xf32>
    %17 = arith.addf %14, %16 : vector<16x1xf32>
    %18 = math.rsqrt %17 : vector<16x1xf32>
    %19 = arith.mulf %15, %18 : vector<16x1xf32>
    %c0_9 = arith.constant 0 : index
    %c0_10 = arith.constant 0 : index
    %20 = vector.load %arg3[%c0_9, %c0_10] : memref<16x1xf32, #tpu.memory_space<vmem>>, vector<16x1xf32>
    %21 = arith.mulf %8, %19 : vector<16x1xf32>
    %22 = arith.subf %20, %21 : vector<16x1xf32>
    %23 = vector.broadcast %19 : vector<16x1xf32> to vector<16x256xf32>
    %24 = arith.mulf %1, %23 : vector<16x256xf32>
    %25 = vector.broadcast %22 : vector<16x1xf32> to vector<16x256xf32>
    %26 = arith.addf %24, %25 : vector<16x256xf32>
    %cst_11 = arith.constant 1.000000e-01 : f32
    %27 = vector.broadcast %cst_11 : f32 to vector<16x256xf32>
    %28 = arith.mulf %27, %26 : vector<16x256xf32>
    %29 = arith.maximumf %26, %28 : vector<16x256xf32>
    %c73_i32 = arith.constant 73 : i32
    %30 = tpu.dynamic_rotate %29 by %c73_i32 dim 1 : vector<16x256xf32>, i32 -> vector<16x256xf32>
    %c0_12 = arith.constant 0 : index
    %c0_13 = arith.constant 0 : index
    %31 = vector.load %arg8[%c0_12, %c0_13] : memref<27x256xbf16, #tpu.memory_space<vmem>>, vector<1x256xbf16>
    %32 = arith.extf %31 : vector<1x256xbf16> to vector<1x256xf32>
    %33 = vector.broadcast %32 : vector<1x256xf32> to vector<16x256xf32>
    %34 = arith.mulf %30, %33 : vector<16x256xf32>
    %35 = arith.truncf %34 : vector<16x256xf32> to vector<16x256xbf16>
    %c0_i32 = arith.constant 0 : i32
    %c0_i32_14 = arith.constant 0 : i32
    %c0_i32_15 = arith.constant 0 : i32
    %36 = tpu.memref_slice %arg10[%c0_i32, %c0_i32_14, %c0_i32_15] : memref<2x144x256xbf16, #tpu.memory_space<vmem>> -> memref<1x144x256xbf16, #tpu.memory_space<vmem>>
    %37 = tpu.memref_squeeze %36 : memref<1x144x256xbf16, #tpu.memory_space<vmem>> -> memref<144x256xbf16, #tpu.memory_space<vmem>>
    %c0_16 = arith.constant 0 : index
    %c0_17 = arith.constant 0 : index
    %38 = vector.load %37[%c0_16, %c0_17] : memref<144x256xbf16, #tpu.memory_space<vmem>>, vector<16x256xbf16>
    tpu.vector_store %37[%c0_16, %c0_17], %35 {strides = array<i32>} : memref<144x256xbf16, #tpu.memory_space<vmem>>, vector<16x256xbf16>,
    %c72_i32 = arith.constant 72 : i32
    %39 = tpu.dynamic_rotate %29 by %c72_i32 dim 1 : vector<16x256xf32>, i32 -> vector<16x256xf32>
    %c1 = arith.constant 1 : index
    %c0_18 = arith.constant 0 : index
    %40 = vector.load %arg8[%c1, %c0_18] : memref<27x256xbf16, #tpu.memory_space<vmem>>, vector<1x256xbf16>
    %41 = arith.extf %40 : vector<1x256xbf16> to vector<1x256xf32>
    %42 = vector.broadcast %41 : vector<1x256xf32> to vector<16x256xf32>
    %43 = arith.mulf %39, %42 : vector<16x256xf32>
    %44 = arith.truncf %43 : vector<16x256xf32> to vector<16x256xbf16>
    %c0_i32_19 = arith.constant 0 : i32
    %c0_i32_20 = arith.constant 0 : i32
    %c0_i32_21 = arith.constant 0 : i32
    %45 = tpu.memref_slice %arg10[%c0_i32_19, %c0_i32_20, %c0_i32_21] : memref<2x144x256xbf16, #tpu.memory_space<vmem>> -> memref<1x144x256xbf16, #tpu.memory_space<vmem>>
    %46 = tpu.memref_squeeze %45 : memref<1x144x256xbf16, #tpu.memory_space<vmem>> -> memref<144x256xbf16, #tpu.memory_space<vmem>>
    %c16 = arith.constant 16 : index
    %c0_22 = arith.constant 0 : index
    %47 = vector.load %46[%c16, %c0_22] : memref<144x256xbf16, #tpu.memory_space<vmem>>, vector<16x256xbf16>
    tpu.vector_store %46[%c16, %c0_22], %44 {strides = array<i32>} : memref<144x256xbf16, #tpu.memory_space<vmem>>, vector<16x256xbf16>,
    %c71_i32 = arith.constant 71 : i32
    %48 = tpu.dynamic_rotate %29 by %c71_i32 dim 1 : vector<16x256xf32>, i32 -> vector<16x256xf32>
    %c2 = arith.constant 2 : index
    %c0_23 = arith.constant 0 : index
    %49 = vector.load %arg8[%c2, %c0_23] : memref<27x256xbf16, #tpu.memory_space<vmem>>, vector<1x256xbf16>
    %50 = arith.extf %49 : vector<1x256xbf16> to vector<1x256xf32>
    %51 = vector.broadcast %50 : vector<1x256xf32> to vector<16x256xf32>
    %52 = arith.mulf %48, %51 : vector<16x256xf32>
    %53 = arith.truncf %52 : vector<16x256xf32> to vector<16x256xbf16>
    %c0_i32_24 = arith.constant 0 : i32
    %c0_i32_25 = arith.constant 0 : i32
    %c0_i32_26 = arith.constant 0 : i32
    %54 = tpu.memref_slice %arg10[%c0_i32_24, %c0_i32_25, %c0_i32_26] : memref<2x144x256xbf16, #tpu.memory_space<vmem>> -> memref<1x144x256xbf16, #tpu.memory_space<vmem>>
    %55 = tpu.memref_squeeze %54 : memref<1x144x256xbf16, #tpu.memory_space<vmem>> -> memref<144x256xbf16, #tpu.memory_space<vmem>>
    %c32 = arith.constant 32 : index
    %c0_27 = arith.constant 0 : index
    %56 = vector.load %55[%c32, %c0_27] : memref<144x256xbf16, #tpu.memory_space<vmem>>, vector<16x256xbf16>
    tpu.vector_store %55[%c32, %c0_27], %53 {strides = array<i32>} : memref<144x256xbf16, #tpu.memory_space<vmem>>, vector<16x256xbf16>,
    %c65_i32 = arith.constant 65 : i32
    %57 = tpu.dynamic_rotate %29 by %c65_i32 dim 1 : vector<16x256xf32>, i32 -> vector<16x256xf32>
    %c3 = arith.constant 3 : index
    %c0_28 = arith.constant 0 : index
    %58 = vector.load %arg8[%c3, %c0_28] : memref<27x256xbf16, #tpu.memory_space<vmem>>, vector<1x256xbf16>
    %59 = arith.extf %58 : vector<1x256xbf16> to vector<1x256xf32>
    %60 = vector.broadcast %59 : vector<1x256xf32> to vector<16x256xf32>
    %61 = arith.mulf %57, %60 : vector<16x256xf32>
    %62 = arith.truncf %61 : vector<16x256xf32> to vector<16x256xbf16>
    %c0_i32_29 = arith.constant 0 : i32
    %c0_i32_30 = arith.constant 0 : i32
    %c0_i32_31 = arith.constant 0 : i32
    %63 = tpu.memref_slice %arg10[%c0_i32_29, %c0_i32_30, %c0_i32_31] : memref<2x144x256xbf16, #tpu.memory_space<vmem>> -> memref<1x144x256xbf16, #tpu.memory_space<vmem>>
    %64 = tpu.memref_squeeze %63 : memref<1x144x256xbf16, #tpu.memory_space<vmem>> -> memref<144x256xbf16, #tpu.memory_space<vmem>>
    %c48 = arith.constant 48 : index
    %c0_32 = arith.constant 0 : index
    %65 = vector.load %64[%c48, %c0_32] : memref<144x256xbf16, #tpu.memory_space<vmem>>, vector<16x256xbf16>
    tpu.vector_store %64[%c48, %c0_32], %62 {strides = array<i32>} : memref<144x256xbf16, #tpu.memory_space<vmem>>, vector<16x256xbf16>,
    %c64_i32 = arith.constant 64 : i32
    %66 = tpu.dynamic_rotate %29 by %c64_i32 dim 1 : vector<16x256xf32>, i32 -> vector<16x256xf32>
    %c4 = arith.constant 4 : index
    %c0_33 = arith.constant 0 : index
    %67 = vector.load %arg8[%c4, %c0_33] : memref<27x256xbf16, #tpu.memory_space<vmem>>, vector<1x256xbf16>
    %68 = arith.extf %67 : vector<1x256xbf16> to vector<1x256xf32>
    %69 = vector.broadcast %68 : vector<1x256xf32> to vector<16x256xf32>
    %70 = arith.mulf %66, %69 : vector<16x256xf32>
    %71 = arith.truncf %70 : vector<16x256xf32> to vector<16x256xbf16>
    %c0_i32_34 = arith.constant 0 : i32
    %c0_i32_35 = arith.constant 0 : i32
    %c0_i32_36 = arith.constant 0 : i32
    %72 = tpu.memref_slice %arg10[%c0_i32_34, %c0_i32_35, %c0_i32_36] : memref<2x144x256xbf16, #tpu.memory_space<vmem>> -> memref<1x144x256xbf16, #tpu.memory_space<vmem>>
    %73 = tpu.memref_squeeze %72 : memref<1x144x256xbf16, #tpu.memory_space<vmem>> -> memref<144x256xbf16, #tpu.memory_space<vmem>>
    %c64 = arith.constant 64 : index
    %c0_37 = arith.constant 0 : index
    %74 = vector.load %73[%c64, %c0_37] : memref<144x256xbf16, #tpu.memory_space<vmem>>, vector<16x256xbf16>
    tpu.vector_store %73[%c64, %c0_37], %71 {strides = array<i32>} : memref<144x256xbf16, #tpu.memory_space<vmem>>, vector<16x256xbf16>,
    %c63_i32 = arith.constant 63 : i32
    %75 = tpu.dynamic_rotate %29 by %c63_i32 dim 1 : vector<16x256xf32>, i32 -> vector<16x256xf32>
    %c5 = arith.constant 5 : index
    %c0_38 = arith.constant 0 : index
    %76 = vector.load %arg8[%c5, %c0_38] : memref<27x256xbf16, #tpu.memory_space<vmem>>, vector<1x256xbf16>
    %77 = arith.extf %76 : vector<1x256xbf16> to vector<1x256xf32>
    %78 = vector.broadcast %77 : vector<1x256xf32> to vector<16x256xf32>
    %79 = arith.mulf %75, %78 : vector<16x256xf32>
    %80 = arith.truncf %79 : vector<16x256xf32> to vector<16x256xbf16>
    %c0_i32_39 = arith.constant 0 : i32
    %c0_i32_40 = arith.constant 0 : i32
    %c0_i32_41 = arith.constant 0 : i32
    %81 = tpu.memref_slice %arg10[%c0_i32_39, %c0_i32_40, %c0_i32_41] : memref<2x144x256xbf16, #tpu.memory_space<vmem>> -> memref<1x144x256xbf16, #tpu.memory_space<vmem>>
    %82 = tpu.memref_squeeze %81 : memref<1x144x256xbf16, #tpu.memory_space<vmem>> -> memref<144x256xbf16, #tpu.memory_space<vmem>>
    %c80 = arith.constant 80 : index
    %c0_42 = arith.constant 0 : index
    %83 = vector.load %82[%c80, %c0_42] : memref<144x256xbf16, #tpu.memory_space<vmem>>, vector<16x256xbf16>
    tpu.vector_store %82[%c80, %c0_42], %80 {strides = array<i32>} : memref<144x256xbf16, #tpu.memory_space<vmem>>, vector<16x256xbf16>,
    %c57_i32 = arith.constant 57 : i32
    %84 = tpu.dynamic_rotate %29 by %c57_i32 dim 1 : vector<16x256xf32>, i32 -> vector<16x256xf32>
    %c6 = arith.constant 6 : index
    %c0_43 = arith.constant 0 : index
    %85 = vector.load %arg8[%c6, %c0_43] : memref<27x256xbf16, #tpu.memory_space<vmem>>, vector<1x256xbf16>
    %86 = arith.extf %85 : vector<1x256xbf16> to vector<1x256xf32>
    %87 = vector.broadcast %86 : vector<1x256xf32> to vector<16x256xf32>
    %88 = arith.mulf %84, %87 : vector<16x256xf32>
    %89 = arith.truncf %88 : vector<16x256xf32> to vector<16x256xbf16>
    %c0_i32_44 = arith.constant 0 : i32
    %c0_i32_45 = arith.constant 0 : i32
    %c0_i32_46 = arith.constant 0 : i32
    %90 = tpu.memref_slice %arg10[%c0_i32_44, %c0_i32_45, %c0_i32_46] : memref<2x144x256xbf16, #tpu.memory_space<vmem>> -> memref<1x144x256xbf16, #tpu.memory_space<vmem>>
    %91 = tpu.memref_squeeze %90 : memref<1x144x256xbf16, #tpu.memory_space<vmem>> -> memref<144x256xbf16, #tpu.memory_space<vmem>>
    %c96 = arith.constant 96 : index
    %c0_47 = arith.constant 0 : index
    %92 = vector.load %91[%c96, %c0_47] : memref<144x256xbf16, #tpu.memory_space<vmem>>, vector<16x256xbf16>
    tpu.vector_store %91[%c96, %c0_47], %89 {strides = array<i32>} : memref<144x256xbf16, #tpu.memory_space<vmem>>, vector<16x256xbf16>,
    %c56_i32 = arith.constant 56 : i32
    %93 = tpu.dynamic_rotate %29 by %c56_i32 dim 1 : vector<16x256xf32>, i32 -> vector<16x256xf32>
    %c7 = arith.constant 7 : index
    %c0_48 = arith.constant 0 : index
    %94 = vector.load %arg8[%c7, %c0_48] : memref<27x256xbf16, #tpu.memory_space<vmem>>, vector<1x256xbf16>
    %95 = arith.extf %94 : vector<1x256xbf16> to vector<1x256xf32>
    %96 = vector.broadcast %95 : vector<1x256xf32> to vector<16x256xf32>
    %97 = arith.mulf %93, %96 : vector<16x256xf32>
    %98 = arith.truncf %97 : vector<16x256xf32> to vector<16x256xbf16>
    %c0_i32_49 = arith.constant 0 : i32
    %c0_i32_50 = arith.constant 0 : i32
    %c0_i32_51 = arith.constant 0 : i32
    %99 = tpu.memref_slice %arg10[%c0_i32_49, %c0_i32_50, %c0_i32_51] : memref<2x144x256xbf16, #tpu.memory_space<vmem>> -> memref<1x144x256xbf16, #tpu.memory_space<vmem>>
    %100 = tpu.memref_squeeze %99 : memref<1x144x256xbf16, #tpu.memory_space<vmem>> -> memref<144x256xbf16, #tpu.memory_space<vmem>>
    %c112 = arith.constant 112 : index
    %c0_52 = arith.constant 0 : index
    %101 = vector.load %100[%c112, %c0_52] : memref<144x256xbf16, #tpu.memory_space<vmem>>, vector<16x256xbf16>
    tpu.vector_store %100[%c112, %c0_52], %98 {strides = array<i32>} : memref<144x256xbf16, #tpu.memory_space<vmem>>, vector<16x256xbf16>,
    %c55_i32 = arith.constant 55 : i32
    %102 = tpu.dynamic_rotate %29 by %c55_i32 dim 1 : vector<16x256xf32>, i32 -> vector<16x256xf32>
    %c8 = arith.constant 8 : index
    %c0_53 = arith.constant 0 : index
    %103 = vector.load %arg8[%c8, %c0_53] : memref<27x256xbf16, #tpu.memory_space<vmem>>, vector<1x256xbf16>
    %104 = arith.extf %103 : vector<1x256xbf16> to vector<1x256xf32>
    %105 = vector.broadcast %104 : vector<1x256xf32> to vector<16x256xf32>
    %106 = arith.mulf %102, %105 : vector<16x256xf32>
    %107 = arith.truncf %106 : vector<16x256xf32> to vector<16x256xbf16>
    %c0_i32_54 = arith.constant 0 : i32
    %c0_i32_55 = arith.constant 0 : i32
    %c0_i32_56 = arith.constant 0 : i32
    %108 = tpu.memref_slice %arg10[%c0_i32_54, %c0_i32_55, %c0_i32_56] : memref<2x144x256xbf16, #tpu.memory_space<vmem>> -> memref<1x144x256xbf16, #tpu.memory_space<vmem>>
    %109 = tpu.memref_squeeze %108 : memref<1x144x256xbf16, #tpu.memory_space<vmem>> -> memref<144x256xbf16, #tpu.memory_space<vmem>>
    %c128 = arith.constant 128 : index
    %c0_57 = arith.constant 0 : index
    %110 = vector.load %109[%c128, %c0_57] : memref<144x256xbf16, #tpu.memory_space<vmem>>, vector<16x256xbf16>
    tpu.vector_store %109[%c128, %c0_57], %107 {strides = array<i32>} : memref<144x256xbf16, #tpu.memory_space<vmem>>, vector<16x256xbf16>,
    %c0_58 = arith.constant 0 : index
    %c0_59 = arith.constant 0 : index
    %c0_60 = arith.constant 0 : index
    %111 = vector.load %arg4[%c0_58, %c0_59, %c0_60] : memref<3x16x144xbf16, #tpu.memory_space<vmem>>, vector<1x16x144xbf16>
    %112 = vector.shape_cast %111 : vector<1x16x144xbf16> to vector<16x144xbf16>
    %c0_61 = arith.constant 0 : index
    %c0_62 = arith.constant 0 : index
    %c0_63 = arith.constant 0 : index
    %113 = vector.load %arg10[%c0_61, %c0_62, %c0_63] : memref<2x144x256xbf16, #tpu.memory_space<vmem>>, vector<1x144x256xbf16>
    %114 = vector.shape_cast %113 : vector<1x144x256xbf16> to vector<144x256xbf16>
    %cst_64 = arith.constant dense<0.000000e+00> : vector<16x256xf32>
    %115 = tpu.matmul %112, %114, %cst_64 {dimension_numbers = #tpu.dot_dimension_numbers<[1], [0], [0], [1], [0, 0, 1, 1], [], []>} : vector<16x144xbf16>, vector<144x256xbf16>, vector<16x256xf32> -> vector<16x256xf32>
    %c9_i32 = arith.constant 9 : i32
    %116 = tpu.dynamic_rotate %29 by %c9_i32 dim 1 : vector<16x256xf32>, i32 -> vector<16x256xf32>
    %c9 = arith.constant 9 : index
    %c0_65 = arith.constant 0 : index
    %117 = vector.load %arg8[%c9, %c0_65] : memref<27x256xbf16, #tpu.memory_space<vmem>>, vector<1x256xbf16>
    %118 = arith.extf %117 : vector<1x256xbf16> to vector<1x256xf32>
    %119 = vector.broadcast %118 : vector<1x256xf32> to vector<16x256xf32>
    %120 = arith.mulf %116, %119 : vector<16x256xf32>
    %121 = arith.truncf %120 : vector<16x256xf32> to vector<16x256xbf16>
    %c1_i32 = arith.constant 1 : i32
    %c0_i32_66 = arith.constant 0 : i32
    %c0_i32_67 = arith.constant 0 : i32
    %122 = tpu.memref_slice %arg10[%c1_i32, %c0_i32_66, %c0_i32_67] : memref<2x144x256xbf16, #tpu.memory_space<vmem>> -> memref<1x144x256xbf16, #tpu.memory_space<vmem>>
    %123 = tpu.memref_squeeze %122 : memref<1x144x256xbf16, #tpu.memory_space<vmem>> -> memref<144x256xbf16, #tpu.memory_space<vmem>>
    %c0_68 = arith.constant 0 : index
    %c0_69 = arith.constant 0 : index
    %124 = vector.load %123[%c0_68, %c0_69] : memref<144x256xbf16, #tpu.memory_space<vmem>>, vector<16x256xbf16>
    tpu.vector_store %123[%c0_68, %c0_69], %121 {strides = array<i32>} : memref<144x256xbf16, #tpu.memory_space<vmem>>, vector<16x256xbf16>,
    %c8_i32 = arith.constant 8 : i32
    %125 = tpu.dynamic_rotate %29 by %c8_i32 dim 1 : vector<16x256xf32>, i32 -> vector<16x256xf32>
    %c10 = arith.constant 10 : index
    %c0_70 = arith.constant 0 : index
    %126 = vector.load %arg8[%c10, %c0_70] : memref<27x256xbf16, #tpu.memory_space<vmem>>, vector<1x256xbf16>
    %127 = arith.extf %126 : vector<1x256xbf16> to vector<1x256xf32>
    %128 = vector.broadcast %127 : vector<1x256xf32> to vector<16x256xf32>
    %129 = arith.mulf %125, %128 : vector<16x256xf32>
    %130 = arith.truncf %129 : vector<16x256xf32> to vector<16x256xbf16>
    %c1_i32_71 = arith.constant 1 : i32
    %c0_i32_72 = arith.constant 0 : i32
    %c0_i32_73 = arith.constant 0 : i32
    %131 = tpu.memref_slice %arg10[%c1_i32_71, %c0_i32_72, %c0_i32_73] : memref<2x144x256xbf16, #tpu.memory_space<vmem>> -> memref<1x144x256xbf16, #tpu.memory_space<vmem>>
    %132 = tpu.memref_squeeze %131 : memref<1x144x256xbf16, #tpu.memory_space<vmem>> -> memref<144x256xbf16, #tpu.memory_space<vmem>>
    %c16_74 = arith.constant 16 : index
    %c0_75 = arith.constant 0 : index
    %133 = vector.load %132[%c16_74, %c0_75] : memref<144x256xbf16, #tpu.memory_space<vmem>>, vector<16x256xbf16>
    tpu.vector_store %132[%c16_74, %c0_75], %130 {strides = array<i32>} : memref<144x256xbf16, #tpu.memory_space<vmem>>, vector<16x256xbf16>,
    %c7_i32 = arith.constant 7 : i32
    %134 = tpu.dynamic_rotate %29 by %c7_i32 dim 1 : vector<16x256xf32>, i32 -> vector<16x256xf32>
    %c11 = arith.constant 11 : index
    %c0_76 = arith.constant 0 : index
    %135 = vector.load %arg8[%c11, %c0_76] : memref<27x256xbf16, #tpu.memory_space<vmem>>, vector<1x256xbf16>
    %136 = arith.extf %135 : vector<1x256xbf16> to vector<1x256xf32>
    %137 = vector.broadcast %136 : vector<1x256xf32> to vector<16x256xf32>
    %138 = arith.mulf %134, %137 : vector<16x256xf32>
    %139 = arith.truncf %138 : vector<16x256xf32> to vector<16x256xbf16>
    %c1_i32_77 = arith.constant 1 : i32
    %c0_i32_78 = arith.constant 0 : i32
    %c0_i32_79 = arith.constant 0 : i32
    %140 = tpu.memref_slice %arg10[%c1_i32_77, %c0_i32_78, %c0_i32_79] : memref<2x144x256xbf16, #tpu.memory_space<vmem>> -> memref<1x144x256xbf16, #tpu.memory_space<vmem>>
    %141 = tpu.memref_squeeze %140 : memref<1x144x256xbf16, #tpu.memory_space<vmem>> -> memref<144x256xbf16, #tpu.memory_space<vmem>>
    %c32_80 = arith.constant 32 : index
    %c0_81 = arith.constant 0 : index
    %142 = vector.load %141[%c32_80, %c0_81] : memref<144x256xbf16, #tpu.memory_space<vmem>>, vector<16x256xbf16>
    tpu.vector_store %141[%c32_80, %c0_81], %139 {strides = array<i32>} : memref<144x256xbf16, #tpu.memory_space<vmem>>, vector<16x256xbf16>,
    %c1_i32_82 = arith.constant 1 : i32
    %143 = tpu.dynamic_rotate %29 by %c1_i32_82 dim 1 : vector<16x256xf32>, i32 -> vector<16x256xf32>
    %c12 = arith.constant 12 : index
    %c0_83 = arith.constant 0 : index
    %144 = vector.load %arg8[%c12, %c0_83] : memref<27x256xbf16, #tpu.memory_space<vmem>>, vector<1x256xbf16>
    %145 = arith.extf %144 : vector<1x256xbf16> to vector<1x256xf32>
    %146 = vector.broadcast %145 : vector<1x256xf32> to vector<16x256xf32>
    %147 = arith.mulf %143, %146 : vector<16x256xf32>
    %148 = arith.truncf %147 : vector<16x256xf32> to vector<16x256xbf16>
    %c1_i32_84 = arith.constant 1 : i32
    %c0_i32_85 = arith.constant 0 : i32
    %c0_i32_86 = arith.constant 0 : i32
    %149 = tpu.memref_slice %arg10[%c1_i32_84, %c0_i32_85, %c0_i32_86] : memref<2x144x256xbf16, #tpu.memory_space<vmem>> -> memref<1x144x256xbf16, #tpu.memory_space<vmem>>
    %150 = tpu.memref_squeeze %149 : memref<1x144x256xbf16, #tpu.memory_space<vmem>> -> memref<144x256xbf16, #tpu.memory_space<vmem>>
    %c48_87 = arith.constant 48 : index
    %c0_88 = arith.constant 0 : index
    %151 = vector.load %150[%c48_87, %c0_88] : memref<144x256xbf16, #tpu.memory_space<vmem>>, vector<16x256xbf16>
    tpu.vector_store %150[%c48_87, %c0_88], %148 {strides = array<i32>} : memref<144x256xbf16, #tpu.memory_space<vmem>>, vector<16x256xbf16>,
    %152 = arith.truncf %29 : vector<16x256xf32> to vector<16x256xbf16>
    %c1_i32_89 = arith.constant 1 : i32
    %c0_i32_90 = arith.constant 0 : i32
    %c0_i32_91 = arith.constant 0 : i32
    %153 = tpu.memref_slice %arg10[%c1_i32_89, %c0_i32_90, %c0_i32_91] : memref<2x144x256xbf16, #tpu.memory_space<vmem>> -> memref<1x144x256xbf16, #tpu.memory_space<vmem>>
    %154 = tpu.memref_squeeze %153 : memref<1x144x256xbf16, #tpu.memory_space<vmem>> -> memref<144x256xbf16, #tpu.memory_space<vmem>>
    %c64_92 = arith.constant 64 : index
    %c0_93 = arith.constant 0 : index
    %155 = vector.load %154[%c64_92, %c0_93] : memref<144x256xbf16, #tpu.memory_space<vmem>>, vector<16x256xbf16>
    tpu.vector_store %154[%c64_92, %c0_93], %152 {strides = array<i32>} : memref<144x256xbf16, #tpu.memory_space<vmem>>, vector<16x256xbf16>,
    %c255_i32 = arith.constant 255 : i32
    %156 = tpu.dynamic_rotate %29 by %c255_i32 dim 1 : vector<16x256xf32>, i32 -> vector<16x256xf32>
    %c14 = arith.constant 14 : index
    %c0_94 = arith.constant 0 : index
    %157 = vector.load %arg8[%c14, %c0_94] : memref<27x256xbf16, #tpu.memory_space<vmem>>, vector<1x256xbf16>
    %158 = arith.extf %157 : vector<1x256xbf16> to vector<1x256xf32>
    %159 = vector.broadcast %158 : vector<1x256xf32> to vector<16x256xf32>
    %160 = arith.mulf %156, %159 : vector<16x256xf32>
    %161 = arith.truncf %160 : vector<16x256xf32> to vector<16x256xbf16>
    %c1_i32_95 = arith.constant 1 : i32
    %c0_i32_96 = arith.constant 0 : i32
    %c0_i32_97 = arith.constant 0 : i32
    %162 = tpu.memref_slice %arg10[%c1_i32_95, %c0_i32_96, %c0_i32_97] : memref<2x144x256xbf16, #tpu.memory_space<vmem>> -> memref<1x144x256xbf16, #tpu.memory_space<vmem>>
    %163 = tpu.memref_squeeze %162 : memref<1x144x256xbf16, #tpu.memory_space<vmem>> -> memref<144x256xbf16, #tpu.memory_space<vmem>>
    %c80_98 = arith.constant 80 : index
    %c0_99 = arith.constant 0 : index
    %164 = vector.load %163[%c80_98, %c0_99] : memref<144x256xbf16, #tpu.memory_space<vmem>>, vector<16x256xbf16>
    tpu.vector_store %163[%c80_98, %c0_99], %161 {strides = array<i32>} : memref<144x256xbf16, #tpu.memory_space<vmem>>, vector<16x256xbf16>,
    %c249_i32 = arith.constant 249 : i32
    %165 = tpu.dynamic_rotate %29 by %c249_i32 dim 1 : vector<16x256xf32>, i32 -> vector<16x256xf32>
    %c15 = arith.constant 15 : index
    %c0_100 = arith.constant 0 : index
    %166 = vector.load %arg8[%c15, %c0_100] : memref<27x256xbf16, #tpu.memory_space<vmem>>, vector<1x256xbf16>
    %167 = arith.extf %166 : vector<1x256xbf16> to vector<1x256xf32>
    %168 = vector.broadcast %167 : vector<1x256xf32> to vector<16x256xf32>
    %169 = arith.mulf %165, %168 : vector<16x256xf32>
    %170 = arith.truncf %169 : vector<16x256xf32> to vector<16x256xbf16>
    %c1_i32_101 = arith.constant 1 : i32
    %c0_i32_102 = arith.constant 0 : i32
    %c0_i32_103 = arith.constant 0 : i32
    %171 = tpu.memref_slice %arg10[%c1_i32_101, %c0_i32_102, %c0_i32_103] : memref<2x144x256xbf16, #tpu.memory_space<vmem>> -> memref<1x144x256xbf16, #tpu.memory_space<vmem>>
    %172 = tpu.memref_squeeze %171 : memref<1x144x256xbf16, #tpu.memory_space<vmem>> -> memref<144x256xbf16, #tpu.memory_space<vmem>>
    %c96_104 = arith.constant 96 : index
    %c0_105 = arith.constant 0 : index
    %173 = vector.load %172[%c96_104, %c0_105] : memref<144x256xbf16, #tpu.memory_space<vmem>>, vector<16x256xbf16>
    tpu.vector_store %172[%c96_104, %c0_105], %170 {strides = array<i32>} : memref<144x256xbf16, #tpu.memory_space<vmem>>, vector<16x256xbf16>,
    %c248_i32 = arith.constant 248 : i32
    %174 = tpu.dynamic_rotate %29 by %c248_i32 dim 1 : vector<16x256xf32>, i32 -> vector<16x256xf32>
    %c16_106 = arith.constant 16 : index
    %c0_107 = arith.constant 0 : index
    %175 = vector.load %arg8[%c16_106, %c0_107] : memref<27x256xbf16, #tpu.memory_space<vmem>>, vector<1x256xbf16>
    %176 = arith.extf %175 : vector<1x256xbf16> to vector<1x256xf32>
    %177 = vector.broadcast %176 : vector<1x256xf32> to vector<16x256xf32>
    %178 = arith.mulf %174, %177 : vector<16x256xf32>
    %179 = arith.truncf %178 : vector<16x256xf32> to vector<16x256xbf16>
    %c1_i32_108 = arith.constant 1 : i32
    %c0_i32_109 = arith.constant 0 : i32
    %c0_i32_110 = arith.constant 0 : i32
    %180 = tpu.memref_slice %arg10[%c1_i32_108, %c0_i32_109, %c0_i32_110] : memref<2x144x256xbf16, #tpu.memory_space<vmem>> -> memref<1x144x256xbf16, #tpu.memory_space<vmem>>
    %181 = tpu.memref_squeeze %180 : memref<1x144x256xbf16, #tpu.memory_space<vmem>> -> memref<144x256xbf16, #tpu.memory_space<vmem>>
    %c112_111 = arith.constant 112 : index
    %c0_112 = arith.constant 0 : index
    %182 = vector.load %181[%c112_111, %c0_112] : memref<144x256xbf16, #tpu.memory_space<vmem>>, vector<16x256xbf16>
    tpu.vector_store %181[%c112_111, %c0_112], %179 {strides = array<i32>} : memref<144x256xbf16, #tpu.memory_space<vmem>>, vector<16x256xbf16>,
    %c247_i32 = arith.constant 247 : i32
    %183 = tpu.dynamic_rotate %29 by %c247_i32 dim 1 : vector<16x256xf32>, i32 -> vector<16x256xf32>
    %c17 = arith.constant 17 : index
    %c0_113 = arith.constant 0 : index
    %184 = vector.load %arg8[%c17, %c0_113] : memref<27x256xbf16, #tpu.memory_space<vmem>>, vector<1x256xbf16>
    %185 = arith.extf %184 : vector<1x256xbf16> to vector<1x256xf32>
    %186 = vector.broadcast %185 : vector<1x256xf32> to vector<16x256xf32>
    %187 = arith.mulf %183, %186 : vector<16x256xf32>
    %188 = arith.truncf %187 : vector<16x256xf32> to vector<16x256xbf16>
    %c1_i32_114 = arith.constant 1 : i32
    %c0_i32_115 = arith.constant 0 : i32
    %c0_i32_116 = arith.constant 0 : i32
    %189 = tpu.memref_slice %arg10[%c1_i32_114, %c0_i32_115, %c0_i32_116] : memref<2x144x256xbf16, #tpu.memory_space<vmem>> -> memref<1x144x256xbf16, #tpu.memory_space<vmem>>
    %190 = tpu.memref_squeeze %189 : memref<1x144x256xbf16, #tpu.memory_space<vmem>> -> memref<144x256xbf16, #tpu.memory_space<vmem>>
    %c128_117 = arith.constant 128 : index
    %c0_118 = arith.constant 0 : index
    %191 = vector.load %190[%c128_117, %c0_118] : memref<144x256xbf16, #tpu.memory_space<vmem>>, vector<16x256xbf16>
    tpu.vector_store %190[%c128_117, %c0_118], %188 {strides = array<i32>} : memref<144x256xbf16, #tpu.memory_space<vmem>>, vector<16x256xbf16>,
    %c1_119 = arith.constant 1 : index
    %c0_120 = arith.constant 0 : index
    %c0_121 = arith.constant 0 : index
    %192 = vector.load %arg4[%c1_119, %c0_120, %c0_121] : memref<3x16x144xbf16, #tpu.memory_space<vmem>>, vector<1x16x144xbf16>
    %193 = vector.shape_cast %192 : vector<1x16x144xbf16> to vector<16x144xbf16>
    %c1_122 = arith.constant 1 : index
    %c0_123 = arith.constant 0 : index
    %c0_124 = arith.constant 0 : index
    %194 = vector.load %arg10[%c1_122, %c0_123, %c0_124] : memref<2x144x256xbf16, #tpu.memory_space<vmem>>, vector<1x144x256xbf16>
    %195 = vector.shape_cast %194 : vector<1x144x256xbf16> to vector<144x256xbf16>
    %cst_125 = arith.constant dense<0.000000e+00> : vector<16x256xf32>
    %196 = tpu.matmul %193, %195, %cst_125 {dimension_numbers = #tpu.dot_dimension_numbers<[1], [0], [0], [1], [0, 0, 1, 1], [], []>} : vector<16x144xbf16>, vector<144x256xbf16>, vector<16x256xf32> -> vector<16x256xf32>
    %197 = arith.addf %115, %196 : vector<16x256xf32>
    %c201_i32 = arith.constant 201 : i32
    %198 = tpu.dynamic_rotate %29 by %c201_i32 dim 1 : vector<16x256xf32>, i32 -> vector<16x256xf32>
    %c18 = arith.constant 18 : index
    %c0_126 = arith.constant 0 : index
    %199 = vector.load %arg8[%c18, %c0_126] : memref<27x256xbf16, #tpu.memory_space<vmem>>, vector<1x256xbf16>
    %200 = arith.extf %199 : vector<1x256xbf16> to vector<1x256xf32>
    %201 = vector.broadcast %200 : vector<1x256xf32> to vector<16x256xf32>
    %202 = arith.mulf %198, %201 : vector<16x256xf32>
    %203 = arith.truncf %202 : vector<16x256xf32> to vector<16x256xbf16>
    %c0_i32_127 = arith.constant 0 : i32
    %c0_i32_128 = arith.constant 0 : i32
    %c0_i32_129 = arith.constant 0 : i32
    %204 = tpu.memref_slice %arg10[%c0_i32_127, %c0_i32_128, %c0_i32_129] : memref<2x144x256xbf16, #tpu.memory_space<vmem>> -> memref<1x144x256xbf16, #tpu.memory_space<vmem>>
    %205 = tpu.memref_squeeze %204 : memref<1x144x256xbf16, #tpu.memory_space<vmem>> -> memref<144x256xbf16, #tpu.memory_space<vmem>>
    %c0_130 = arith.constant 0 : index
    %c0_131 = arith.constant 0 : index
    %206 = vector.load %205[%c0_130, %c0_131] : memref<144x256xbf16, #tpu.memory_space<vmem>>, vector<16x256xbf16>
    tpu.vector_store %205[%c0_130, %c0_131], %203 {strides = array<i32>} : memref<144x256xbf16, #tpu.memory_space<vmem>>, vector<16x256xbf16>,
    %c200_i32 = arith.constant 200 : i32
    %207 = tpu.dynamic_rotate %29 by %c200_i32 dim 1 : vector<16x256xf32>, i32 -> vector<16x256xf32>
    %c19 = arith.constant 19 : index
    %c0_132 = arith.constant 0 : index
    %208 = vector.load %arg8[%c19, %c0_132] : memref<27x256xbf16, #tpu.memory_space<vmem>>, vector<1x256xbf16>
    %209 = arith.extf %208 : vector<1x256xbf16> to vector<1x256xf32>
    %210 = vector.broadcast %209 : vector<1x256xf32> to vector<16x256xf32>
    %211 = arith.mulf %207, %210 : vector<16x256xf32>
    %212 = arith.truncf %211 : vector<16x256xf32> to vector<16x256xbf16>
    %c0_i32_133 = arith.constant 0 : i32
    %c0_i32_134 = arith.constant 0 : i32
    %c0_i32_135 = arith.constant 0 : i32
    %213 = tpu.memref_slice %arg10[%c0_i32_133, %c0_i32_134, %c0_i32_135] : memref<2x144x256xbf16, #tpu.memory_space<vmem>> -> memref<1x144x256xbf16, #tpu.memory_space<vmem>>
    %214 = tpu.memref_squeeze %213 : memref<1x144x256xbf16, #tpu.memory_space<vmem>> -> memref<144x256xbf16, #tpu.memory_space<vmem>>
    %c16_136 = arith.constant 16 : index
    %c0_137 = arith.constant 0 : index
    %215 = vector.load %214[%c16_136, %c0_137] : memref<144x256xbf16, #tpu.memory_space<vmem>>, vector<16x256xbf16>
    tpu.vector_store %214[%c16_136, %c0_137], %212 {strides = array<i32>} : memref<144x256xbf16, #tpu.memory_space<vmem>>, vector<16x256xbf16>,
    %c199_i32 = arith.constant 199 : i32
    %216 = tpu.dynamic_rotate %29 by %c199_i32 dim 1 : vector<16x256xf32>, i32 -> vector<16x256xf32>
    %c20 = arith.constant 20 : index
    %c0_138 = arith.constant 0 : index
    %217 = vector.load %arg8[%c20, %c0_138] : memref<27x256xbf16, #tpu.memory_space<vmem>>, vector<1x256xbf16>
    %218 = arith.extf %217 : vector<1x256xbf16> to vector<1x256xf32>
    %219 = vector.broadcast %218 : vector<1x256xf32> to vector<16x256xf32>
    %220 = arith.mulf %216, %219 : vector<16x256xf32>
    %221 = arith.truncf %220 : vector<16x256xf32> to vector<16x256xbf16>
    %c0_i32_139 = arith.constant 0 : i32
    %c0_i32_140 = arith.constant 0 : i32
    %c0_i32_141 = arith.constant 0 : i32
    %222 = tpu.memref_slice %arg10[%c0_i32_139, %c0_i32_140, %c0_i32_141] : memref<2x144x256xbf16, #tpu.memory_space<vmem>> -> memref<1x144x256xbf16, #tpu.memory_space<vmem>>
    %223 = tpu.memref_squeeze %222 : memref<1x144x256xbf16, #tpu.memory_space<vmem>> -> memref<144x256xbf16, #tpu.memory_space<vmem>>
    %c32_142 = arith.constant 32 : index
    %c0_143 = arith.constant 0 : index
    %224 = vector.load %223[%c32_142, %c0_143] : memref<144x256xbf16, #tpu.memory_space<vmem>>, vector<16x256xbf16>
    tpu.vector_store %223[%c32_142, %c0_143], %221 {strides = array<i32>} : memref<144x256xbf16, #tpu.memory_space<vmem>>, vector<16x256xbf16>,
    %c193_i32 = arith.constant 193 : i32
    %225 = tpu.dynamic_rotate %29 by %c193_i32 dim 1 : vector<16x256xf32>, i32 -> vector<16x256xf32>
    %c21 = arith.constant 21 : index
    %c0_144 = arith.constant 0 : index
    %226 = vector.load %arg8[%c21, %c0_144] : memref<27x256xbf16, #tpu.memory_space<vmem>>, vector<1x256xbf16>
    %227 = arith.extf %226 : vector<1x256xbf16> to vector<1x256xf32>
    %228 = vector.broadcast %227 : vector<1x256xf32> to vector<16x256xf32>
    %229 = arith.mulf %225, %228 : vector<16x256xf32>
    %230 = arith.truncf %229 : vector<16x256xf32> to vector<16x256xbf16>
    %c0_i32_145 = arith.constant 0 : i32
    %c0_i32_146 = arith.constant 0 : i32
    %c0_i32_147 = arith.constant 0 : i32
    %231 = tpu.memref_slice %arg10[%c0_i32_145, %c0_i32_146, %c0_i32_147] : memref<2x144x256xbf16, #tpu.memory_space<vmem>> -> memref<1x144x256xbf16, #tpu.memory_space<vmem>>
    %232 = tpu.memref_squeeze %231 : memref<1x144x256xbf16, #tpu.memory_space<vmem>> -> memref<144x256xbf16, #tpu.memory_space<vmem>>
    %c48_148 = arith.constant 48 : index
    %c0_149 = arith.constant 0 : index
    %233 = vector.load %232[%c48_148, %c0_149] : memref<144x256xbf16, #tpu.memory_space<vmem>>, vector<16x256xbf16>
    tpu.vector_store %232[%c48_148, %c0_149], %230 {strides = array<i32>} : memref<144x256xbf16, #tpu.memory_space<vmem>>, vector<16x256xbf16>,
    %c192_i32 = arith.constant 192 : i32
    %234 = tpu.dynamic_rotate %29 by %c192_i32 dim 1 : vector<16x256xf32>, i32 -> vector<16x256xf32>
    %c22 = arith.constant 22 : index
    %c0_150 = arith.constant 0 : index
    %235 = vector.load %arg8[%c22, %c0_150] : memref<27x256xbf16, #tpu.memory_space<vmem>>, vector<1x256xbf16>
    %236 = arith.extf %235 : vector<1x256xbf16> to vector<1x256xf32>
    %237 = vector.broadcast %236 : vector<1x256xf32> to vector<16x256xf32>
    %238 = arith.mulf %234, %237 : vector<16x256xf32>
    %239 = arith.truncf %238 : vector<16x256xf32> to vector<16x256xbf16>
    %c0_i32_151 = arith.constant 0 : i32
    %c0_i32_152 = arith.constant 0 : i32
    %c0_i32_153 = arith.constant 0 : i32
    %240 = tpu.memref_slice %arg10[%c0_i32_151, %c0_i32_152, %c0_i32_153] : memref<2x144x256xbf16, #tpu.memory_space<vmem>> -> memref<1x144x256xbf16, #tpu.memory_space<vmem>>
    %241 = tpu.memref_squeeze %240 : memref<1x144x256xbf16, #tpu.memory_space<vmem>> -> memref<144x256xbf16, #tpu.memory_space<vmem>>
    %c64_154 = arith.constant 64 : index
    %c0_155 = arith.constant 0 : index
    %242 = vector.load %241[%c64_154, %c0_155] : memref<144x256xbf16, #tpu.memory_space<vmem>>, vector<16x256xbf16>
    tpu.vector_store %241[%c64_154, %c0_155], %239 {strides = array<i32>} : memref<144x256xbf16, #tpu.memory_space<vmem>>, vector<16x256xbf16>,
    %c191_i32 = arith.constant 191 : i32
    %243 = tpu.dynamic_rotate %29 by %c191_i32 dim 1 : vector<16x256xf32>, i32 -> vector<16x256xf32>
    %c23 = arith.constant 23 : index
    %c0_156 = arith.constant 0 : index
    %244 = vector.load %arg8[%c23, %c0_156] : memref<27x256xbf16, #tpu.memory_space<vmem>>, vector<1x256xbf16>
    %245 = arith.extf %244 : vector<1x256xbf16> to vector<1x256xf32>
    %246 = vector.broadcast %245 : vector<1x256xf32> to vector<16x256xf32>
    %247 = arith.mulf %243, %246 : vector<16x256xf32>
    %248 = arith.truncf %247 : vector<16x256xf32> to vector<16x256xbf16>
    %c0_i32_157 = arith.constant 0 : i32
    %c0_i32_158 = arith.constant 0 : i32
    %c0_i32_159 = arith.constant 0 : i32
    %249 = tpu.memref_slice %arg10[%c0_i32_157, %c0_i32_158, %c0_i32_159] : memref<2x144x256xbf16, #tpu.memory_space<vmem>> -> memref<1x144x256xbf16, #tpu.memory_space<vmem>>
    %250 = tpu.memref_squeeze %249 : memref<1x144x256xbf16, #tpu.memory_space<vmem>> -> memref<144x256xbf16, #tpu.memory_space<vmem>>
    %c80_160 = arith.constant 80 : index
    %c0_161 = arith.constant 0 : index
    %251 = vector.load %250[%c80_160, %c0_161] : memref<144x256xbf16, #tpu.memory_space<vmem>>, vector<16x256xbf16>
    tpu.vector_store %250[%c80_160, %c0_161], %248 {strides = array<i32>} : memref<144x256xbf16, #tpu.memory_space<vmem>>, vector<16x256xbf16>,
    %c185_i32 = arith.constant 185 : i32
    %252 = tpu.dynamic_rotate %29 by %c185_i32 dim 1 : vector<16x256xf32>, i32 -> vector<16x256xf32>
    %c24 = arith.constant 24 : index
    %c0_162 = arith.constant 0 : index
    %253 = vector.load %arg8[%c24, %c0_162] : memref<27x256xbf16, #tpu.memory_space<vmem>>, vector<1x256xbf16>
    %254 = arith.extf %253 : vector<1x256xbf16> to vector<1x256xf32>
    %255 = vector.broadcast %254 : vector<1x256xf32> to vector<16x256xf32>
    %256 = arith.mulf %252, %255 : vector<16x256xf32>
    %257 = arith.truncf %256 : vector<16x256xf32> to vector<16x256xbf16>
    %c0_i32_163 = arith.constant 0 : i32
    %c0_i32_164 = arith.constant 0 : i32
    %c0_i32_165 = arith.constant 0 : i32
    %258 = tpu.memref_slice %arg10[%c0_i32_163, %c0_i32_164, %c0_i32_165] : memref<2x144x256xbf16, #tpu.memory_space<vmem>> -> memref<1x144x256xbf16, #tpu.memory_space<vmem>>
    %259 = tpu.memref_squeeze %258 : memref<1x144x256xbf16, #tpu.memory_space<vmem>> -> memref<144x256xbf16, #tpu.memory_space<vmem>>
    %c96_166 = arith.constant 96 : index
    %c0_167 = arith.constant 0 : index
    %260 = vector.load %259[%c96_166, %c0_167] : memref<144x256xbf16, #tpu.memory_space<vmem>>, vector<16x256xbf16>
    tpu.vector_store %259[%c96_166, %c0_167], %257 {strides = array<i32>} : memref<144x256xbf16, #tpu.memory_space<vmem>>, vector<16x256xbf16>,
    %c184_i32 = arith.constant 184 : i32
    %261 = tpu.dynamic_rotate %29 by %c184_i32 dim 1 : vector<16x256xf32>, i32 -> vector<16x256xf32>
    %c25 = arith.constant 25 : index
    %c0_168 = arith.constant 0 : index
    %262 = vector.load %arg8[%c25, %c0_168] : memref<27x256xbf16, #tpu.memory_space<vmem>>, vector<1x256xbf16>
    %263 = arith.extf %262 : vector<1x256xbf16> to vector<1x256xf32>
    %264 = vector.broadcast %263 : vector<1x256xf32> to vector<16x256xf32>
    %265 = arith.mulf %261, %264 : vector<16x256xf32>
    %266 = arith.truncf %265 : vector<16x256xf32> to vector<16x256xbf16>
    %c0_i32_169 = arith.constant 0 : i32
    %c0_i32_170 = arith.constant 0 : i32
    %c0_i32_171 = arith.constant 0 : i32
    %267 = tpu.memref_slice %arg10[%c0_i32_169, %c0_i32_170, %c0_i32_171] : memref<2x144x256xbf16, #tpu.memory_space<vmem>> -> memref<1x144x256xbf16, #tpu.memory_space<vmem>>
    %268 = tpu.memref_squeeze %267 : memref<1x144x256xbf16, #tpu.memory_space<vmem>> -> memref<144x256xbf16, #tpu.memory_space<vmem>>
    %c112_172 = arith.constant 112 : index
    %c0_173 = arith.constant 0 : index
    %269 = vector.load %268[%c112_172, %c0_173] : memref<144x256xbf16, #tpu.memory_space<vmem>>, vector<16x256xbf16>
    tpu.vector_store %268[%c112_172, %c0_173], %266 {strides = array<i32>} : memref<144x256xbf16, #tpu.memory_space<vmem>>, vector<16x256xbf16>,
    %c183_i32 = arith.constant 183 : i32
    %270 = tpu.dynamic_rotate %29 by %c183_i32 dim 1 : vector<16x256xf32>, i32 -> vector<16x256xf32>
    %c26 = arith.constant 26 : index
    %c0_174 = arith.constant 0 : index
    %271 = vector.load %arg8[%c26, %c0_174] : memref<27x256xbf16, #tpu.memory_space<vmem>>, vector<1x256xbf16>
    %272 = arith.extf %271 : vector<1x256xbf16> to vector<1x256xf32>
    %273 = vector.broadcast %272 : vector<1x256xf32> to vector<16x256xf32>
    %274 = arith.mulf %270, %273 : vector<16x256xf32>
    %275 = arith.truncf %274 : vector<16x256xf32> to vector<16x256xbf16>
    %c0_i32_175 = arith.constant 0 : i32
    %c0_i32_176 = arith.constant 0 : i32
    %c0_i32_177 = arith.constant 0 : i32
    %276 = tpu.memref_slice %arg10[%c0_i32_175, %c0_i32_176, %c0_i32_177] : memref<2x144x256xbf16, #tpu.memory_space<vmem>> -> memref<1x144x256xbf16, #tpu.memory_space<vmem>>
    %277 = tpu.memref_squeeze %276 : memref<1x144x256xbf16, #tpu.memory_space<vmem>> -> memref<144x256xbf16, #tpu.memory_space<vmem>>
    %c128_178 = arith.constant 128 : index
    %c0_179 = arith.constant 0 : index
    %278 = vector.load %277[%c128_178, %c0_179] : memref<144x256xbf16, #tpu.memory_space<vmem>>, vector<16x256xbf16>
    tpu.vector_store %277[%c128_178, %c0_179], %275 {strides = array<i32>} : memref<144x256xbf16, #tpu.memory_space<vmem>>, vector<16x256xbf16>,
    %c2_180 = arith.constant 2 : index
    %c0_181 = arith.constant 0 : index
    %c0_182 = arith.constant 0 : index
    %279 = vector.load %arg4[%c2_180, %c0_181, %c0_182] : memref<3x16x144xbf16, #tpu.memory_space<vmem>>, vector<1x16x144xbf16>
    %280 = vector.shape_cast %279 : vector<1x16x144xbf16> to vector<16x144xbf16>
    %c0_183 = arith.constant 0 : index
    %c0_184 = arith.constant 0 : index
    %c0_185 = arith.constant 0 : index
    %281 = vector.load %arg10[%c0_183, %c0_184, %c0_185] : memref<2x144x256xbf16, #tpu.memory_space<vmem>>, vector<1x144x256xbf16>
    %282 = vector.shape_cast %281 : vector<1x144x256xbf16> to vector<144x256xbf16>
    %cst_186 = arith.constant dense<0.000000e+00> : vector<16x256xf32>
    %283 = tpu.matmul %280, %282, %cst_186 {dimension_numbers = #tpu.dot_dimension_numbers<[1], [0], [0], [1], [0, 0, 1, 1], [], []>} : vector<16x144xbf16>, vector<144x256xbf16>, vector<16x256xf32> -> vector<16x256xf32>
    %284 = arith.addf %197, %283 : vector<16x256xf32>
    %cst_187 = arith.constant dense<0.000000e+00> : vector<16xf32>
    %285 = vector.multi_reduction <add>, %284, %cst_187 [1] : vector<16x256xf32> to vector<16xf32>
    %286 = vector.shape_cast %285 : vector<16xf32> to vector<16x1xf32>
    %287 = arith.mulf %284, %284 : vector<16x256xf32>
    %cst_188 = arith.constant dense<0.000000e+00> : vector<16xf32>
    %288 = vector.multi_reduction <add>, %287, %cst_188 [1] : vector<16x256xf32> to vector<16xf32>
    %289 = vector.shape_cast %288 : vector<16xf32> to vector<16x1xf32>
    %cst_189 = arith.constant 3.906250e-03 : f32
    %290 = vector.broadcast %cst_189 : f32 to vector<16x1xf32>
    %291 = arith.mulf %286, %290 : vector<16x1xf32>
    %cst_190 = arith.constant 3.906250e-03 : f32
    %292 = vector.broadcast %cst_190 : f32 to vector<16x1xf32>
    %293 = arith.mulf %289, %292 : vector<16x1xf32>
    %294 = arith.mulf %291, %291 : vector<16x1xf32>
    %295 = arith.subf %293, %294 : vector<16x1xf32>
    %cst_191 = arith.constant 0.000000e+00 : f32
    %296 = vector.broadcast %cst_191 : f32 to vector<16x1xf32>
    %297 = arith.maximumf %295, %296 : vector<16x1xf32>
    %c0_192 = arith.constant 0 : index
    %c0_193 = arith.constant 0 : index
    %298 = vector.load %arg5[%c0_192, %c0_193] : memref<16x1xf32, #tpu.memory_space<vmem>>, vector<16x1xf32>
    %cst_194 = arith.constant 9.99999974E-6 : f32
    %299 = vector.broadcast %cst_194 : f32 to vector<16x1xf32>
    %300 = arith.addf %297, %299 : vector<16x1xf32>
    %301 = math.rsqrt %300 : vector<16x1xf32>
    %302 = arith.mulf %298, %301 : vector<16x1xf32>
    %c0_195 = arith.constant 0 : index
    %c0_196 = arith.constant 0 : index
    %303 = vector.load %arg6[%c0_195, %c0_196] : memref<16x1xf32, #tpu.memory_space<vmem>>, vector<16x1xf32>
    %304 = arith.mulf %291, %302 : vector<16x1xf32>
    %305 = arith.subf %303, %304 : vector<16x1xf32>
    %306 = vector.broadcast %302 : vector<16x1xf32> to vector<16x256xf32>
    %307 = arith.mulf %284, %306 : vector<16x256xf32>
    %308 = vector.broadcast %305 : vector<16x1xf32> to vector<16x256xf32>
    %309 = arith.addf %307, %308 : vector<16x256xf32>
    %cst_197 = arith.constant 1.000000e-01 : f32
    %310 = vector.broadcast %cst_197 : f32 to vector<16x256xf32>
    %311 = arith.mulf %310, %309 : vector<16x256xf32>
    %312 = arith.maximumf %309, %311 : vector<16x256xf32>
    %c73_i32_198 = arith.constant 73 : i32
    %313 = tpu.dynamic_rotate %312 by %c73_i32_198 dim 1 : vector<16x256xf32>, i32 -> vector<16x256xf32>
    %c0_199 = arith.constant 0 : index
    %c0_200 = arith.constant 0 : index
    %314 = vector.load %arg8[%c0_199, %c0_200] : memref<27x256xbf16, #tpu.memory_space<vmem>>, vector<1x256xbf16>
    %315 = arith.extf %314 : vector<1x256xbf16> to vector<1x256xf32>
    %316 = vector.broadcast %315 : vector<1x256xf32> to vector<16x256xf32>
    %317 = arith.mulf %313, %316 : vector<16x256xf32>
    %318 = arith.truncf %317 : vector<16x256xf32> to vector<16x256xbf16>
    %c0_i32_201 = arith.constant 0 : i32
    %c0_i32_202 = arith.constant 0 : i32
    %c0_i32_203 = arith.constant 0 : i32
    %319 = tpu.memref_slice %arg10[%c0_i32_201, %c0_i32_202, %c0_i32_203] : memref<2x144x256xbf16, #tpu.memory_space<vmem>> -> memref<1x144x256xbf16, #tpu.memory_space<vmem>>
    %320 = tpu.memref_squeeze %319 : memref<1x144x256xbf16, #tpu.memory_space<vmem>> -> memref<144x256xbf16, #tpu.memory_space<vmem>>
    %c0_204 = arith.constant 0 : index
    %c0_205 = arith.constant 0 : index
    %321 = vector.load %320[%c0_204, %c0_205] : memref<144x256xbf16, #tpu.memory_space<vmem>>, vector<16x256xbf16>
    tpu.vector_store %320[%c0_204, %c0_205], %318 {strides = array<i32>} : memref<144x256xbf16, #tpu.memory_space<vmem>>, vector<16x256xbf16>,
    %c72_i32_206 = arith.constant 72 : i32
    %322 = tpu.dynamic_rotate %312 by %c72_i32_206 dim 1 : vector<16x256xf32>, i32 -> vector<16x256xf32>
    %c1_207 = arith.constant 1 : index
    %c0_208 = arith.constant 0 : index
    %323 = vector.load %arg8[%c1_207, %c0_208] : memref<27x256xbf16, #tpu.memory_space<vmem>>, vector<1x256xbf16>
    %324 = arith.extf %323 : vector<1x256xbf16> to vector<1x256xf32>
    %325 = vector.broadcast %324 : vector<1x256xf32> to vector<16x256xf32>
    %326 = arith.mulf %322, %325 : vector<16x256xf32>
    %327 = arith.truncf %326 : vector<16x256xf32> to vector<16x256xbf16>
    %c0_i32_209 = arith.constant 0 : i32
    %c0_i32_210 = arith.constant 0 : i32
    %c0_i32_211 = arith.constant 0 : i32
    %328 = tpu.memref_slice %arg10[%c0_i32_209, %c0_i32_210, %c0_i32_211] : memref<2x144x256xbf16, #tpu.memory_space<vmem>> -> memref<1x144x256xbf16, #tpu.memory_space<vmem>>
    %329 = tpu.memref_squeeze %328 : memref<1x144x256xbf16, #tpu.memory_space<vmem>> -> memref<144x256xbf16, #tpu.memory_space<vmem>>
    %c16_212 = arith.constant 16 : index
    %c0_213 = arith.constant 0 : index
    %330 = vector.load %329[%c16_212, %c0_213] : memref<144x256xbf16, #tpu.memory_space<vmem>>, vector<16x256xbf16>
    tpu.vector_store %329[%c16_212, %c0_213], %327 {strides = array<i32>} : memref<144x256xbf16, #tpu.memory_space<vmem>>, vector<16x256xbf16>,
    %c71_i32_214 = arith.constant 71 : i32
    %331 = tpu.dynamic_rotate %312 by %c71_i32_214 dim 1 : vector<16x256xf32>, i32 -> vector<16x256xf32>
    %c2_215 = arith.constant 2 : index
    %c0_216 = arith.constant 0 : index
    %332 = vector.load %arg8[%c2_215, %c0_216] : memref<27x256xbf16, #tpu.memory_space<vmem>>, vector<1x256xbf16>
    %333 = arith.extf %332 : vector<1x256xbf16> to vector<1x256xf32>
    %334 = vector.broadcast %333 : vector<1x256xf32> to vector<16x256xf32>
    %335 = arith.mulf %331, %334 : vector<16x256xf32>
    %336 = arith.truncf %335 : vector<16x256xf32> to vector<16x256xbf16>
    %c0_i32_217 = arith.constant 0 : i32
    %c0_i32_218 = arith.constant 0 : i32
    %c0_i32_219 = arith.constant 0 : i32
    %337 = tpu.memref_slice %arg10[%c0_i32_217, %c0_i32_218, %c0_i32_219] : memref<2x144x256xbf16, #tpu.memory_space<vmem>> -> memref<1x144x256xbf16, #tpu.memory_space<vmem>>
    %338 = tpu.memref_squeeze %337 : memref<1x144x256xbf16, #tpu.memory_space<vmem>> -> memref<144x256xbf16, #tpu.memory_space<vmem>>
    %c32_220 = arith.constant 32 : index
    %c0_221 = arith.constant 0 : index
    %339 = vector.load %338[%c32_220, %c0_221] : memref<144x256xbf16, #tpu.memory_space<vmem>>, vector<16x256xbf16>
    tpu.vector_store %338[%c32_220, %c0_221], %336 {strides = array<i32>} : memref<144x256xbf16, #tpu.memory_space<vmem>>, vector<16x256xbf16>,
    %c65_i32_222 = arith.constant 65 : i32
    %340 = tpu.dynamic_rotate %312 by %c65_i32_222 dim 1 : vector<16x256xf32>, i32 -> vector<16x256xf32>
    %c3_223 = arith.constant 3 : index
    %c0_224 = arith.constant 0 : index
    %341 = vector.load %arg8[%c3_223, %c0_224] : memref<27x256xbf16, #tpu.memory_space<vmem>>, vector<1x256xbf16>
    %342 = arith.extf %341 : vector<1x256xbf16> to vector<1x256xf32>
    %343 = vector.broadcast %342 : vector<1x256xf32> to vector<16x256xf32>
    %344 = arith.mulf %340, %343 : vector<16x256xf32>
    %345 = arith.truncf %344 : vector<16x256xf32> to vector<16x256xbf16>
    %c0_i32_225 = arith.constant 0 : i32
    %c0_i32_226 = arith.constant 0 : i32
    %c0_i32_227 = arith.constant 0 : i32
    %346 = tpu.memref_slice %arg10[%c0_i32_225, %c0_i32_226, %c0_i32_227] : memref<2x144x256xbf16, #tpu.memory_space<vmem>> -> memref<1x144x256xbf16, #tpu.memory_space<vmem>>
    %347 = tpu.memref_squeeze %346 : memref<1x144x256xbf16, #tpu.memory_space<vmem>> -> memref<144x256xbf16, #tpu.memory_space<vmem>>
    %c48_228 = arith.constant 48 : index
    %c0_229 = arith.constant 0 : index
    %348 = vector.load %347[%c48_228, %c0_229] : memref<144x256xbf16, #tpu.memory_space<vmem>>, vector<16x256xbf16>
    tpu.vector_store %347[%c48_228, %c0_229], %345 {strides = array<i32>} : memref<144x256xbf16, #tpu.memory_space<vmem>>, vector<16x256xbf16>,
    %c64_i32_230 = arith.constant 64 : i32
    %349 = tpu.dynamic_rotate %312 by %c64_i32_230 dim 1 : vector<16x256xf32>, i32 -> vector<16x256xf32>
    %c4_231 = arith.constant 4 : index
    %c0_232 = arith.constant 0 : index
    %350 = vector.load %arg8[%c4_231, %c0_232] : memref<27x256xbf16, #tpu.memory_space<vmem>>, vector<1x256xbf16>
    %351 = arith.extf %350 : vector<1x256xbf16> to vector<1x256xf32>
    %352 = vector.broadcast %351 : vector<1x256xf32> to vector<16x256xf32>
    %353 = arith.mulf %349, %352 : vector<16x256xf32>
    %354 = arith.truncf %353 : vector<16x256xf32> to vector<16x256xbf16>
    %c0_i32_233 = arith.constant 0 : i32
    %c0_i32_234 = arith.constant 0 : i32
    %c0_i32_235 = arith.constant 0 : i32
    %355 = tpu.memref_slice %arg10[%c0_i32_233, %c0_i32_234, %c0_i32_235] : memref<2x144x256xbf16, #tpu.memory_space<vmem>> -> memref<1x144x256xbf16, #tpu.memory_space<vmem>>
    %356 = tpu.memref_squeeze %355 : memref<1x144x256xbf16, #tpu.memory_space<vmem>> -> memref<144x256xbf16, #tpu.memory_space<vmem>>
    %c64_236 = arith.constant 64 : index
    %c0_237 = arith.constant 0 : index
    %357 = vector.load %356[%c64_236, %c0_237] : memref<144x256xbf16, #tpu.memory_space<vmem>>, vector<16x256xbf16>
    tpu.vector_store %356[%c64_236, %c0_237], %354 {strides = array<i32>} : memref<144x256xbf16, #tpu.memory_space<vmem>>, vector<16x256xbf16>,
    %c63_i32_238 = arith.constant 63 : i32
    %358 = tpu.dynamic_rotate %312 by %c63_i32_238 dim 1 : vector<16x256xf32>, i32 -> vector<16x256xf32>
    %c5_239 = arith.constant 5 : index
    %c0_240 = arith.constant 0 : index
    %359 = vector.load %arg8[%c5_239, %c0_240] : memref<27x256xbf16, #tpu.memory_space<vmem>>, vector<1x256xbf16>
    %360 = arith.extf %359 : vector<1x256xbf16> to vector<1x256xf32>
    %361 = vector.broadcast %360 : vector<1x256xf32> to vector<16x256xf32>
    %362 = arith.mulf %358, %361 : vector<16x256xf32>
    %363 = arith.truncf %362 : vector<16x256xf32> to vector<16x256xbf16>
    %c0_i32_241 = arith.constant 0 : i32
    %c0_i32_242 = arith.constant 0 : i32
    %c0_i32_243 = arith.constant 0 : i32
    %364 = tpu.memref_slice %arg10[%c0_i32_241, %c0_i32_242, %c0_i32_243] : memref<2x144x256xbf16, #tpu.memory_space<vmem>> -> memref<1x144x256xbf16, #tpu.memory_space<vmem>>
    %365 = tpu.memref_squeeze %364 : memref<1x144x256xbf16, #tpu.memory_space<vmem>> -> memref<144x256xbf16, #tpu.memory_space<vmem>>
    %c80_244 = arith.constant 80 : index
    %c0_245 = arith.constant 0 : index
    %366 = vector.load %365[%c80_244, %c0_245] : memref<144x256xbf16, #tpu.memory_space<vmem>>, vector<16x256xbf16>
    tpu.vector_store %365[%c80_244, %c0_245], %363 {strides = array<i32>} : memref<144x256xbf16, #tpu.memory_space<vmem>>, vector<16x256xbf16>,
    %c57_i32_246 = arith.constant 57 : i32
    %367 = tpu.dynamic_rotate %312 by %c57_i32_246 dim 1 : vector<16x256xf32>, i32 -> vector<16x256xf32>
    %c6_247 = arith.constant 6 : index
    %c0_248 = arith.constant 0 : index
    %368 = vector.load %arg8[%c6_247, %c0_248] : memref<27x256xbf16, #tpu.memory_space<vmem>>, vector<1x256xbf16>
    %369 = arith.extf %368 : vector<1x256xbf16> to vector<1x256xf32>
    %370 = vector.broadcast %369 : vector<1x256xf32> to vector<16x256xf32>
    %371 = arith.mulf %367, %370 : vector<16x256xf32>
    %372 = arith.truncf %371 : vector<16x256xf32> to vector<16x256xbf16>
    %c0_i32_249 = arith.constant 0 : i32
    %c0_i32_250 = arith.constant 0 : i32
    %c0_i32_251 = arith.constant 0 : i32
    %373 = tpu.memref_slice %arg10[%c0_i32_249, %c0_i32_250, %c0_i32_251] : memref<2x144x256xbf16, #tpu.memory_space<vmem>> -> memref<1x144x256xbf16, #tpu.memory_space<vmem>>
    %374 = tpu.memref_squeeze %373 : memref<1x144x256xbf16, #tpu.memory_space<vmem>> -> memref<144x256xbf16, #tpu.memory_space<vmem>>
    %c96_252 = arith.constant 96 : index
    %c0_253 = arith.constant 0 : index
    %375 = vector.load %374[%c96_252, %c0_253] : memref<144x256xbf16, #tpu.memory_space<vmem>>, vector<16x256xbf16>
    tpu.vector_store %374[%c96_252, %c0_253], %372 {strides = array<i32>} : memref<144x256xbf16, #tpu.memory_space<vmem>>, vector<16x256xbf16>,
    %c56_i32_254 = arith.constant 56 : i32
    %376 = tpu.dynamic_rotate %312 by %c56_i32_254 dim 1 : vector<16x256xf32>, i32 -> vector<16x256xf32>
    %c7_255 = arith.constant 7 : index
    %c0_256 = arith.constant 0 : index
    %377 = vector.load %arg8[%c7_255, %c0_256] : memref<27x256xbf16, #tpu.memory_space<vmem>>, vector<1x256xbf16>
    %378 = arith.extf %377 : vector<1x256xbf16> to vector<1x256xf32>
    %379 = vector.broadcast %378 : vector<1x256xf32> to vector<16x256xf32>
    %380 = arith.mulf %376, %379 : vector<16x256xf32>
    %381 = arith.truncf %380 : vector<16x256xf32> to vector<16x256xbf16>
    %c0_i32_257 = arith.constant 0 : i32
    %c0_i32_258 = arith.constant 0 : i32
    %c0_i32_259 = arith.constant 0 : i32
    %382 = tpu.memref_slice %arg10[%c0_i32_257, %c0_i32_258, %c0_i32_259] : memref<2x144x256xbf16, #tpu.memory_space<vmem>> -> memref<1x144x256xbf16, #tpu.memory_space<vmem>>
    %383 = tpu.memref_squeeze %382 : memref<1x144x256xbf16, #tpu.memory_space<vmem>> -> memref<144x256xbf16, #tpu.memory_space<vmem>>
    %c112_260 = arith.constant 112 : index
    %c0_261 = arith.constant 0 : index
    %384 = vector.load %383[%c112_260, %c0_261] : memref<144x256xbf16, #tpu.memory_space<vmem>>, vector<16x256xbf16>
    tpu.vector_store %383[%c112_260, %c0_261], %381 {strides = array<i32>} : memref<144x256xbf16, #tpu.memory_space<vmem>>, vector<16x256xbf16>,
    %c55_i32_262 = arith.constant 55 : i32
    %385 = tpu.dynamic_rotate %312 by %c55_i32_262 dim 1 : vector<16x256xf32>, i32 -> vector<16x256xf32>
    %c8_263 = arith.constant 8 : index
    %c0_264 = arith.constant 0 : index
    %386 = vector.load %arg8[%c8_263, %c0_264] : memref<27x256xbf16, #tpu.memory_space<vmem>>, vector<1x256xbf16>
    %387 = arith.extf %386 : vector<1x256xbf16> to vector<1x256xf32>
    %388 = vector.broadcast %387 : vector<1x256xf32> to vector<16x256xf32>
    %389 = arith.mulf %385, %388 : vector<16x256xf32>
    %390 = arith.truncf %389 : vector<16x256xf32> to vector<16x256xbf16>
    %c0_i32_265 = arith.constant 0 : i32
    %c0_i32_266 = arith.constant 0 : i32
    %c0_i32_267 = arith.constant 0 : i32
    %391 = tpu.memref_slice %arg10[%c0_i32_265, %c0_i32_266, %c0_i32_267] : memref<2x144x256xbf16, #tpu.memory_space<vmem>> -> memref<1x144x256xbf16, #tpu.memory_space<vmem>>
    %392 = tpu.memref_squeeze %391 : memref<1x144x256xbf16, #tpu.memory_space<vmem>> -> memref<144x256xbf16, #tpu.memory_space<vmem>>
    %c128_268 = arith.constant 128 : index
    %c0_269 = arith.constant 0 : index
    %393 = vector.load %392[%c128_268, %c0_269] : memref<144x256xbf16, #tpu.memory_space<vmem>>, vector<16x256xbf16>
    tpu.vector_store %392[%c128_268, %c0_269], %390 {strides = array<i32>} : memref<144x256xbf16, #tpu.memory_space<vmem>>, vector<16x256xbf16>,
    %c0_270 = arith.constant 0 : index
    %c0_271 = arith.constant 0 : index
    %c0_272 = arith.constant 0 : index
    %394 = vector.load %arg7[%c0_270, %c0_271, %c0_272] : memref<3x16x144xbf16, #tpu.memory_space<vmem>>, vector<1x16x144xbf16>
    %395 = vector.shape_cast %394 : vector<1x16x144xbf16> to vector<16x144xbf16>
    %c0_273 = arith.constant 0 : index
    %c0_274 = arith.constant 0 : index
    %c0_275 = arith.constant 0 : index
    %396 = vector.load %arg10[%c0_273, %c0_274, %c0_275] : memref<2x144x256xbf16, #tpu.memory_space<vmem>>, vector<1x144x256xbf16>
    %397 = vector.shape_cast %396 : vector<1x144x256xbf16> to vector<144x256xbf16>
    %cst_276 = arith.constant dense<0.000000e+00> : vector<16x256xf32>
    %398 = tpu.matmul %395, %397, %cst_276 {dimension_numbers = #tpu.dot_dimension_numbers<[1], [0], [0], [1], [0, 0, 1, 1], [], []>} : vector<16x144xbf16>, vector<144x256xbf16>, vector<16x256xf32> -> vector<16x256xf32>
    %c9_i32_277 = arith.constant 9 : i32
    %399 = tpu.dynamic_rotate %312 by %c9_i32_277 dim 1 : vector<16x256xf32>, i32 -> vector<16x256xf32>
    %c9_278 = arith.constant 9 : index
    %c0_279 = arith.constant 0 : index
    %400 = vector.load %arg8[%c9_278, %c0_279] : memref<27x256xbf16, #tpu.memory_space<vmem>>, vector<1x256xbf16>
    %401 = arith.extf %400 : vector<1x256xbf16> to vector<1x256xf32>
    %402 = vector.broadcast %401 : vector<1x256xf32> to vector<16x256xf32>
    %403 = arith.mulf %399, %402 : vector<16x256xf32>
    %404 = arith.truncf %403 : vector<16x256xf32> to vector<16x256xbf16>
    %c1_i32_280 = arith.constant 1 : i32
    %c0_i32_281 = arith.constant 0 : i32
    %c0_i32_282 = arith.constant 0 : i32
    %405 = tpu.memref_slice %arg10[%c1_i32_280, %c0_i32_281, %c0_i32_282] : memref<2x144x256xbf16, #tpu.memory_space<vmem>> -> memref<1x144x256xbf16, #tpu.memory_space<vmem>>
    %406 = tpu.memref_squeeze %405 : memref<1x144x256xbf16, #tpu.memory_space<vmem>> -> memref<144x256xbf16, #tpu.memory_space<vmem>>
    %c0_283 = arith.constant 0 : index
    %c0_284 = arith.constant 0 : index
    %407 = vector.load %406[%c0_283, %c0_284] : memref<144x256xbf16, #tpu.memory_space<vmem>>, vector<16x256xbf16>
    tpu.vector_store %406[%c0_283, %c0_284], %404 {strides = array<i32>} : memref<144x256xbf16, #tpu.memory_space<vmem>>, vector<16x256xbf16>,
    %c8_i32_285 = arith.constant 8 : i32
    %408 = tpu.dynamic_rotate %312 by %c8_i32_285 dim 1 : vector<16x256xf32>, i32 -> vector<16x256xf32>
    %c10_286 = arith.constant 10 : index
    %c0_287 = arith.constant 0 : index
    %409 = vector.load %arg8[%c10_286, %c0_287] : memref<27x256xbf16, #tpu.memory_space<vmem>>, vector<1x256xbf16>
    %410 = arith.extf %409 : vector<1x256xbf16> to vector<1x256xf32>
    %411 = vector.broadcast %410 : vector<1x256xf32> to vector<16x256xf32>
    %412 = arith.mulf %408, %411 : vector<16x256xf32>
    %413 = arith.truncf %412 : vector<16x256xf32> to vector<16x256xbf16>
    %c1_i32_288 = arith.constant 1 : i32
    %c0_i32_289 = arith.constant 0 : i32
    %c0_i32_290 = arith.constant 0 : i32
    %414 = tpu.memref_slice %arg10[%c1_i32_288, %c0_i32_289, %c0_i32_290] : memref<2x144x256xbf16, #tpu.memory_space<vmem>> -> memref<1x144x256xbf16, #tpu.memory_space<vmem>>
    %415 = tpu.memref_squeeze %414 : memref<1x144x256xbf16, #tpu.memory_space<vmem>> -> memref<144x256xbf16, #tpu.memory_space<vmem>>
    %c16_291 = arith.constant 16 : index
    %c0_292 = arith.constant 0 : index
    %416 = vector.load %415[%c16_291, %c0_292] : memref<144x256xbf16, #tpu.memory_space<vmem>>, vector<16x256xbf16>
    tpu.vector_store %415[%c16_291, %c0_292], %413 {strides = array<i32>} : memref<144x256xbf16, #tpu.memory_space<vmem>>, vector<16x256xbf16>,
    %c7_i32_293 = arith.constant 7 : i32
    %417 = tpu.dynamic_rotate %312 by %c7_i32_293 dim 1 : vector<16x256xf32>, i32 -> vector<16x256xf32>
    %c11_294 = arith.constant 11 : index
    %c0_295 = arith.constant 0 : index
    %418 = vector.load %arg8[%c11_294, %c0_295] : memref<27x256xbf16, #tpu.memory_space<vmem>>, vector<1x256xbf16>
    %419 = arith.extf %418 : vector<1x256xbf16> to vector<1x256xf32>
    %420 = vector.broadcast %419 : vector<1x256xf32> to vector<16x256xf32>
    %421 = arith.mulf %417, %420 : vector<16x256xf32>
    %422 = arith.truncf %421 : vector<16x256xf32> to vector<16x256xbf16>
    %c1_i32_296 = arith.constant 1 : i32
    %c0_i32_297 = arith.constant 0 : i32
    %c0_i32_298 = arith.constant 0 : i32
    %423 = tpu.memref_slice %arg10[%c1_i32_296, %c0_i32_297, %c0_i32_298] : memref<2x144x256xbf16, #tpu.memory_space<vmem>> -> memref<1x144x256xbf16, #tpu.memory_space<vmem>>
    %424 = tpu.memref_squeeze %423 : memref<1x144x256xbf16, #tpu.memory_space<vmem>> -> memref<144x256xbf16, #tpu.memory_space<vmem>>
    %c32_299 = arith.constant 32 : index
    %c0_300 = arith.constant 0 : index
    %425 = vector.load %424[%c32_299, %c0_300] : memref<144x256xbf16, #tpu.memory_space<vmem>>, vector<16x256xbf16>
    tpu.vector_store %424[%c32_299, %c0_300], %422 {strides = array<i32>} : memref<144x256xbf16, #tpu.memory_space<vmem>>, vector<16x256xbf16>,
    %c1_i32_301 = arith.constant 1 : i32
    %426 = tpu.dynamic_rotate %312 by %c1_i32_301 dim 1 : vector<16x256xf32>, i32 -> vector<16x256xf32>
    %c12_302 = arith.constant 12 : index
    %c0_303 = arith.constant 0 : index
    %427 = vector.load %arg8[%c12_302, %c0_303] : memref<27x256xbf16, #tpu.memory_space<vmem>>, vector<1x256xbf16>
    %428 = arith.extf %427 : vector<1x256xbf16> to vector<1x256xf32>
    %429 = vector.broadcast %428 : vector<1x256xf32> to vector<16x256xf32>
    %430 = arith.mulf %426, %429 : vector<16x256xf32>
    %431 = arith.truncf %430 : vector<16x256xf32> to vector<16x256xbf16>
    %c1_i32_304 = arith.constant 1 : i32
    %c0_i32_305 = arith.constant 0 : i32
    %c0_i32_306 = arith.constant 0 : i32
    %432 = tpu.memref_slice %arg10[%c1_i32_304, %c0_i32_305, %c0_i32_306] : memref<2x144x256xbf16, #tpu.memory_space<vmem>> -> memref<1x144x256xbf16, #tpu.memory_space<vmem>>
    %433 = tpu.memref_squeeze %432 : memref<1x144x256xbf16, #tpu.memory_space<vmem>> -> memref<144x256xbf16, #tpu.memory_space<vmem>>
    %c48_307 = arith.constant 48 : index
    %c0_308 = arith.constant 0 : index
    %434 = vector.load %433[%c48_307, %c0_308] : memref<144x256xbf16, #tpu.memory_space<vmem>>, vector<16x256xbf16>
    tpu.vector_store %433[%c48_307, %c0_308], %431 {strides = array<i32>} : memref<144x256xbf16, #tpu.memory_space<vmem>>, vector<16x256xbf16>,
    %435 = arith.truncf %312 : vector<16x256xf32> to vector<16x256xbf16>
    %c1_i32_309 = arith.constant 1 : i32
    %c0_i32_310 = arith.constant 0 : i32
    %c0_i32_311 = arith.constant 0 : i32
    %436 = tpu.memref_slice %arg10[%c1_i32_309, %c0_i32_310, %c0_i32_311] : memref<2x144x256xbf16, #tpu.memory_space<vmem>> -> memref<1x144x256xbf16, #tpu.memory_space<vmem>>
    %437 = tpu.memref_squeeze %436 : memref<1x144x256xbf16, #tpu.memory_space<vmem>> -> memref<144x256xbf16, #tpu.memory_space<vmem>>
    %c64_312 = arith.constant 64 : index
    %c0_313 = arith.constant 0 : index
    %438 = vector.load %437[%c64_312, %c0_313] : memref<144x256xbf16, #tpu.memory_space<vmem>>, vector<16x256xbf16>
    tpu.vector_store %437[%c64_312, %c0_313], %435 {strides = array<i32>} : memref<144x256xbf16, #tpu.memory_space<vmem>>, vector<16x256xbf16>,
    %c255_i32_314 = arith.constant 255 : i32
    %439 = tpu.dynamic_rotate %312 by %c255_i32_314 dim 1 : vector<16x256xf32>, i32 -> vector<16x256xf32>
    %c14_315 = arith.constant 14 : index
    %c0_316 = arith.constant 0 : index
    %440 = vector.load %arg8[%c14_315, %c0_316] : memref<27x256xbf16, #tpu.memory_space<vmem>>, vector<1x256xbf16>
    %441 = arith.extf %440 : vector<1x256xbf16> to vector<1x256xf32>
    %442 = vector.broadcast %441 : vector<1x256xf32> to vector<16x256xf32>
    %443 = arith.mulf %439, %442 : vector<16x256xf32>
    %444 = arith.truncf %443 : vector<16x256xf32> to vector<16x256xbf16>
    %c1_i32_317 = arith.constant 1 : i32
    %c0_i32_318 = arith.constant 0 : i32
    %c0_i32_319 = arith.constant 0 : i32
    %445 = tpu.memref_slice %arg10[%c1_i32_317, %c0_i32_318, %c0_i32_319] : memref<2x144x256xbf16, #tpu.memory_space<vmem>> -> memref<1x144x256xbf16, #tpu.memory_space<vmem>>
    %446 = tpu.memref_squeeze %445 : memref<1x144x256xbf16, #tpu.memory_space<vmem>> -> memref<144x256xbf16, #tpu.memory_space<vmem>>
    %c80_320 = arith.constant 80 : index
    %c0_321 = arith.constant 0 : index
    %447 = vector.load %446[%c80_320, %c0_321] : memref<144x256xbf16, #tpu.memory_space<vmem>>, vector<16x256xbf16>
    tpu.vector_store %446[%c80_320, %c0_321], %444 {strides = array<i32>} : memref<144x256xbf16, #tpu.memory_space<vmem>>, vector<16x256xbf16>,
    %c249_i32_322 = arith.constant 249 : i32
    %448 = tpu.dynamic_rotate %312 by %c249_i32_322 dim 1 : vector<16x256xf32>, i32 -> vector<16x256xf32>
    %c15_323 = arith.constant 15 : index
    %c0_324 = arith.constant 0 : index
    %449 = vector.load %arg8[%c15_323, %c0_324] : memref<27x256xbf16, #tpu.memory_space<vmem>>, vector<1x256xbf16>
    %450 = arith.extf %449 : vector<1x256xbf16> to vector<1x256xf32>
    %451 = vector.broadcast %450 : vector<1x256xf32> to vector<16x256xf32>
    %452 = arith.mulf %448, %451 : vector<16x256xf32>
    %453 = arith.truncf %452 : vector<16x256xf32> to vector<16x256xbf16>
    %c1_i32_325 = arith.constant 1 : i32
    %c0_i32_326 = arith.constant 0 : i32
    %c0_i32_327 = arith.constant 0 : i32
    %454 = tpu.memref_slice %arg10[%c1_i32_325, %c0_i32_326, %c0_i32_327] : memref<2x144x256xbf16, #tpu.memory_space<vmem>> -> memref<1x144x256xbf16, #tpu.memory_space<vmem>>
    %455 = tpu.memref_squeeze %454 : memref<1x144x256xbf16, #tpu.memory_space<vmem>> -> memref<144x256xbf16, #tpu.memory_space<vmem>>
    %c96_328 = arith.constant 96 : index
    %c0_329 = arith.constant 0 : index
    %456 = vector.load %455[%c96_328, %c0_329] : memref<144x256xbf16, #tpu.memory_space<vmem>>, vector<16x256xbf16>
    tpu.vector_store %455[%c96_328, %c0_329], %453 {strides = array<i32>} : memref<144x256xbf16, #tpu.memory_space<vmem>>, vector<16x256xbf16>,
    %c248_i32_330 = arith.constant 248 : i32
    %457 = tpu.dynamic_rotate %312 by %c248_i32_330 dim 1 : vector<16x256xf32>, i32 -> vector<16x256xf32>
    %c16_331 = arith.constant 16 : index
    %c0_332 = arith.constant 0 : index
    %458 = vector.load %arg8[%c16_331, %c0_332] : memref<27x256xbf16, #tpu.memory_space<vmem>>, vector<1x256xbf16>
    %459 = arith.extf %458 : vector<1x256xbf16> to vector<1x256xf32>
    %460 = vector.broadcast %459 : vector<1x256xf32> to vector<16x256xf32>
    %461 = arith.mulf %457, %460 : vector<16x256xf32>
    %462 = arith.truncf %461 : vector<16x256xf32> to vector<16x256xbf16>
    %c1_i32_333 = arith.constant 1 : i32
    %c0_i32_334 = arith.constant 0 : i32
    %c0_i32_335 = arith.constant 0 : i32
    %463 = tpu.memref_slice %arg10[%c1_i32_333, %c0_i32_334, %c0_i32_335] : memref<2x144x256xbf16, #tpu.memory_space<vmem>> -> memref<1x144x256xbf16, #tpu.memory_space<vmem>>
    %464 = tpu.memref_squeeze %463 : memref<1x144x256xbf16, #tpu.memory_space<vmem>> -> memref<144x256xbf16, #tpu.memory_space<vmem>>
    %c112_336 = arith.constant 112 : index
    %c0_337 = arith.constant 0 : index
    %465 = vector.load %464[%c112_336, %c0_337] : memref<144x256xbf16, #tpu.memory_space<vmem>>, vector<16x256xbf16>
    tpu.vector_store %464[%c112_336, %c0_337], %462 {strides = array<i32>} : memref<144x256xbf16, #tpu.memory_space<vmem>>, vector<16x256xbf16>,
    %c247_i32_338 = arith.constant 247 : i32
    %466 = tpu.dynamic_rotate %312 by %c247_i32_338 dim 1 : vector<16x256xf32>, i32 -> vector<16x256xf32>
    %c17_339 = arith.constant 17 : index
    %c0_340 = arith.constant 0 : index
    %467 = vector.load %arg8[%c17_339, %c0_340] : memref<27x256xbf16, #tpu.memory_space<vmem>>, vector<1x256xbf16>
    %468 = arith.extf %467 : vector<1x256xbf16> to vector<1x256xf32>
    %469 = vector.broadcast %468 : vector<1x256xf32> to vector<16x256xf32>
    %470 = arith.mulf %466, %469 : vector<16x256xf32>
    %471 = arith.truncf %470 : vector<16x256xf32> to vector<16x256xbf16>
    %c1_i32_341 = arith.constant 1 : i32
    %c0_i32_342 = arith.constant 0 : i32
    %c0_i32_343 = arith.constant 0 : i32
    %472 = tpu.memref_slice %arg10[%c1_i32_341, %c0_i32_342, %c0_i32_343] : memref<2x144x256xbf16, #tpu.memory_space<vmem>> -> memref<1x144x256xbf16, #tpu.memory_space<vmem>>
    %473 = tpu.memref_squeeze %472 : memref<1x144x256xbf16, #tpu.memory_space<vmem>> -> memref<144x256xbf16, #tpu.memory_space<vmem>>
    %c128_344 = arith.constant 128 : index
    %c0_345 = arith.constant 0 : index
    %474 = vector.load %473[%c128_344, %c0_345] : memref<144x256xbf16, #tpu.memory_space<vmem>>, vector<16x256xbf16>
    tpu.vector_store %473[%c128_344, %c0_345], %471 {strides = array<i32>} : memref<144x256xbf16, #tpu.memory_space<vmem>>, vector<16x256xbf16>,
    %c1_346 = arith.constant 1 : index
    %c0_347 = arith.constant 0 : index
    %c0_348 = arith.constant 0 : index
    %475 = vector.load %arg7[%c1_346, %c0_347, %c0_348] : memref<3x16x144xbf16, #tpu.memory_space<vmem>>, vector<1x16x144xbf16>
    %476 = vector.shape_cast %475 : vector<1x16x144xbf16> to vector<16x144xbf16>
    %c1_349 = arith.constant 1 : index
    %c0_350 = arith.constant 0 : index
    %c0_351 = arith.constant 0 : index
    %477 = vector.load %arg10[%c1_349, %c0_350, %c0_351] : memref<2x144x256xbf16, #tpu.memory_space<vmem>>, vector<1x144x256xbf16>
    %478 = vector.shape_cast %477 : vector<1x144x256xbf16> to vector<144x256xbf16>
    %cst_352 = arith.constant dense<0.000000e+00> : vector<16x256xf32>
    %479 = tpu.matmul %476, %478, %cst_352 {dimension_numbers = #tpu.dot_dimension_numbers<[1], [0], [0], [1], [0, 0, 1, 1], [], []>} : vector<16x144xbf16>, vector<144x256xbf16>, vector<16x256xf32> -> vector<16x256xf32>
    %480 = arith.addf %398, %479 : vector<16x256xf32>
    %c201_i32_353 = arith.constant 201 : i32
    %481 = tpu.dynamic_rotate %312 by %c201_i32_353 dim 1 : vector<16x256xf32>, i32 -> vector<16x256xf32>
    %c18_354 = arith.constant 18 : index
    %c0_355 = arith.constant 0 : index
    %482 = vector.load %arg8[%c18_354, %c0_355] : memref<27x256xbf16, #tpu.memory_space<vmem>>, vector<1x256xbf16>
    %483 = arith.extf %482 : vector<1x256xbf16> to vector<1x256xf32>
    %484 = vector.broadcast %483 : vector<1x256xf32> to vector<16x256xf32>
    %485 = arith.mulf %481, %484 : vector<16x256xf32>
    %486 = arith.truncf %485 : vector<16x256xf32> to vector<16x256xbf16>
    %c0_i32_356 = arith.constant 0 : i32
    %c0_i32_357 = arith.constant 0 : i32
    %c0_i32_358 = arith.constant 0 : i32
    %487 = tpu.memref_slice %arg10[%c0_i32_356, %c0_i32_357, %c0_i32_358] : memref<2x144x256xbf16, #tpu.memory_space<vmem>> -> memref<1x144x256xbf16, #tpu.memory_space<vmem>>
    %488 = tpu.memref_squeeze %487 : memref<1x144x256xbf16, #tpu.memory_space<vmem>> -> memref<144x256xbf16, #tpu.memory_space<vmem>>
    %c0_359 = arith.constant 0 : index
    %c0_360 = arith.constant 0 : index
    %489 = vector.load %488[%c0_359, %c0_360] : memref<144x256xbf16, #tpu.memory_space<vmem>>, vector<16x256xbf16>
    tpu.vector_store %488[%c0_359, %c0_360], %486 {strides = array<i32>} : memref<144x256xbf16, #tpu.memory_space<vmem>>, vector<16x256xbf16>,
    %c200_i32_361 = arith.constant 200 : i32
    %490 = tpu.dynamic_rotate %312 by %c200_i32_361 dim 1 : vector<16x256xf32>, i32 -> vector<16x256xf32>
    %c19_362 = arith.constant 19 : index
    %c0_363 = arith.constant 0 : index
    %491 = vector.load %arg8[%c19_362, %c0_363] : memref<27x256xbf16, #tpu.memory_space<vmem>>, vector<1x256xbf16>
    %492 = arith.extf %491 : vector<1x256xbf16> to vector<1x256xf32>
    %493 = vector.broadcast %492 : vector<1x256xf32> to vector<16x256xf32>
    %494 = arith.mulf %490, %493 : vector<16x256xf32>
    %495 = arith.truncf %494 : vector<16x256xf32> to vector<16x256xbf16>
    %c0_i32_364 = arith.constant 0 : i32
    %c0_i32_365 = arith.constant 0 : i32
    %c0_i32_366 = arith.constant 0 : i32
    %496 = tpu.memref_slice %arg10[%c0_i32_364, %c0_i32_365, %c0_i32_366] : memref<2x144x256xbf16, #tpu.memory_space<vmem>> -> memref<1x144x256xbf16, #tpu.memory_space<vmem>>
    %497 = tpu.memref_squeeze %496 : memref<1x144x256xbf16, #tpu.memory_space<vmem>> -> memref<144x256xbf16, #tpu.memory_space<vmem>>
    %c16_367 = arith.constant 16 : index
    %c0_368 = arith.constant 0 : index
    %498 = vector.load %497[%c16_367, %c0_368] : memref<144x256xbf16, #tpu.memory_space<vmem>>, vector<16x256xbf16>
    tpu.vector_store %497[%c16_367, %c0_368], %495 {strides = array<i32>} : memref<144x256xbf16, #tpu.memory_space<vmem>>, vector<16x256xbf16>,
    %c199_i32_369 = arith.constant 199 : i32
    %499 = tpu.dynamic_rotate %312 by %c199_i32_369 dim 1 : vector<16x256xf32>, i32 -> vector<16x256xf32>
    %c20_370 = arith.constant 20 : index
    %c0_371 = arith.constant 0 : index
    %500 = vector.load %arg8[%c20_370, %c0_371] : memref<27x256xbf16, #tpu.memory_space<vmem>>, vector<1x256xbf16>
    %501 = arith.extf %500 : vector<1x256xbf16> to vector<1x256xf32>
    %502 = vector.broadcast %501 : vector<1x256xf32> to vector<16x256xf32>
    %503 = arith.mulf %499, %502 : vector<16x256xf32>
    %504 = arith.truncf %503 : vector<16x256xf32> to vector<16x256xbf16>
    %c0_i32_372 = arith.constant 0 : i32
    %c0_i32_373 = arith.constant 0 : i32
    %c0_i32_374 = arith.constant 0 : i32
    %505 = tpu.memref_slice %arg10[%c0_i32_372, %c0_i32_373, %c0_i32_374] : memref<2x144x256xbf16, #tpu.memory_space<vmem>> -> memref<1x144x256xbf16, #tpu.memory_space<vmem>>
    %506 = tpu.memref_squeeze %505 : memref<1x144x256xbf16, #tpu.memory_space<vmem>> -> memref<144x256xbf16, #tpu.memory_space<vmem>>
    %c32_375 = arith.constant 32 : index
    %c0_376 = arith.constant 0 : index
    %507 = vector.load %506[%c32_375, %c0_376] : memref<144x256xbf16, #tpu.memory_space<vmem>>, vector<16x256xbf16>
    tpu.vector_store %506[%c32_375, %c0_376], %504 {strides = array<i32>} : memref<144x256xbf16, #tpu.memory_space<vmem>>, vector<16x256xbf16>,
    %c193_i32_377 = arith.constant 193 : i32
    %508 = tpu.dynamic_rotate %312 by %c193_i32_377 dim 1 : vector<16x256xf32>, i32 -> vector<16x256xf32>
    %c21_378 = arith.constant 21 : index
    %c0_379 = arith.constant 0 : index
    %509 = vector.load %arg8[%c21_378, %c0_379] : memref<27x256xbf16, #tpu.memory_space<vmem>>, vector<1x256xbf16>
    %510 = arith.extf %509 : vector<1x256xbf16> to vector<1x256xf32>
    %511 = vector.broadcast %510 : vector<1x256xf32> to vector<16x256xf32>
    %512 = arith.mulf %508, %511 : vector<16x256xf32>
    %513 = arith.truncf %512 : vector<16x256xf32> to vector<16x256xbf16>
    %c0_i32_380 = arith.constant 0 : i32
    %c0_i32_381 = arith.constant 0 : i32
    %c0_i32_382 = arith.constant 0 : i32
    %514 = tpu.memref_slice %arg10[%c0_i32_380, %c0_i32_381, %c0_i32_382] : memref<2x144x256xbf16, #tpu.memory_space<vmem>> -> memref<1x144x256xbf16, #tpu.memory_space<vmem>>
    %515 = tpu.memref_squeeze %514 : memref<1x144x256xbf16, #tpu.memory_space<vmem>> -> memref<144x256xbf16, #tpu.memory_space<vmem>>
    %c48_383 = arith.constant 48 : index
    %c0_384 = arith.constant 0 : index
    %516 = vector.load %515[%c48_383, %c0_384] : memref<144x256xbf16, #tpu.memory_space<vmem>>, vector<16x256xbf16>
    tpu.vector_store %515[%c48_383, %c0_384], %513 {strides = array<i32>} : memref<144x256xbf16, #tpu.memory_space<vmem>>, vector<16x256xbf16>,
    %c192_i32_385 = arith.constant 192 : i32
    %517 = tpu.dynamic_rotate %312 by %c192_i32_385 dim 1 : vector<16x256xf32>, i32 -> vector<16x256xf32>
    %c22_386 = arith.constant 22 : index
    %c0_387 = arith.constant 0 : index
    %518 = vector.load %arg8[%c22_386, %c0_387] : memref<27x256xbf16, #tpu.memory_space<vmem>>, vector<1x256xbf16>
    %519 = arith.extf %518 : vector<1x256xbf16> to vector<1x256xf32>
    %520 = vector.broadcast %519 : vector<1x256xf32> to vector<16x256xf32>
    %521 = arith.mulf %517, %520 : vector<16x256xf32>
    %522 = arith.truncf %521 : vector<16x256xf32> to vector<16x256xbf16>
    %c0_i32_388 = arith.constant 0 : i32
    %c0_i32_389 = arith.constant 0 : i32
    %c0_i32_390 = arith.constant 0 : i32
    %523 = tpu.memref_slice %arg10[%c0_i32_388, %c0_i32_389, %c0_i32_390] : memref<2x144x256xbf16, #tpu.memory_space<vmem>> -> memref<1x144x256xbf16, #tpu.memory_space<vmem>>
    %524 = tpu.memref_squeeze %523 : memref<1x144x256xbf16, #tpu.memory_space<vmem>> -> memref<144x256xbf16, #tpu.memory_space<vmem>>
    %c64_391 = arith.constant 64 : index
    %c0_392 = arith.constant 0 : index
    %525 = vector.load %524[%c64_391, %c0_392] : memref<144x256xbf16, #tpu.memory_space<vmem>>, vector<16x256xbf16>
    tpu.vector_store %524[%c64_391, %c0_392], %522 {strides = array<i32>} : memref<144x256xbf16, #tpu.memory_space<vmem>>, vector<16x256xbf16>,
    %c191_i32_393 = arith.constant 191 : i32
    %526 = tpu.dynamic_rotate %312 by %c191_i32_393 dim 1 : vector<16x256xf32>, i32 -> vector<16x256xf32>
    %c23_394 = arith.constant 23 : index
    %c0_395 = arith.constant 0 : index
    %527 = vector.load %arg8[%c23_394, %c0_395] : memref<27x256xbf16, #tpu.memory_space<vmem>>, vector<1x256xbf16>
    %528 = arith.extf %527 : vector<1x256xbf16> to vector<1x256xf32>
    %529 = vector.broadcast %528 : vector<1x256xf32> to vector<16x256xf32>
    %530 = arith.mulf %526, %529 : vector<16x256xf32>
    %531 = arith.truncf %530 : vector<16x256xf32> to vector<16x256xbf16>
    %c0_i32_396 = arith.constant 0 : i32
    %c0_i32_397 = arith.constant 0 : i32
    %c0_i32_398 = arith.constant 0 : i32
    %532 = tpu.memref_slice %arg10[%c0_i32_396, %c0_i32_397, %c0_i32_398] : memref<2x144x256xbf16, #tpu.memory_space<vmem>> -> memref<1x144x256xbf16, #tpu.memory_space<vmem>>
    %533 = tpu.memref_squeeze %532 : memref<1x144x256xbf16, #tpu.memory_space<vmem>> -> memref<144x256xbf16, #tpu.memory_space<vmem>>
    %c80_399 = arith.constant 80 : index
    %c0_400 = arith.constant 0 : index
    %534 = vector.load %533[%c80_399, %c0_400] : memref<144x256xbf16, #tpu.memory_space<vmem>>, vector<16x256xbf16>
    tpu.vector_store %533[%c80_399, %c0_400], %531 {strides = array<i32>} : memref<144x256xbf16, #tpu.memory_space<vmem>>, vector<16x256xbf16>,
    %c185_i32_401 = arith.constant 185 : i32
    %535 = tpu.dynamic_rotate %312 by %c185_i32_401 dim 1 : vector<16x256xf32>, i32 -> vector<16x256xf32>
    %c24_402 = arith.constant 24 : index
    %c0_403 = arith.constant 0 : index
    %536 = vector.load %arg8[%c24_402, %c0_403] : memref<27x256xbf16, #tpu.memory_space<vmem>>, vector<1x256xbf16>
    %537 = arith.extf %536 : vector<1x256xbf16> to vector<1x256xf32>
    %538 = vector.broadcast %537 : vector<1x256xf32> to vector<16x256xf32>
    %539 = arith.mulf %535, %538 : vector<16x256xf32>
    %540 = arith.truncf %539 : vector<16x256xf32> to vector<16x256xbf16>
    %c0_i32_404 = arith.constant 0 : i32
    %c0_i32_405 = arith.constant 0 : i32
    %c0_i32_406 = arith.constant 0 : i32
    %541 = tpu.memref_slice %arg10[%c0_i32_404, %c0_i32_405, %c0_i32_406] : memref<2x144x256xbf16, #tpu.memory_space<vmem>> -> memref<1x144x256xbf16, #tpu.memory_space<vmem>>
    %542 = tpu.memref_squeeze %541 : memref<1x144x256xbf16, #tpu.memory_space<vmem>> -> memref<144x256xbf16, #tpu.memory_space<vmem>>
    %c96_407 = arith.constant 96 : index
    %c0_408 = arith.constant 0 : index
    %543 = vector.load %542[%c96_407, %c0_408] : memref<144x256xbf16, #tpu.memory_space<vmem>>, vector<16x256xbf16>
    tpu.vector_store %542[%c96_407, %c0_408], %540 {strides = array<i32>} : memref<144x256xbf16, #tpu.memory_space<vmem>>, vector<16x256xbf16>,
    %c184_i32_409 = arith.constant 184 : i32
    %544 = tpu.dynamic_rotate %312 by %c184_i32_409 dim 1 : vector<16x256xf32>, i32 -> vector<16x256xf32>
    %c25_410 = arith.constant 25 : index
    %c0_411 = arith.constant 0 : index
    %545 = vector.load %arg8[%c25_410, %c0_411] : memref<27x256xbf16, #tpu.memory_space<vmem>>, vector<1x256xbf16>
    %546 = arith.extf %545 : vector<1x256xbf16> to vector<1x256xf32>
    %547 = vector.broadcast %546 : vector<1x256xf32> to vector<16x256xf32>
    %548 = arith.mulf %544, %547 : vector<16x256xf32>
    %549 = arith.truncf %548 : vector<16x256xf32> to vector<16x256xbf16>
    %c0_i32_412 = arith.constant 0 : i32
    %c0_i32_413 = arith.constant 0 : i32
    %c0_i32_414 = arith.constant 0 : i32
    %550 = tpu.memref_slice %arg10[%c0_i32_412, %c0_i32_413, %c0_i32_414] : memref<2x144x256xbf16, #tpu.memory_space<vmem>> -> memref<1x144x256xbf16, #tpu.memory_space<vmem>>
    %551 = tpu.memref_squeeze %550 : memref<1x144x256xbf16, #tpu.memory_space<vmem>> -> memref<144x256xbf16, #tpu.memory_space<vmem>>
    %c112_415 = arith.constant 112 : index
    %c0_416 = arith.constant 0 : index
    %552 = vector.load %551[%c112_415, %c0_416] : memref<144x256xbf16, #tpu.memory_space<vmem>>, vector<16x256xbf16>
    tpu.vector_store %551[%c112_415, %c0_416], %549 {strides = array<i32>} : memref<144x256xbf16, #tpu.memory_space<vmem>>, vector<16x256xbf16>,
    %c183_i32_417 = arith.constant 183 : i32
    %553 = tpu.dynamic_rotate %312 by %c183_i32_417 dim 1 : vector<16x256xf32>, i32 -> vector<16x256xf32>
    %c26_418 = arith.constant 26 : index
    %c0_419 = arith.constant 0 : index
    %554 = vector.load %arg8[%c26_418, %c0_419] : memref<27x256xbf16, #tpu.memory_space<vmem>>, vector<1x256xbf16>
    %555 = arith.extf %554 : vector<1x256xbf16> to vector<1x256xf32>
    %556 = vector.broadcast %555 : vector<1x256xf32> to vector<16x256xf32>
    %557 = arith.mulf %553, %556 : vector<16x256xf32>
    %558 = arith.truncf %557 : vector<16x256xf32> to vector<16x256xbf16>
    %c0_i32_420 = arith.constant 0 : i32
    %c0_i32_421 = arith.constant 0 : i32
    %c0_i32_422 = arith.constant 0 : i32
    %559 = tpu.memref_slice %arg10[%c0_i32_420, %c0_i32_421, %c0_i32_422] : memref<2x144x256xbf16, #tpu.memory_space<vmem>> -> memref<1x144x256xbf16, #tpu.memory_space<vmem>>
    %560 = tpu.memref_squeeze %559 : memref<1x144x256xbf16, #tpu.memory_space<vmem>> -> memref<144x256xbf16, #tpu.memory_space<vmem>>
    %c128_423 = arith.constant 128 : index
    %c0_424 = arith.constant 0 : index
    %561 = vector.load %560[%c128_423, %c0_424] : memref<144x256xbf16, #tpu.memory_space<vmem>>, vector<16x256xbf16>
    tpu.vector_store %560[%c128_423, %c0_424], %558 {strides = array<i32>} : memref<144x256xbf16, #tpu.memory_space<vmem>>, vector<16x256xbf16>,
    %c2_425 = arith.constant 2 : index
    %c0_426 = arith.constant 0 : index
    %c0_427 = arith.constant 0 : index
    %562 = vector.load %arg7[%c2_425, %c0_426, %c0_427] : memref<3x16x144xbf16, #tpu.memory_space<vmem>>, vector<1x16x144xbf16>
    %563 = vector.shape_cast %562 : vector<1x16x144xbf16> to vector<16x144xbf16>
    %c0_428 = arith.constant 0 : index
    %c0_429 = arith.constant 0 : index
    %c0_430 = arith.constant 0 : index
    %564 = vector.load %arg10[%c0_428, %c0_429, %c0_430] : memref<2x144x256xbf16, #tpu.memory_space<vmem>>, vector<1x144x256xbf16>
    %565 = vector.shape_cast %564 : vector<1x144x256xbf16> to vector<144x256xbf16>
    %cst_431 = arith.constant dense<0.000000e+00> : vector<16x256xf32>
    %566 = tpu.matmul %563, %565, %cst_431 {dimension_numbers = #tpu.dot_dimension_numbers<[1], [0], [0], [1], [0, 0, 1, 1], [], []>} : vector<16x144xbf16>, vector<144x256xbf16>, vector<16x256xf32> -> vector<16x256xf32>
    %567 = arith.addf %480, %566 : vector<16x256xf32>
    %568 = arith.addf %567, %1 : vector<16x256xf32>
    %c0_432 = arith.constant 0 : index
    %c0_433 = arith.constant 0 : index
    %c0_434 = arith.constant 0 : index
    %569 = vector.load %arg9[%c0_432, %c0_433, %c0_434] : memref<1x16x256xf32, #tpu.memory_space<vmem>>, vector<1x16x256xf32>
    %570 = vector.shape_cast %569 : vector<1x16x256xf32> to vector<16x256xf32>
    %571 = vector.shape_cast %568 : vector<16x256xf32> to vector<1x16x256xf32>
    tpu.vector_store %arg9[%c0_432, %c0_433, %c0_434], %571 {strides = array<i32>} : memref<1x16x256xf32, #tpu.memory_space<vmem>>, vector<1x16x256xf32>,
    return
  }
  func.func @transform_0(%arg0: i32) -> (i32, i32, i32) {
    %c0_i32 = arith.constant 0 : i32
    %c0_i32_0 = arith.constant 0 : i32
    %c0_i32_1 = arith.constant 0 : i32
    return %arg0, %c0_i32, %c0_i32_0 : i32, i32, i32
  }
  func.func @transform_1(%arg0: i32) -> (i32, i32) {
    %c0_i32 = arith.constant 0 : i32
    %c0_i32_0 = arith.constant 0 : i32
    %c0_i32_1 = arith.constant 0 : i32
    return %c0_i32, %c0_i32_0 : i32, i32
  }
  func.func @transform_2(%arg0: i32) -> (i32, i32) {
    %c0_i32 = arith.constant 0 : i32
    %c0_i32_0 = arith.constant 0 : i32
    %c0_i32_1 = arith.constant 0 : i32
    return %c0_i32, %c0_i32_0 : i32, i32
  }
  func.func @transform_3(%arg0: i32) -> (i32, i32, i32) {
    %c0_i32 = arith.constant 0 : i32
    %c0_i32_0 = arith.constant 0 : i32
    %c0_i32_1 = arith.constant 0 : i32
    %c0_i32_2 = arith.constant 0 : i32
    return %c0_i32, %c0_i32_0, %c0_i32_1 : i32, i32, i32
  }
  func.func @transform_4(%arg0: i32) -> (i32, i32) {
    %c0_i32 = arith.constant 0 : i32
    %c0_i32_0 = arith.constant 0 : i32
    %c0_i32_1 = arith.constant 0 : i32
    return %c0_i32, %c0_i32_0 : i32, i32
  }
  func.func @transform_5(%arg0: i32) -> (i32, i32) {
    %c0_i32 = arith.constant 0 : i32
    %c0_i32_0 = arith.constant 0 : i32
    %c0_i32_1 = arith.constant 0 : i32
    return %c0_i32, %c0_i32_0 : i32, i32
  }
  func.func @transform_6(%arg0: i32) -> (i32, i32, i32) {
    %c0_i32 = arith.constant 0 : i32
    %c0_i32_0 = arith.constant 0 : i32
    %c0_i32_1 = arith.constant 0 : i32
    %c0_i32_2 = arith.constant 0 : i32
    return %c0_i32, %c0_i32_0, %c0_i32_1 : i32, i32, i32
  }
  func.func @transform_7(%arg0: i32) -> (i32, i32) {
    %c0_i32 = arith.constant 0 : i32
    %c0_i32_0 = arith.constant 0 : i32
    %c0_i32_1 = arith.constant 0 : i32
    return %c0_i32, %c0_i32_0 : i32, i32
  }
  func.func @transform_8(%arg0: i32) -> (i32, i32, i32) {
    %c0_i32 = arith.constant 0 : i32
    %c0_i32_0 = arith.constant 0 : i32
    %c0_i32_1 = arith.constant 0 : i32
    return %arg0, %c0_i32, %c0_i32_0 : i32, i32, i32
  }
}

</mosaic_0001>

<llo_original>
// kernel: no_bottleneck_forward.1
$region0: #{no_bottleneck_forward.1}
  #allocation0 [shape = 'u32[]', space=smem, size = 0x4, offset = 0x4, fixed_abs, tag = 'smem constant byte address 0x4 - core index']
  #allocation1 [shape = 'u32[72,128]{1,0:T(1,128)}', space=vmem, size = 0x9000, scoped, tag = 'internal scratch']
  #allocation2 [shape = 'bf16[2,144,256]{2,1,0:T(8,128)(2,1)}', space=vmem, size = 0x24000, scoped, tag = 'scratch operand']
  %s0 = inlined_call_operand.vmem [shape: f32[2,16,256], index: 0, kind: input, shape index: {}]
  %s1 = inlined_call_operand.vmem [shape: f32[16,1], index: 1, kind: input, shape index: {}]
  %s2 = inlined_call_operand.vmem [shape: f32[16,1], index: 2, kind: input, shape index: {}]
  %s3 = inlined_call_operand.vmem [shape: bf16[3,16,144], index: 3, kind: input, shape index: {}]
  %s4 = inlined_call_operand.vmem [shape: f32[16,1], index: 4, kind: input, shape index: {}]
  %s5 = inlined_call_operand.vmem [shape: f32[16,1], index: 5, kind: input, shape index: {}]
  %s6 = inlined_call_operand.vmem [shape: bf16[3,16,144], index: 6, kind: input, shape index: {}]
  %s7 = inlined_call_operand.vmem [shape: bf16[27,256], index: 7, kind: input, shape index: {}]
  %s8 = inlined_call_operand.vmem [shape: f32[2,16,256], index: 8, kind: output, shape index: {}]
  %s9 = sld [smem:[#allocation0]]
  $region65: #{no_bottleneck_forward.1} parent=0
    _
  %s11 = ssub.s32 1, %s9
  %s12 = scalar_select 0, %s11, %s9
  loop: start=0, step=1, limit=4
  $region2: #{no_bottleneck_forward.1} parent=0 // loop_pre_header
    _
  $region3: #{no_bottleneck_forward.1} parent=0 // loop_header
    %s14 = sphi 0, %s18
    %p15 = scmp.ge.s32.totalorder %s14, 4
    %s24 = sphi 0, %s26
    %s27 = sphi 0, %s24
    %s28 = sphi 0, %s27
    %s44 = sphi 0, %s28
    %s48 = sphi 0, %s48
    %s50 = sphi 0, %s48
    %s51 = sphi 0, %s50
    %s65 = sphi 0, %s51
    %s69 = sphi 0, %s69
    %s71 = sphi 0, %s69
    %s72 = sphi 0, %s71
    %s86 = sphi 0, %s72
    %s90 = sphi 0, %s90
    %s92 = sphi 0, %s90
    %s93 = sphi 0, %s92
    %s107 = sphi 0, %s93
    %s111 = sphi 0, %s111
    %s113 = sphi 0, %s111
    %s114 = sphi 0, %s113
    %s128 = sphi 0, %s114
    %s132 = sphi 0, %s132
    %s134 = sphi 0, %s132
    %s135 = sphi 0, %s134
    %s149 = sphi 0, %s135
    %s153 = sphi 0, %s153
    %s155 = sphi 0, %s153
    %s156 = sphi 0, %s155
    %s170 = sphi 0, %s156
    %s174 = sphi 0, %s174
    %s176 = sphi 0, %s174
    %s177 = sphi 0, %s176
    %s191 = sphi 0, %s177
    %s197 = sphi 0, %s199
    %s200 = sphi 0, %s197
    %s201 = sphi 0, %s200
    %s217 = sphi 0, %s201
  $region4: #{no_bottleneck_forward.1} parent=0 // loop_header_branch
    %17 = sbr.rel (%p15) target = $region8
  $region5: #{no_bottleneck_forward.1} parent=0 // loop_body
    %s19 = ssub.s32 %s14, 1
    %s20 = ssub.s32 %s14, 2
    %s21 = sadd.s32 %s14, 1
    %s22 = ssub.s32 %s14, %s21
    %p23 = scmp.eq.s32.totalorder %s22, 0
    %s25 = sadd.s32 %s24, 1
    %s26 = scalar_select %p23, %s24, %s25
    %p29 = pneg %p23
    %p30 = scmp.eq.s32.totalorder %s14, 1
    %p31 = por %p29, %p30
    %p32 = scmp.ne.s32.totalorder %s24, %s27
    %p33 = scmp.eq.s32.totalorder %s14, 0
    %p34 = por %p32, %p33
    %p35 = scmp.ne.s32.totalorder %s24, %s27
    %p36 = scmp.eq.s32.totalorder %s19, 1
    %p37 = por %p35, %p36
    %p38 = scmp.ne.s32.totalorder %s27, %s28
    %p39 = scmp.eq.s32.totalorder %s19, 0
    %p40 = por %p38, %p39
    %p41 = scmp.ne.s32.totalorder %s27, %s28
    %p42 = scmp.eq.s32.totalorder %s20, 1
    %p43 = por %p41, %p42
    %p45 = scmp.ne.s32.totalorder %s28, %s44
    %p46 = scmp.eq.s32.totalorder %s20, 0
    %p47 = por %p45, %p46
    %s49 = sadd.s32 %s48, 1
    %p52 = scmp.eq.s32.totalorder %s14, 1
    %p53 = scmp.ne.s32.totalorder %s48, %s50
    %p54 = scmp.eq.s32.totalorder %s14, 0
    %p55 = por %p53, %p54
    %p56 = scmp.ne.s32.totalorder %s48, %s50
    %p57 = scmp.eq.s32.totalorder %s19, 1
    %p58 = por %p56, %p57
    %p59 = scmp.ne.s32.totalorder %s50, %s51
    %p60 = scmp.eq.s32.totalorder %s19, 0
    %p61 = por %p59, %p60
    %p62 = scmp.ne.s32.totalorder %s50, %s51
    %p63 = scmp.eq.s32.totalorder %s20, 1
    %p64 = por %p62, %p63
    %p66 = scmp.ne.s32.totalorder %s51, %s65
    %p67 = scmp.eq.s32.totalorder %s20, 0
    %p68 = por %p66, %p67
    %s70 = sadd.s32 %s69, 1
    %p73 = scmp.eq.s32.totalorder %s14, 1
    %p74 = scmp.ne.s32.totalorder %s69, %s71
    %p75 = scmp.eq.s32.totalorder %s14, 0
    %p76 = por %p74, %p75
    %p77 = scmp.ne.s32.totalorder %s69, %s71
    %p78 = scmp.eq.s32.totalorder %s19, 1
    %p79 = por %p77, %p78
    %p80 = scmp.ne.s32.totalorder %s71, %s72
    %p81 = scmp.eq.s32.totalorder %s19, 0
    %p82 = por %p80, %p81
    %p83 = scmp.ne.s32.totalorder %s71, %s72
    %p84 = scmp.eq.s32.totalorder %s20, 1
    %p85 = por %p83, %p84
    %p87 = scmp.ne.s32.totalorder %s72, %s86
    %p88 = scmp.eq.s32.totalorder %s20, 0
    %p89 = por %p87, %p88
    %s91 = sadd.s32 %s90, 1
    %p94 = scmp.eq.s32.totalorder %s14, 1
    %p95 = scmp.ne.s32.totalorder %s90, %s92
    %p96 = scmp.eq.s32.totalorder %s14, 0
    %p97 = por %p95, %p96
    %p98 = scmp.ne.s32.totalorder %s90, %s92
    %p99 = scmp.eq.s32.totalorder %s19, 1
    %p100 = por %p98, %p99
    %p101 = scmp.ne.s32.totalorder %s92, %s93
    %p102 = scmp.eq.s32.totalorder %s19, 0
    %p103 = por %p101, %p102
    %p104 = scmp.ne.s32.totalorder %s92, %s93
    %p105 = scmp.eq.s32.totalorder %s20, 1
    %p106 = por %p104, %p105
    %p108 = scmp.ne.s32.totalorder %s93, %s107
    %p109 = scmp.eq.s32.totalorder %s20, 0
    %p110 = por %p108, %p109
    %s112 = sadd.s32 %s111, 1
    %p115 = scmp.eq.s32.totalorder %s14, 1
    %p116 = scmp.ne.s32.totalorder %s111, %s113
    %p117 = scmp.eq.s32.totalorder %s14, 0
    %p118 = por %p116, %p117
    %p119 = scmp.ne.s32.totalorder %s111, %s113
    %p120 = scmp.eq.s32.totalorder %s19, 1
    %p121 = por %p119, %p120
    %p122 = scmp.ne.s32.totalorder %s113, %s114
    %p123 = scmp.eq.s32.totalorder %s19, 0
    %p124 = por %p122, %p123
    %p125 = scmp.ne.s32.totalorder %s113, %s114
    %p126 = scmp.eq.s32.totalorder %s20, 1
    %p127 = por %p125, %p126
    %p129 = scmp.ne.s32.totalorder %s114, %s128
    %p130 = scmp.eq.s32.totalorder %s20, 0
    %p131 = por %p129, %p130
    %s133 = sadd.s32 %s132, 1
    %p136 = scmp.eq.s32.totalorder %s14, 1
    %p137 = scmp.ne.s32.totalorder %s132, %s134
    %p138 = scmp.eq.s32.totalorder %s14, 0
    %p139 = por %p137, %p138
    %p140 = scmp.ne.s32.totalorder %s132, %s134
    %p141 = scmp.eq.s32.totalorder %s19, 1
    %p142 = por %p140, %p141
    %p143 = scmp.ne.s32.totalorder %s134, %s135
    %p144 = scmp.eq.s32.totalorder %s19, 0
    %p145 = por %p143, %p144
    %p146 = scmp.ne.s32.totalorder %s134, %s135
    %p147 = scmp.eq.s32.totalorder %s20, 1
    %p148 = por %p146, %p147
    %p150 = scmp.ne.s32.totalorder %s135, %s149
    %p151 = scmp.eq.s32.totalorder %s20, 0
    %p152 = por %p150, %p151
    %s154 = sadd.s32 %s153, 1
    %p157 = scmp.eq.s32.totalorder %s14, 1
    %p158 = scmp.ne.s32.totalorder %s153, %s155
    %p159 = scmp.eq.s32.totalorder %s14, 0
    %p160 = por %p158, %p159
    %p161 = scmp.ne.s32.totalorder %s153, %s155
    %p162 = scmp.eq.s32.totalorder %s19, 1
    %p163 = por %p161, %p162
    %p164 = scmp.ne.s32.totalorder %s155, %s156
    %p165 = scmp.eq.s32.totalorder %s19, 0
    %p166 = por %p164, %p165
    %p167 = scmp.ne.s32.totalorder %s155, %s156
    %p168 = scmp.eq.s32.totalorder %s20, 1
    %p169 = por %p167, %p168
    %p171 = scmp.ne.s32.totalorder %s156, %s170
    %p172 = scmp.eq.s32.totalorder %s20, 0
    %p173 = por %p171, %p172
    %s175 = sadd.s32 %s174, 1
    %p178 = scmp.eq.s32.totalorder %s14, 1
    %p179 = scmp.ne.s32.totalorder %s174, %s176
    %p180 = scmp.eq.s32.totalorder %s14, 0
    %p181 = por %p179, %p180
    %p182 = scmp.ne.s32.totalorder %s174, %s176
    %p183 = scmp.eq.s32.totalorder %s19, 1
    %p184 = por %p182, %p183
    %p185 = scmp.ne.s32.totalorder %s176, %s177
    %p186 = scmp.eq.s32.totalorder %s19, 0
    %p187 = por %p185, %p186
    %p188 = scmp.ne.s32.totalorder %s176, %s177
    %p189 = scmp.eq.s32.totalorder %s20, 1
    %p190 = por %p188, %p189
    %p192 = scmp.ne.s32.totalorder %s177, %s191
    %p193 = scmp.eq.s32.totalorder %s20, 0
    %p194 = por %p192, %p193
    %s195 = ssub.s32 %s14, %s21
    %p196 = scmp.eq.s32.totalorder %s195, 0
    %s198 = sadd.s32 %s197, 1
    %s199 = scalar_select %p196, %s197, %s198
    %p202 = pneg %p196
    %p203 = scmp.eq.s32.totalorder %s14, 1
    %p204 = por %p202, %p203
    %p205 = scmp.ne.s32.totalorder %s197, %s200
    %p206 = scmp.eq.s32.totalorder %s14, 0
    %p207 = por %p205, %p206
    %p208 = scmp.ne.s32.totalorder %s197, %s200
    %p209 = scmp.eq.s32.totalorder %s19, 1
    %p210 = por %p208, %p209
    %p211 = scmp.ne.s32.totalorder %s200, %s201
    %p212 = scmp.eq.s32.totalorder %s19, 0
    %p213 = por %p211, %p212
    %p214 = scmp.ne.s32.totalorder %s200, %s201
    %p215 = scmp.eq.s32.totalorder %s20, 1
    %p216 = por %p214, %p215
    %p218 = scmp.ne.s32.totalorder %s201, %s217
    %p219 = scmp.eq.s32.totalorder %s20, 0
    %p220 = por %p218, %p219
    %p221 = scmp.le.s32.totalorder 1, %s14
    %p222 = scmp.lt.s32.totalorder %s14, 3
    %p223 = pnand %p221, %p222
    %p224 = pneg %p223
    // Predicated region
    $region9: #{no_bottleneck_forward.1} parent=5 // pred_check
      _
    $region10: #{no_bottleneck_forward.1} parent=5 // pred_check_branch
      %226 = sbr.rel (%p223) target = $region12
    $region11: #{no_bottleneck_forward.1} parent=5 // pred_region
      %s227 = ssub.s32 %s14, 1
      // Predicated region
      $region13: #{no_bottleneck_forward.1} parent=11 // pred_check
        %p228 = pneg %p61
      $region14: #{no_bottleneck_forward.1} parent=11 // pred_check_branch
        %230 = sbr.rel (%p228) target = $region16
      $region15: #{no_bottleneck_forward.1} parent=11 // pred_region
        _
      $region16: #{no_bottleneck_forward.1} parent=11 // pred_fallthru
        _
      // Predicated region
      $region17: #{no_bottleneck_forward.1} parent=11 // pred_check
        %p231 = pneg %p82
      $region18: #{no_bottleneck_forward.1} parent=11 // pred_check_branch
        %233 = sbr.rel (%p231) target = $region20
      $region19: #{no_bottleneck_forward.1} parent=11 // pred_region
        _
      $region20: #{no_bottleneck_forward.1} parent=11 // pred_fallthru
        _
      // Predicated region
      $region21: #{no_bottleneck_forward.1} parent=11 // pred_check
        %p234 = pneg %p103
      $region22: #{no_bottleneck_forward.1} parent=11 // pred_check_branch
        %236 = sbr.rel (%p234) target = $region24
      $region23: #{no_bottleneck_forward.1} parent=11 // pred_region
        _
      $region24: #{no_bottleneck_forward.1} parent=11 // pred_fallthru
        _
      // Predicated region
      $region25: #{no_bottleneck_forward.1} parent=11 // pred_check
        %p237 = pneg %p124
      $region26: #{no_bottleneck_forward.1} parent=11 // pred_check_branch
        %239 = sbr.rel (%p237) target = $region28
      $region27: #{no_bottleneck_forward.1} parent=11 // pred_region
        _
      $region28: #{no_bottleneck_forward.1} parent=11 // pred_fallthru
        _
      // Predicated region
      $region29: #{no_bottleneck_forward.1} parent=11 // pred_check
        %p240 = pneg %p145
      $region30: #{no_bottleneck_forward.1} parent=11 // pred_check_branch
        %242 = sbr.rel (%p240) target = $region32
      $region31: #{no_bottleneck_forward.1} parent=11 // pred_region
        _
      $region32: #{no_bottleneck_forward.1} parent=11 // pred_fallthru
        _
      // Predicated region
      $region33: #{no_bottleneck_forward.1} parent=11 // pred_check
        %p243 = pneg %p166
      $region34: #{no_bottleneck_forward.1} parent=11 // pred_check_branch
        %245 = sbr.rel (%p243) target = $region36
      $region35: #{no_bottleneck_forward.1} parent=11 // pred_region
        _
      $region36: #{no_bottleneck_forward.1} parent=11 // pred_fallthru
        _
      // Predicated region
      $region37: #{no_bottleneck_forward.1} parent=11 // pred_check
        %p246 = pneg %p187
      $region38: #{no_bottleneck_forward.1} parent=11 // pred_check_branch
        %248 = sbr.rel (%p246) target = $region40
      $region39: #{no_bottleneck_forward.1} parent=11 // pred_region
        _
      $region40: #{no_bottleneck_forward.1} parent=11 // pred_fallthru
        _
    $region12: #{no_bottleneck_forward.1} parent=5 // pred_fallthru
      _
    %p249 = scmp.lt.s32.totalorder %s14, 2
    // Predicated region
    $region41: #{no_bottleneck_forward.1} parent=5 // pred_check
      %p250 = pneg %p249
    $region42: #{no_bottleneck_forward.1} parent=5 // pred_check_branch
      %252 = sbr.rel (%p250) target = $region44
    $region43: #{no_bottleneck_forward.1} parent=5 // pred_region
      // Predicated region
      $region45: #{no_bottleneck_forward.1} parent=43 // pred_check
        %p253 = pneg %p34
      $region46: #{no_bottleneck_forward.1} parent=43 // pred_check_branch
        %255 = sbr.rel (%p253) target = $region48
      $region47: #{no_bottleneck_forward.1} parent=43 // pred_region
        %p256 = scmp.lt.s32.totalorder %s14, 1
        %s257 = scalar_select %p256, %s14, 1
        %s258 = smul.addr %s257, 4
        %s259 = smul.addr %s258, 8
        %s260 = scalar_lea.vmem %s0, %s259
      $region48: #{no_bottleneck_forward.1} parent=43 // pred_fallthru
        _
    $region44: #{no_bottleneck_forward.1} parent=5 // pred_fallthru
      _
    %p261 = scmp.le.s32.totalorder 1, %s14
    %p262 = scmp.lt.s32.totalorder %s14, 3
    %p263 = pnand %p261, %p262
    %p264 = pneg %p263
    // Predicated region
    $region49: #{no_bottleneck_forward.1} parent=5 // pred_check
      _
    $region50: #{no_bottleneck_forward.1} parent=5 // pred_check_branch
      %266 = sbr.rel (%p263) target = $region52
    $region51: #{no_bottleneck_forward.1} parent=5 // pred_region
      %s267 = ssub.s32 %s14, 1
      %p268 = scmp.lt.s32.totalorder %s19, 1
      %s269 = scalar_select %p268, %s19, 1
      %s270 = smul.addr %s269, 4
      %s271 = smul.addr %s270, 8
      %s272 = scalar_lea.vmem %s0, %s271
      %p273 = pneg %p40
      %p274 = pneg %p37
      %p275 = pneg %p61
      %p276 = pneg %p58
      %p277 = pneg %p82
      %p278 = pneg %p79
      %p279 = pneg %p103
      %p280 = pneg %p100
      %p281 = pneg %p124
      %p282 = pneg %p121
      %p283 = pneg %p145
      %p284 = pneg %p142
      %p285 = pneg %p166
      %p286 = pneg %p163
      %p287 = pneg %p187
      %p288 = pneg %p184
      %p289 = pneg %p213
      %p290 = pneg %p210
      %p291 = scmp.lt.s32.totalorder %s19, 1
      %s292 = scalar_select %p291, %s19, 1
      %s293 = smul.addr %s292, 4
      %s294 = smul.addr %s293, 8
      %s295 = scalar_lea.vmem %s8, %s294
      %p296 = scmp.lt.s32.totalorder %s19, 1
      %s297 = scalar_select %p296, %s19, 1
      %s298 = smul.addr %s297, 4
      %s299 = smul.addr %s298, 8
      %s300 = scalar_lea.vmem %s0, %s299
      %p301 = scmp.lt.s32.totalorder %s19, 1
      %s302 = scalar_select %p301, %s19, 1
      %s303 = smul.addr %s302, 4
      %s304 = smul.addr %s303, 8
      %s305 = scalar_lea.vmem %s8, %s304
      %v307 = vld [vmem:[%s300] sm:$0xff]
      %v308 = vld [vmem:[%s300 + $0x8] sm:$0xff]
      %v309 = vld [vmem:[%s300 + $0x10] sm:$0xff]
      %v310 = vld [vmem:[%s300 + $0x18] sm:$0xff]
      %v311 = vadd.f32 %v307, %v308
      %312 = vadd.xlane.f32.xlu0 %v311
      %v313 = vpop.xlane.xlu0 %312
      %v314 = vadd.f32 %v309, %v310
      %315 = vadd.xlane.f32.xlu0 %v314
      %v316 = vpop.xlane.xlu0 %315
      %v317 = vmul.f32 %v307, %v307
      %v318 = vmul.f32 %v308, %v308
      %v319 = vmul.f32 %v309, %v309
      %v320 = vmul.f32 %v310, %v310
      %v321 = vadd.f32 %v317, %v318
      %322 = vadd.xlane.f32.xlu0 %v321
      %v323 = vpop.xlane.xlu0 %322
      %v324 = vadd.f32 %v319, %v320
      %325 = vadd.xlane.f32.xlu0 %v324
      %v326 = vpop.xlane.xlu0 %325
      %v327 = vmul.f32 %v313, 0.00390625
      %v328 = vmul.f32 %v316, 0.00390625
      %v329 = vmul.f32 %v323, 0.00390625
      %v330 = vmul.f32 %v326, 0.00390625
      %v331 = vmul.f32 %v327, %v327
      %v332 = vmul.f32 %v328, %v328
      %v333 = vsub.f32 %v329, %v331
      %v334 = vsub.f32 %v330, %v332
      %v335 = vmax.f32 %v333, 0.0
      %v336 = vmax.f32 %v334, 0.0
      %v337 = vld [vmem:[%s1] sm:$0xff]
      %v338 = vld [vmem:[%s1 + $0x8] sm:$0xff]
      %v339 = vadd.f32 %v335, 1e-05
      %v340 = vadd.f32 %v336, 1e-05
      %v341 = vrsqrt.pop %v339
      %v342 = vmul.f32 %v341, %v339
      %v343 = vmul.f32 %v342, %v341
      %v344 = vmul.f32 0.5, %v343
      %v345 = vsub.f32 1.5, %v344
      %v346 = vmul.f32 %v341, %v345
      %vm347 = vweird.f32 %v339
      %vm348 = vweird.f32 %v341
      %vm349 = vmor %vm347, %vm348
      %v350 = vsel %vm349, %v341, %v346
      %v351 = vrsqrt.pop %v340
      %v352 = vmul.f32 %v351, %v340
      %v353 = vmul.f32 %v352, %v351
      %v354 = vmul.f32 0.5, %v353
      %v355 = vsub.f32 1.5, %v354
      %v356 = vmul.f32 %v351, %v355
      %vm357 = vweird.f32 %v340
      %vm358 = vweird.f32 %v351
      %vm359 = vmor %vm357, %vm358
      %v360 = vsel %vm359, %v351, %v356
      %v361 = vmul.f32 %v337, %v350
      %v362 = vmul.f32 %v338, %v360
      %v363 = vld [vmem:[%s2] sm:$0xff]
      %v364 = vld [vmem:[%s2 + $0x8] sm:$0xff]
      %v365 = vmul.f32 %v327, %v361
      %v366 = vmul.f32 %v328, %v362
      %v367 = vsub.f32 %v363, %v365
      %v368 = vsub.f32 %v364, %v366
      %370 = vset.pattern.permute.xlu0 0
      %371 = vperm.xlu0 %370, %v361
      %v372 = vpop.permute.xlu0 %371
      %375 = vset.pattern.permute.xlu0 0
      %376 = vperm.xlu0 %375, %v362
      %v377 = vpop.permute.xlu0 %376
      %v379 = vmul.f32 %v307, %v372
      %v380 = vmul.f32 %v308, %v372
      %v381 = vmul.f32 %v309, %v377
      %v382 = vmul.f32 %v310, %v377
      %384 = vset.pattern.permute.xlu0 0
      %385 = vperm.xlu0 %384, %v367
      %v386 = vpop.permute.xlu0 %385
      %389 = vset.pattern.permute.xlu0 0
      %390 = vperm.xlu0 %389, %v368
      %v391 = vpop.permute.xlu0 %390
      %v393 = vadd.f32 %v379, %v386
      %v394 = vadd.f32 %v380, %v386
      %v395 = vadd.f32 %v381, %v391
      %v396 = vadd.f32 %v382, %v391
      %v397 = vmul.f32 %v393, 0.1
      %v398 = vmul.f32 %v394, 0.1
      %v399 = vmul.f32 %v395, 0.1
      %v400 = vmul.f32 %v396, 0.1
      %v401 = vmax.f32 %v393, %v397
      %v402 = vmax.f32 %v394, %v398
      %v403 = vmax.f32 %v395, %v399
      %v404 = vmax.f32 %v396, %v400
      %405 = vrot.lane.b32.xlu0 %v401, 73
      %v406 = vpop.permute.xlu0 %405
      %407 = vrot.lane.b32.xlu0 %v403, 73
      %v408 = vpop.permute.xlu0 %407
      %409 = vrot.lane.b32.xlu0 %v402, 73
      %v410 = vpop.permute.xlu0 %409
      %411 = vrot.lane.b32.xlu0 %v404, 73
      %v412 = vpop.permute.xlu0 %411
      %v413 = vlaneseq
      %v414 = vand.u32 %v413, 127
      %vm415 = vcmp.lt.s32.totalorder %v414, 73
      %v416 = vsel %vm415, %v406, %v410
      %v417 = vsel %vm415, %v408, %v412
      %v418 = vsel %vm415, %v410, %v406
      %v419 = vsel %vm415, %v412, %v408
      %v420 = vld [vmem:[%s7] sm:$0x11]
      %v421 = vunpack.c.l.bf16 %v420
      %v422 = vunpack.c.h.bf16 %v420
      %v423 = vperm.slane %v421, 0
      %v424 = vperm.slane %v422, 0
      %v425 = vmul.f32 %v418, %v423
      %v426 = vmul.f32 %v416, %v424
      %v427 = vmul.f32 %v419, %v423
      %v428 = vmul.f32 %v417, %v424
      %v429 = vpack.c.bf16 %v426, %v425
      %v430 = vpack.c.bf16 %v428, %v427
      %431 = vst [vmem:[#allocation2] sm:$0xff] %v429
      %432 = vst [vmem:[#allocation2 + $0x8] sm:$0xff] %v430
      %433 = vrot.lane.b32.xlu0 %v401, 72
      %v434 = vpop.permute.xlu0 %433
      %435 = vrot.lane.b32.xlu0 %v403, 72
      %v436 = vpop.permute.xlu0 %435
      %437 = vrot.lane.b32.xlu0 %v402, 72
      %v438 = vpop.permute.xlu0 %437
      %439 = vrot.lane.b32.xlu0 %v404, 72
      %v440 = vpop.permute.xlu0 %439
      %vm441 = vcmp.lt.s32.totalorder %v414, 72
      %v442 = vsel %vm441, %v434, %v438
      %v443 = vsel %vm441, %v436, %v440
      %v444 = vsel %vm441, %v438, %v434
      %v445 = vsel %vm441, %v440, %v436
      %v446 = vld [vmem:[%s7] sm:$0x11]
      %v447 = vunpack.c.l.bf16 %v446
      %v448 = vunpack.c.h.bf16 %v446
      %v449 = vperm.slane %v447, 1
      %v450 = vperm.slane %v448, 1
      %v451 = vmul.f32 %v444, %v449
      %v452 = vmul.f32 %v442, %v450
      %v453 = vmul.f32 %v445, %v449
      %v454 = vmul.f32 %v443, %v450
      %v455 = vpack.c.bf16 %v452, %v451
      %v456 = vpack.c.bf16 %v454, %v453
      %457 = vst [vmem:[#allocation2 + $0x10] sm:$0xff] %v455
      %458 = vst [vmem:[#allocation2 + $0x18] sm:$0xff] %v456
      %459 = vrot.lane.b32.xlu0 %v401, 71
      %v460 = vpop.permute.xlu0 %459
      %461 = vrot.lane.b32.xlu0 %v403, 71
      %v462 = vpop.permute.xlu0 %461
      %463 = vrot.lane.b32.xlu0 %v402, 71
      %v464 = vpop.permute.xlu0 %463
      %465 = vrot.lane.b32.xlu0 %v404, 71
      %v466 = vpop.permute.xlu0 %465
      %vm467 = vcmp.lt.s32.totalorder %v414, 71
      %v468 = vsel %vm467, %v460, %v464
      %v469 = vsel %vm467, %v462, %v466
      %v470 = vsel %vm467, %v464, %v460
      %v471 = vsel %vm467, %v466, %v462
      %v472 = vld [vmem:[%s7] sm:$0x22]
      %v473 = vunpack.c.l.bf16 %v472
      %v474 = vunpack.c.h.bf16 %v472
      %v475 = vperm.slane %v473, 2
      %v476 = vperm.slane %v474, 2
      %v477 = vmul.f32 %v470, %v475
      %v478 = vmul.f32 %v468, %v476
      %v479 = vmul.f32 %v471, %v475
      %v480 = vmul.f32 %v469, %v476
      %v481 = vpack.c.bf16 %v478, %v477
      %v482 = vpack.c.bf16 %v480, %v479
      %483 = vst [vmem:[#allocation2 + $0x20] sm:$0xff] %v481
      %484 = vst [vmem:[#allocation2 + $0x28] sm:$0xff] %v482
      %485 = vrot.lane.b32.xlu0 %v401, 65
      %v486 = vpop.permute.xlu0 %485
      %487 = vrot.lane.b32.xlu0 %v403, 65
      %v488 = vpop.permute.xlu0 %487
      %489 = vrot.lane.b32.xlu0 %v402, 65
      %v490 = vpop.permute.xlu0 %489
      %491 = vrot.lane.b32.xlu0 %v404, 65
      %v492 = vpop.permute.xlu0 %491
      %vm493 = vcmp.lt.s32.totalorder %v414, 65
      %v494 = vsel %vm493, %v486, %v490
      %v495 = vsel %vm493, %v488, %v492
      %v496 = vsel %vm493, %v490, %v486
      %v497 = vsel %vm493, %v492, %v488
      %v498 = vld [vmem:[%s7] sm:$0x22]
      %v499 = vunpack.c.l.bf16 %v498
      %v500 = vunpack.c.h.bf16 %v498
      %v501 = vperm.slane %v499, 3
      %v502 = vperm.slane %v500, 3
      %v503 = vmul.f32 %v496, %v501
      %v504 = vmul.f32 %v494, %v502
      %v505 = vmul.f32 %v497, %v501
      %v506 = vmul.f32 %v495, %v502
      %v507 = vpack.c.bf16 %v504, %v503
      %v508 = vpack.c.bf16 %v506, %v505
      %509 = vst [vmem:[#allocation2 + $0x30] sm:$0xff] %v507
      %510 = vst [vmem:[#allocation2 + $0x38] sm:$0xff] %v508
      %511 = vrot.lane.b32.xlu0 %v401, 64
      %v512 = vpop.permute.xlu0 %511
      %513 = vrot.lane.b32.xlu0 %v403, 64
      %v514 = vpop.permute.xlu0 %513
      %515 = vrot.lane.b32.xlu0 %v402, 64
      %v516 = vpop.permute.xlu0 %515
      %517 = vrot.lane.b32.xlu0 %v404, 64
      %v518 = vpop.permute.xlu0 %517
      %vm519 = vcmp.lt.s32.totalorder %v414, 64
      %v520 = vsel %vm519, %v512, %v516
      %v521 = vsel %vm519, %v514, %v518
      %v522 = vsel %vm519, %v516, %v512
      %v523 = vsel %vm519, %v518, %v514
      %v524 = vld [vmem:[%s7] sm:$0x44]
      %v525 = vunpack.c.l.bf16 %v524
      %v526 = vunpack.c.h.bf16 %v524
      %v527 = vperm.slane %v525, 4
      %v528 = vperm.slane %v526, 4
      %v529 = vmul.f32 %v522, %v527
      %v530 = vmul.f32 %v520, %v528
      %v531 = vmul.f32 %v523, %v527
      %v532 = vmul.f32 %v521, %v528
      %v533 = vpack.c.bf16 %v530, %v529
      %v534 = vpack.c.bf16 %v532, %v531
      %535 = vst [vmem:[#allocation2 + $0x40] sm:$0xff] %v533
      %536 = vst [vmem:[#allocation2 + $0x48] sm:$0xff] %v534
      %537 = vrot.lane.b32.xlu0 %v401, 63
      %v538 = vpop.permute.xlu0 %537
      %539 = vrot.lane.b32.xlu0 %v403, 63
      %v540 = vpop.permute.xlu0 %539
      %541 = vrot.lane.b32.xlu0 %v402, 63
      %v542 = vpop.permute.xlu0 %541
      %543 = vrot.lane.b32.xlu0 %v404, 63
      %v544 = vpop.permute.xlu0 %543
      %vm545 = vcmp.lt.s32.totalorder %v414, 63
      %v546 = vsel %vm545, %v538, %v542
      %v547 = vsel %vm545, %v540, %v544
      %v548 = vsel %vm545, %v542, %v538
      %v549 = vsel %vm545, %v544, %v540
      %v550 = vld [vmem:[%s7] sm:$0x44]
      %v551 = vunpack.c.l.bf16 %v550
      %v552 = vunpack.c.h.bf16 %v550
      %v553 = vperm.slane %v551, 5
      %v554 = vperm.slane %v552, 5
      %v555 = vmul.f32 %v548, %v553
      %v556 = vmul.f32 %v546, %v554
      %v557 = vmul.f32 %v549, %v553
      %v558 = vmul.f32 %v547, %v554
      %v559 = vpack.c.bf16 %v556, %v555
      %v560 = vpack.c.bf16 %v558, %v557
      %561 = vst [vmem:[#allocation2 + $0x50] sm:$0xff] %v559
      %562 = vst [vmem:[#allocation2 + $0x58] sm:$0xff] %v560
      %563 = vrot.lane.b32.xlu0 %v401, 57
      %v564 = vpop.permute.xlu0 %563
      %565 = vrot.lane.b32.xlu0 %v403, 57
      %v566 = vpop.permute.xlu0 %565
      %567 = vrot.lane.b32.xlu0 %v402, 57
      %v568 = vpop.permute.xlu0 %567
      %569 = vrot.lane.b32.xlu0 %v404, 57
      %v570 = vpop.permute.xlu0 %569
      %vm571 = vcmp.lt.s32.totalorder %v414, 57
      %v572 = vsel %vm571, %v564, %v568
      %v573 = vsel %vm571, %v566, %v570
      %v574 = vsel %vm571, %v568, %v564
      %v575 = vsel %vm571, %v570, %v566
      %v576 = vld [vmem:[%s7] sm:$0x88]
      %v577 = vunpack.c.l.bf16 %v576
      %v578 = vunpack.c.h.bf16 %v576
      %v579 = vperm.slane %v577, 6
      %v580 = vperm.slane %v578, 6
      %v581 = vmul.f32 %v574, %v579
      %v582 = vmul.f32 %v572, %v580
      %v583 = vmul.f32 %v575, %v579
      %v584 = vmul.f32 %v573, %v580
      %v585 = vpack.c.bf16 %v582, %v581
      %v586 = vpack.c.bf16 %v584, %v583
      %587 = vst [vmem:[#allocation2 + $0x60] sm:$0xff] %v585
      %588 = vst [vmem:[#allocation2 + $0x68] sm:$0xff] %v586
      %589 = vrot.lane.b32.xlu0 %v401, 56
      %v590 = vpop.permute.xlu0 %589
      %591 = vrot.lane.b32.xlu0 %v403, 56
      %v592 = vpop.permute.xlu0 %591
      %593 = vrot.lane.b32.xlu0 %v402, 56
      %v594 = vpop.permute.xlu0 %593
      %595 = vrot.lane.b32.xlu0 %v404, 56
      %v596 = vpop.permute.xlu0 %595
      %vm597 = vcmp.lt.s32.totalorder %v414, 56
      %v598 = vsel %vm597, %v590, %v594
      %v599 = vsel %vm597, %v592, %v596
      %v600 = vsel %vm597, %v594, %v590
      %v601 = vsel %vm597, %v596, %v592
      %v602 = vld [vmem:[%s7] sm:$0x88]
      %v603 = vunpack.c.l.bf16 %v602
      %v604 = vunpack.c.h.bf16 %v602
      %v605 = vperm.slane %v603, 7
      %v606 = vperm.slane %v604, 7
      %v607 = vmul.f32 %v600, %v605
      %v608 = vmul.f32 %v598, %v606
      %v609 = vmul.f32 %v601, %v605
      %v610 = vmul.f32 %v599, %v606
      %v611 = vpack.c.bf16 %v608, %v607
      %v612 = vpack.c.bf16 %v610, %v609
      %613 = vst [vmem:[#allocation2 + $0x70] sm:$0xff] %v611
      %614 = vst [vmem:[#allocation2 + $0x78] sm:$0xff] %v612
      %615 = vrot.lane.b32.xlu0 %v401, 55
      %v616 = vpop.permute.xlu0 %615
      %617 = vrot.lane.b32.xlu0 %v403, 55
      %v618 = vpop.permute.xlu0 %617
      %619 = vrot.lane.b32.xlu0 %v402, 55
      %v620 = vpop.permute.xlu0 %619
      %621 = vrot.lane.b32.xlu0 %v404, 55
      %v622 = vpop.permute.xlu0 %621
      %vm623 = vcmp.lt.s32.totalorder %v414, 55
      %v624 = vsel %vm623, %v616, %v620
      %v625 = vsel %vm623, %v618, %v622
      %v626 = vsel %vm623, %v620, %v616
      %v627 = vsel %vm623, %v622, %v618
      %v628 = vld [vmem:[%s7 + $0x8] sm:$0x11]
      %v629 = vunpack.c.l.bf16 %v628
      %v630 = vunpack.c.h.bf16 %v628
      %v631 = vperm.slane %v629, 0
      %v632 = vperm.slane %v630, 0
      %v633 = vmul.f32 %v626, %v631
      %v634 = vmul.f32 %v624, %v632
      %v635 = vmul.f32 %v627, %v631
      %v636 = vmul.f32 %v625, %v632
      %v637 = vpack.c.bf16 %v634, %v633
      %v638 = vpack.c.bf16 %v636, %v635
      %639 = vst [vmem:[#allocation2 + $0x80] sm:$0xff] %v637
      %640 = vst [vmem:[#allocation2 + $0x88] sm:$0xff] %v638
      %v641 = vld [vmem:[%s3] sm:$0xff]
      %v642 = vld [vmem:[%s3 + $0x8] sm:$0xff]
      %v643 = vld [vmem:[#allocation2] sm:$0xff]
      %v644 = vld [vmem:[#allocation2 + $0x8] sm:$0xff]
      %v645 = vld [vmem:[#allocation2 + $0x10] sm:$0xff]
      %v646 = vld [vmem:[#allocation2 + $0x18] sm:$0xff]
      %v647 = vld [vmem:[#allocation2 + $0x20] sm:$0xff]
      %v648 = vld [vmem:[#allocation2 + $0x28] sm:$0xff]
      %v649 = vld [vmem:[#allocation2 + $0x30] sm:$0xff]
      %v650 = vld [vmem:[#allocation2 + $0x38] sm:$0xff]
      %v651 = vld [vmem:[#allocation2 + $0x40] sm:$0xff]
      %v652 = vld [vmem:[#allocation2 + $0x48] sm:$0xff]
      %v653 = vld [vmem:[#allocation2 + $0x50] sm:$0xff]
      %v654 = vld [vmem:[#allocation2 + $0x58] sm:$0xff]
      %v655 = vld [vmem:[#allocation2 + $0x60] sm:$0xff]
      %v656 = vld [vmem:[#allocation2 + $0x68] sm:$0xff]
      %v657 = vld [vmem:[#allocation2 + $0x70] sm:$0xff]
      %v658 = vld [vmem:[#allocation2 + $0x78] sm:$0xff]
      %v659 = vld [vmem:[#allocation2 + $0x80] sm:$0xff]
      %v660 = vld [vmem:[#allocation2 + $0x88] sm:$0xff]
      %661 = vrot.lane.b32.xlu0 %v401, 9
      %v662 = vpop.permute.xlu0 %661
      %663 = vrot.lane.b32.xlu0 %v403, 9
      %v664 = vpop.permute.xlu0 %663
      %665 = vrot.lane.b32.xlu0 %v402, 9
      %v666 = vpop.permute.xlu0 %665
      %667 = vrot.lane.b32.xlu0 %v404, 9
      %v668 = vpop.permute.xlu0 %667
      %vm669 = vcmp.lt.s32.totalorder %v414, 9
      %v670 = vsel %vm669, %v662, %v666
      %v671 = vsel %vm669, %v664, %v668
      %v672 = vsel %vm669, %v666, %v662
      %v673 = vsel %vm669, %v668, %v664
      %v674 = vld [vmem:[%s7 + $0x8] sm:$0x11]
      %v675 = vunpack.c.l.bf16 %v674
      %v676 = vunpack.c.h.bf16 %v674
      %v677 = vperm.slane %v675, 1
      %v678 = vperm.slane %v676, 1
      %v679 = vmul.f32 %v672, %v677
      %v680 = vmul.f32 %v670, %v678
      %v681 = vmul.f32 %v673, %v677
      %v682 = vmul.f32 %v671, %v678
      %v683 = vpack.c.bf16 %v680, %v679
      %v684 = vpack.c.bf16 %v682, %v681
      %s685 = scalar_lea.vmem [#allocation2], 144
      %686 = vst [vmem:[%s685] sm:$0xff] %v683
      %687 = vst [vmem:[%s685 + $0x8] sm:$0xff] %v684
      %688 = vrot.lane.b32.xlu0 %v401, 8
      %v689 = vpop.permute.xlu0 %688
      %690 = vrot.lane.b32.xlu0 %v403, 8
      %v691 = vpop.permute.xlu0 %690
      %692 = vrot.lane.b32.xlu0 %v402, 8
      %v693 = vpop.permute.xlu0 %692
      %694 = vrot.lane.b32.xlu0 %v404, 8
      %v695 = vpop.permute.xlu0 %694
      %vm696 = vcmp.lt.s32.totalorder %v414, 8
      %v697 = vsel %vm696, %v689, %v693
      %v698 = vsel %vm696, %v691, %v695
      %v699 = vsel %vm696, %v693, %v689
      %v700 = vsel %vm696, %v695, %v691
      %v701 = vld [vmem:[%s7 + $0x8] sm:$0x22]
      %v702 = vunpack.c.l.bf16 %v701
      %v703 = vunpack.c.h.bf16 %v701
      %v704 = vperm.slane %v702, 2
      %v705 = vperm.slane %v703, 2
      %v706 = vmul.f32 %v699, %v704
      %v707 = vmul.f32 %v697, %v705
      %v708 = vmul.f32 %v700, %v704
      %v709 = vmul.f32 %v698, %v705
      %v710 = vpack.c.bf16 %v707, %v706
      %v711 = vpack.c.bf16 %v709, %v708
      %712 = vst [vmem:[%s685 + $0x10] sm:$0xff] %v710
      %713 = vst [vmem:[%s685 + $0x18] sm:$0xff] %v711
      %714 = vrot.lane.b32.xlu0 %v401, 7
      %v715 = vpop.permute.xlu0 %714
      %716 = vrot.lane.b32.xlu0 %v403, 7
      %v717 = vpop.permute.xlu0 %716
      %718 = vrot.lane.b32.xlu0 %v402, 7
      %v719 = vpop.permute.xlu0 %718
      %720 = vrot.lane.b32.xlu0 %v404, 7
      %v721 = vpop.permute.xlu0 %720
      %vm722 = vcmp.lt.s32.totalorder %v414, 7
      %v723 = vsel %vm722, %v715, %v719
      %v724 = vsel %vm722, %v717, %v721
      %v725 = vsel %vm722, %v719, %v715
      %v726 = vsel %vm722, %v721, %v717
      %v727 = vld [vmem:[%s7 + $0x8] sm:$0x22]
      %v728 = vunpack.c.l.bf16 %v727
      %v729 = vunpack.c.h.bf16 %v727
      %v730 = vperm.slane %v728, 3
      %v731 = vperm.slane %v729, 3
      %v732 = vmul.f32 %v725, %v730
      %v733 = vmul.f32 %v723, %v731
      %v734 = vmul.f32 %v726, %v730
      %v735 = vmul.f32 %v724, %v731
      %v736 = vpack.c.bf16 %v733, %v732
      %v737 = vpack.c.bf16 %v735, %v734
      %738 = vst [vmem:[%s685 + $0x20] sm:$0xff] %v736
      %739 = vst [vmem:[%s685 + $0x28] sm:$0xff] %v737
      %740 = vrot.lane.b32.xlu0 %v401, 1
      %v741 = vpop.permute.xlu0 %740
      %742 = vrot.lane.b32.xlu0 %v403, 1
      %v743 = vpop.permute.xlu0 %742
      %744 = vrot.lane.b32.xlu0 %v402, 1
      %v745 = vpop.permute.xlu0 %744
      %746 = vrot.lane.b32.xlu0 %v404, 1
      %v747 = vpop.permute.xlu0 %746
      %vm748 = vcmp.lt.s32.totalorder %v414, 1
      %v749 = vsel %vm748, %v741, %v745
      %v750 = vsel %vm748, %v743, %v747
      %v751 = vsel %vm748, %v745, %v741
      %v752 = vsel %vm748, %v747, %v743
      %v753 = vld [vmem:[%s7 + $0x8] sm:$0x44]
      %v754 = vunpack.c.l.bf16 %v753
      %v755 = vunpack.c.h.bf16 %v753
      %v756 = vperm.slane %v754, 4
      %v757 = vperm.slane %v755, 4
      %v758 = vmul.f32 %v751, %v756
      %v759 = vmul.f32 %v749, %v757
      %v760 = vmul.f32 %v752, %v756
      %v761 = vmul.f32 %v750, %v757
      %v762 = vpack.c.bf16 %v759, %v758
      %v763 = vpack.c.bf16 %v761, %v760
      %764 = vst [vmem:[%s685 + $0x30] sm:$0xff] %v762
      %765 = vst [vmem:[%s685 + $0x38] sm:$0xff] %v763
      %v766 = vpack.c.bf16 %v402, %v401
      %v767 = vpack.c.bf16 %v404, %v403
      %768 = vst [vmem:[%s685 + $0x40] sm:$0xff] %v766
      %769 = vst [vmem:[%s685 + $0x48] sm:$0xff] %v767
      %770 = vrot.lane.b32.xlu0 %v401, 127
      %v771 = vpop.permute.xlu0 %770
      %772 = vrot.lane.b32.xlu0 %v403, 127
      %v773 = vpop.permute.xlu0 %772
      %774 = vrot.lane.b32.xlu0 %v402, 127
      %v775 = vpop.permute.xlu0 %774
      %776 = vrot.lane.b32.xlu0 %v404, 127
      %v777 = vpop.permute.xlu0 %776
      %vm778 = vcmp.lt.s32.totalorder %v414, 127
      %v779 = vsel %vm778, %v771, %v775
      %v780 = vsel %vm778, %v773, %v777
      %v781 = vsel %vm778, %v775, %v771
      %v782 = vsel %vm778, %v777, %v773
      %v783 = vld [vmem:[%s7 + $0x8] sm:$0x88]
      %v784 = vunpack.c.l.bf16 %v783
      %v785 = vunpack.c.h.bf16 %v783
      %v786 = vperm.slane %v784, 6
      %v787 = vperm.slane %v785, 6
      %v788 = vmul.f32 %v779, %v786
      %v789 = vmul.f32 %v781, %v787
      %v790 = vmul.f32 %v780, %v786
      %v791 = vmul.f32 %v782, %v787
      %v792 = vpack.c.bf16 %v789, %v788
      %v793 = vpack.c.bf16 %v791, %v790
      %794 = vst [vmem:[%s685 + $0x50] sm:$0xff] %v792
      %795 = vst [vmem:[%s685 + $0x58] sm:$0xff] %v793
      %796 = vrot.lane.b32.xlu0 %v401, 121
      %v797 = vpop.permute.xlu0 %796
      %798 = vrot.lane.b32.xlu0 %v403, 121
      %v799 = vpop.permute.xlu0 %798
      %800 = vrot.lane.b32.xlu0 %v402, 121
      %v801 = vpop.permute.xlu0 %800
      %802 = vrot.lane.b32.xlu0 %v404, 121
      %v803 = vpop.permute.xlu0 %802
      %vm804 = vcmp.lt.s32.totalorder %v414, 121
      %v805 = vsel %vm804, %v797, %v801
      %v806 = vsel %vm804, %v799, %v803
      %v807 = vsel %vm804, %v801, %v797
      %v808 = vsel %vm804, %v803, %v799
      %v809 = vld [vmem:[%s7 + $0x8] sm:$0x88]
      %v810 = vunpack.c.l.bf16 %v809
      %v811 = vunpack.c.h.bf16 %v809
      %v812 = vperm.slane %v810, 7
      %v813 = vperm.slane %v811, 7
      %v814 = vmul.f32 %v805, %v812
      %v815 = vmul.f32 %v807, %v813
      %v816 = vmul.f32 %v806, %v812
      %v817 = vmul.f32 %v808, %v813
      %v818 = vpack.c.bf16 %v815, %v814
      %v819 = vpack.c.bf16 %v817, %v816
      %820 = vst [vmem:[%s685 + $0x60] sm:$0xff] %v818
      %821 = vst [vmem:[%s685 + $0x68] sm:$0xff] %v819
      %822 = vrot.lane.b32.xlu0 %v401, 120
      %v823 = vpop.permute.xlu0 %822
      %824 = vrot.lane.b32.xlu0 %v403, 120
      %v825 = vpop.permute.xlu0 %824
      %826 = vrot.lane.b32.xlu0 %v402, 120
      %v827 = vpop.permute.xlu0 %826
      %828 = vrot.lane.b32.xlu0 %v404, 120
      %v829 = vpop.permute.xlu0 %828
      %vm830 = vcmp.lt.s32.totalorder %v414, 120
      %v831 = vsel %vm830, %v823, %v827
      %v832 = vsel %vm830, %v825, %v829
      %v833 = vsel %vm830, %v827, %v823
      %v834 = vsel %vm830, %v829, %v825
      %v835 = vld [vmem:[%s7 + $0x10] sm:$0x11]
      %v836 = vunpack.c.l.bf16 %v835
      %v837 = vunpack.c.h.bf16 %v835
      %v838 = vperm.slane %v836, 0
      %v839 = vperm.slane %v837, 0
      %v840 = vmul.f32 %v831, %v838
      %v841 = vmul.f32 %v833, %v839
      %v842 = vmul.f32 %v832, %v838
      %v843 = vmul.f32 %v834, %v839
      %v844 = vpack.c.bf16 %v841, %v840
      %v845 = vpack.c.bf16 %v843, %v842
      %846 = vst [vmem:[%s685 + $0x70] sm:$0xff] %v844
      %847 = vst [vmem:[%s685 + $0x78] sm:$0xff] %v845
      %848 = vrot.lane.b32.xlu0 %v401, 119
      %v849 = vpop.permute.xlu0 %848
      %850 = vrot.lane.b32.xlu0 %v403, 119
      %v851 = vpop.permute.xlu0 %850
      %852 = vrot.lane.b32.xlu0 %v402, 119
      %v853 = vpop.permute.xlu0 %852
      %854 = vrot.lane.b32.xlu0 %v404, 119
      %v855 = vpop.permute.xlu0 %854
      %vm856 = vcmp.lt.s32.totalorder %v414, 119
      %v857 = vsel %vm856, %v849, %v853
      %v858 = vsel %vm856, %v851, %v855
      %v859 = vsel %vm856, %v853, %v849
      %v860 = vsel %vm856, %v855, %v851
      %v861 = vld [vmem:[%s7 + $0x10] sm:$0x11]
      %v862 = vunpack.c.l.bf16 %v861
      %v863 = vunpack.c.h.bf16 %v861
      %v864 = vperm.slane %v862, 1
      %v865 = vperm.slane %v863, 1
      %v866 = vmul.f32 %v857, %v864
      %v867 = vmul.f32 %v859, %v865
      %v868 = vmul.f32 %v858, %v864
      %v869 = vmul.f32 %v860, %v865
      %v870 = vpack.c.bf16 %v867, %v866
      %v871 = vpack.c.bf16 %v869, %v868
      %872 = vst [vmem:[%s685 + $0x80] sm:$0xff] %v870
      %873 = vst [vmem:[%s685 + $0x88] sm:$0xff] %v871
      %s874 = scalar_lea.vmem %s3, 16
      %v875 = vld [vmem:[%s874] sm:$0xff]
      %v876 = vld [vmem:[%s874 + $0x8] sm:$0xff]
      %v877 = vld [vmem:[%s685] sm:$0xff]
      %v878 = vld [vmem:[%s685 + $0x8] sm:$0xff]
      %v879 = vld [vmem:[%s685 + $0x10] sm:$0xff]
      %v880 = vld [vmem:[%s685 + $0x18] sm:$0xff]
      %v881 = vld [vmem:[%s685 + $0x20] sm:$0xff]
      %v882 = vld [vmem:[%s685 + $0x28] sm:$0xff]
      %v883 = vld [vmem:[%s685 + $0x30] sm:$0xff]
      %v884 = vld [vmem:[%s685 + $0x38] sm:$0xff]
      %v885 = vld [vmem:[%s685 + $0x40] sm:$0xff]
      %v886 = vld [vmem:[%s685 + $0x48] sm:$0xff]
      %v887 = vld [vmem:[%s685 + $0x50] sm:$0xff]
      %v888 = vld [vmem:[%s685 + $0x58] sm:$0xff]
      %v889 = vld [vmem:[%s685 + $0x60] sm:$0xff]
      %v890 = vld [vmem:[%s685 + $0x68] sm:$0xff]
      %v891 = vld [vmem:[%s685 + $0x70] sm:$0xff]
      %v892 = vld [vmem:[%s685 + $0x78] sm:$0xff]
      %v893 = vld [vmem:[%s685 + $0x80] sm:$0xff]
      %v894 = vld [vmem:[%s685 + $0x88] sm:$0xff]
      %v897 = vunpack.c.l.b16 %v875
      %v898 = vunpack.c.h.b16 %v875
      %v899 = vunpack.c.l.b16 %v876
      %v900 = vunpack.c.h.b16 %v876
      %v901 = vpack.c.b16 %v899, %v897
      %v902 = vpack.c.b16 %v900, %v898
      %v922 = vunpack.c.l.b16 %v877
      %v923 = vunpack.c.h.b16 %v877
      %v924 = vunpack.c.l.b16 %v878
      %v925 = vunpack.c.h.b16 %v878
      %v926 = vunpack.c.l.b16 %v879
      %v927 = vunpack.c.h.b16 %v879
      %v928 = vunpack.c.l.b16 %v880
      %v929 = vunpack.c.h.b16 %v880
      %v930 = vunpack.c.l.b16 %v881
      %v931 = vunpack.c.h.b16 %v881
      %v932 = vunpack.c.l.b16 %v882
      %v933 = vunpack.c.h.b16 %v882
      %v934 = vunpack.c.l.b16 %v883
      %v935 = vunpack.c.h.b16 %v883
      %v936 = vunpack.c.l.b16 %v884
      %v937 = vunpack.c.h.b16 %v884
      %v938 = vunpack.c.l.b16 %v885
      %v939 = vunpack.c.h.b16 %v885
      %v940 = vunpack.c.l.b16 %v886
      %v941 = vunpack.c.h.b16 %v886
      %v942 = vunpack.c.l.b16 %v887
      %v943 = vunpack.c.h.b16 %v887
      %v944 = vunpack.c.l.b16 %v888
      %v945 = vunpack.c.h.b16 %v888
      %v946 = vunpack.c.l.b16 %v889
      %v947 = vunpack.c.h.b16 %v889
      %v948 = vunpack.c.l.b16 %v890
      %v949 = vunpack.c.h.b16 %v890
      %v950 = vunpack.c.l.b16 %v891
      %v951 = vunpack.c.h.b16 %v891
      %v952 = vunpack.c.l.b16 %v892
      %v953 = vunpack.c.h.b16 %v892
      %v954 = vunpack.c.l.b16 %v893
      %v955 = vunpack.c.h.b16 %v893
      %v956 = vunpack.c.l.b16 %v894
      %v957 = vunpack.c.h.b16 %v894
      %v958 = vpack.c.b16 %v924, %v922
      %v959 = vpack.c.b16 %v925, %v923
      %v960 = vpack.c.b16 %v928, %v926
      %v961 = vpack.c.b16 %v929, %v927
      %v962 = vpack.c.b16 %v932, %v930
      %v963 = vpack.c.b16 %v933, %v931
      %v964 = vpack.c.b16 %v936, %v934
      %v965 = vpack.c.b16 %v937, %v935
      %v966 = vpack.c.b16 %v940, %v938
      %v967 = vpack.c.b16 %v941, %v939
      %v968 = vpack.c.b16 %v944, %v942
      %v969 = vpack.c.b16 %v945, %v943
      %v970 = vpack.c.b16 %v948, %v946
      %v971 = vpack.c.b16 %v949, %v947
      %v972 = vpack.c.b16 %v952, %v950
      %v973 = vpack.c.b16 %v953, %v951
      %v974 = vpack.c.b16 %v956, %v954
      %v975 = vpack.c.b16 %v957, %v955
      %vm994 = vcmask 130048
      %v996 = vsel %vm994, %v902, 0
      %998 = vmatpush.bf16.msra.mxu0 %v972
      %999 = vmatpush.bf16.msra.mxu0 %v970
      %1000 = vmatpush.bf16.msra.mxu0 %v968
      %1001 = vmatpush.bf16.msra.mxu0 %v966
      %1002 = vmatpush.bf16.msra.mxu0 %v964
      %1003 = vmatpush.bf16.msra.mxu0 %v962
      %1004 = vmatpush.bf16.msra.mxu0 %v960
      %1005 = vmatpush.bf16.msra.mxu0 %v958
      %1006 = vmatmul.bf16.gmra.mxu0 %v901
      %v1007 = vpop.f32.mrf.mxu0
      %v1008 = vadd.f32 0.0, %v1007
      %v1009 = vpop.f32.mrf.mxu0
      %v1010 = vadd.f32 0.0, %v1009
      %1011 = vdwg.mxu0
      %1012 = vmatpush.bf16.msra.mxu0 0
      %1013 = vmatpush.bf16.msra.mxu0 0
      %1014 = vmatpush.bf16.msra.mxu0 0
      %1015 = vmatpush.bf16.msra.mxu0 0
      %1016 = vmatpush.bf16.msra.mxu0 0
      %1017 = vmatpush.bf16.msra.mxu0 0
      %1018 = vmatpush.bf16.msra.mxu0 0
      %1019 = vmatpush.bf16.msra.mxu0 %v974
      %1020 = vmatmul.bf16.gmra.mxu0 %v996
      %v1021 = vpop.f32.mrf.mxu0
      %v1022 = vadd.f32 %v1008, %v1021
      %v1023 = vpop.f32.mrf.mxu0
      %v1024 = vadd.f32 %v1010, %v1023
      %1025 = vdwg.mxu0
      %1026 = vmatpush.bf16.msra.mxu0 %v973
      %1027 = vmatpush.bf16.msra.mxu0 %v971
      %1028 = vmatpush.bf16.msra.mxu0 %v969
      %1029 = vmatpush.bf16.msra.mxu0 %v967
      %1030 = vmatpush.bf16.msra.mxu0 %v965
      %1031 = vmatpush.bf16.msra.mxu0 %v963
      %1032 = vmatpush.bf16.msra.mxu0 %v961
      %1033 = vmatpush.bf16.msra.mxu0 %v959
      %1034 = vmatmul.bf16.gmra.mxu0 %v901
      %v1035 = vpop.f32.mrf.mxu0
      %v1036 = vadd.f32 0.0, %v1035
      %v1037 = vpop.f32.mrf.mxu0
      %v1038 = vadd.f32 0.0, %v1037
      %1039 = vdwg.mxu0
      %1040 = vmatpush.bf16.msra.mxu0 0
      %1041 = vmatpush.bf16.msra.mxu0 0
      %1042 = vmatpush.bf16.msra.mxu0 0
      %1043 = vmatpush.bf16.msra.mxu0 0
      %1044 = vmatpush.bf16.msra.mxu0 0
      %1045 = vmatpush.bf16.msra.mxu0 0
      %1046 = vmatpush.bf16.msra.mxu0 0
      %1047 = vmatpush.bf16.msra.mxu0 %v975
      %1048 = vmatmul.bf16.gmra.mxu0 %v996
      %v1049 = vpop.f32.mrf.mxu0
      %v1050 = vadd.f32 %v1036, %v1049
      %v1051 = vpop.f32.mrf.mxu0
      %v1052 = vadd.f32 %v1038, %v1051
      %1053 = vdwg.mxu0
      %v1056 = vunpack.c.l.b16 %v641
      %v1057 = vunpack.c.h.b16 %v641
      %v1058 = vunpack.c.l.b16 %v642
      %v1059 = vunpack.c.h.b16 %v642
      %v1060 = vpack.c.b16 %v1058, %v1056
      %v1061 = vpack.c.b16 %v1059, %v1057
      %v1081 = vunpack.c.l.b16 %v643
      %v1082 = vunpack.c.h.b16 %v643
      %v1083 = vunpack.c.l.b16 %v644
      %v1084 = vunpack.c.h.b16 %v644
      %v1085 = vunpack.c.l.b16 %v645
      %v1086 = vunpack.c.h.b16 %v645
      %v1087 = vunpack.c.l.b16 %v646
      %v1088 = vunpack.c.h.b16 %v646
      %v1089 = vunpack.c.l.b16 %v647
      %v1090 = vunpack.c.h.b16 %v647
      %v1091 = vunpack.c.l.b16 %v648
      %v1092 = vunpack.c.h.b16 %v648
      %v1093 = vunpack.c.l.b16 %v649
      %v1094 = vunpack.c.h.b16 %v649
      %v1095 = vunpack.c.l.b16 %v650
      %v1096 = vunpack.c.h.b16 %v650
      %v1097 = vunpack.c.l.b16 %v651
      %v1098 = vunpack.c.h.b16 %v651
      %v1099 = vunpack.c.l.b16 %v652
      %v1100 = vunpack.c.h.b16 %v652
      %v1101 = vunpack.c.l.b16 %v653
      %v1102 = vunpack.c.h.b16 %v653
      %v1103 = vunpack.c.l.b16 %v654
      %v1104 = vunpack.c.h.b16 %v654
      %v1105 = vunpack.c.l.b16 %v655
      %v1106 = vunpack.c.h.b16 %v655
      %v1107 = vunpack.c.l.b16 %v656
      %v1108 = vunpack.c.h.b16 %v656
      %v1109 = vunpack.c.l.b16 %v657
      %v1110 = vunpack.c.h.b16 %v657
      %v1111 = vunpack.c.l.b16 %v658
      %v1112 = vunpack.c.h.b16 %v658
      %v1113 = vunpack.c.l.b16 %v659
      %v1114 = vunpack.c.h.b16 %v659
      %v1115 = vunpack.c.l.b16 %v660
      %v1116 = vunpack.c.h.b16 %v660
      %v1117 = vpack.c.b16 %v1083, %v1081
      %v1118 = vpack.c.b16 %v1084, %v1082
      %v1119 = vpack.c.b16 %v1087, %v1085
      %v1120 = vpack.c.b16 %v1088, %v1086
      %v1121 = vpack.c.b16 %v1091, %v1089
      %v1122 = vpack.c.b16 %v1092, %v1090
      %v1123 = vpack.c.b16 %v1095, %v1093
      %v1124 = vpack.c.b16 %v1096, %v1094
      %v1125 = vpack.c.b16 %v1099, %v1097
      %v1126 = vpack.c.b16 %v1100, %v1098
      %v1127 = vpack.c.b16 %v1103, %v1101
      %v1128 = vpack.c.b16 %v1104, %v1102
      %v1129 = vpack.c.b16 %v1107, %v1105
      %v1130 = vpack.c.b16 %v1108, %v1106
      %v1131 = vpack.c.b16 %v1111, %v1109
      %v1132 = vpack.c.b16 %v1112, %v1110
      %v1133 = vpack.c.b16 %v1115, %v1113
      %v1134 = vpack.c.b16 %v1116, %v1114
      %v1154 = vsel %vm994, %v1061, 0
      %1156 = vmatpush.bf16.msra.mxu0 %v1131
      %1157 = vmatpush.bf16.msra.mxu0 %v1129
      %1158 = vmatpush.bf16.msra.mxu0 %v1127
      %1159 = vmatpush.bf16.msra.mxu0 %v1125
      %1160 = vmatpush.bf16.msra.mxu0 %v1123
      %1161 = vmatpush.bf16.msra.mxu0 %v1121
      %1162 = vmatpush.bf16.msra.mxu0 %v1119
      %1163 = vmatpush.bf16.msra.mxu0 %v1117
      %1164 = vmatmul.bf16.gmra.mxu0 %v1060
      %v1165 = vpop.f32.mrf.mxu0
      %v1166 = vadd.f32 %v1022, %v1165
      %v1167 = vpop.f32.mrf.mxu0
      %v1168 = vadd.f32 %v1024, %v1167
      %1169 = vdwg.mxu0
      %1170 = vmatpush.bf16.msra.mxu0 0
      %1171 = vmatpush.bf16.msra.mxu0 0
      %1172 = vmatpush.bf16.msra.mxu0 0
      %1173 = vmatpush.bf16.msra.mxu0 0
      %1174 = vmatpush.bf16.msra.mxu0 0
      %1175 = vmatpush.bf16.msra.mxu0 0
      %1176 = vmatpush.bf16.msra.mxu0 0
      %1177 = vmatpush.bf16.msra.mxu0 %v1133
      %1178 = vmatmul.bf16.gmra.mxu0 %v1154
      %v1179 = vpop.f32.mrf.mxu0
      %v1180 = vadd.f32 %v1166, %v1179
      %v1181 = vpop.f32.mrf.mxu0
      %v1182 = vadd.f32 %v1168, %v1181
      %1183 = vdwg.mxu0
      %1184 = vmatpush.bf16.msra.mxu0 %v1132
      %1185 = vmatpush.bf16.msra.mxu0 %v1130
      %1186 = vmatpush.bf16.msra.mxu0 %v1128
      %1187 = vmatpush.bf16.msra.mxu0 %v1126
      %1188 = vmatpush.bf16.msra.mxu0 %v1124
      %1189 = vmatpush.bf16.msra.mxu0 %v1122
      %1190 = vmatpush.bf16.msra.mxu0 %v1120
      %1191 = vmatpush.bf16.msra.mxu0 %v1118
      %1192 = vmatmul.bf16.gmra.mxu0 %v1060
      %v1193 = vpop.f32.mrf.mxu0
      %v1194 = vadd.f32 %v1050, %v1193
      %v1195 = vpop.f32.mrf.mxu0
      %v1196 = vadd.f32 %v1052, %v1195
      %1197 = vdwg.mxu0
      %1198 = vmatpush.bf16.msra.mxu0 0
      %1199 = vmatpush.bf16.msra.mxu0 0
      %1200 = vmatpush.bf16.msra.mxu0 0
      %1201 = vmatpush.bf16.msra.mxu0 0
      %1202 = vmatpush.bf16.msra.mxu0 0
      %1203 = vmatpush.bf16.msra.mxu0 0
      %1204 = vmatpush.bf16.msra.mxu0 0
      %1205 = vmatpush.bf16.msra.mxu0 %v1134
      %1206 = vmatmul.bf16.gmra.mxu0 %v1154
      %v1207 = vpop.f32.mrf.mxu0
      %v1208 = vadd.f32 %v1194, %v1207
      %v1209 = vpop.f32.mrf.mxu0
      %v1210 = vadd.f32 %v1196, %v1209
      %1211 = vdwg.mxu0
      %v1212 = vld [vmem:[%s7 + $0x10] sm:$0x22]
      %v1213 = vunpack.c.l.bf16 %v1212
      %v1214 = vunpack.c.h.bf16 %v1212
      %v1215 = vperm.slane %v1213, 2
      %v1216 = vperm.slane %v1214, 2
      %v1217 = vmul.f32 %v416, %v1215
      %v1218 = vmul.f32 %v418, %v1216
      %v1219 = vmul.f32 %v417, %v1215
      %v1220 = vmul.f32 %v419, %v1216
      %v1221 = vpack.c.bf16 %v1218, %v1217
      %v1222 = vpack.c.bf16 %v1220, %v1219
      %1223 = vst [vmem:[#allocation2] sm:$0xff] %v1221
      %1224 = vst [vmem:[#allocation2 + $0x8] sm:$0xff] %v1222
      %v1225 = vld [vmem:[%s7 + $0x10] sm:$0x22]
      %v1226 = vunpack.c.l.bf16 %v1225
      %v1227 = vunpack.c.h.bf16 %v1225
      %v1228 = vperm.slane %v1226, 3
      %v1229 = vperm.slane %v1227, 3
      %v1230 = vmul.f32 %v442, %v1228
      %v1231 = vmul.f32 %v444, %v1229
      %v1232 = vmul.f32 %v443, %v1228
      %v1233 = vmul.f32 %v445, %v1229
      %v1234 = vpack.c.bf16 %v1231, %v1230
      %v1235 = vpack.c.bf16 %v1233, %v1232
      %1236 = vst [vmem:[#allocation2 + $0x10] sm:$0xff] %v1234
      %1237 = vst [vmem:[#allocation2 + $0x18] sm:$0xff] %v1235
      %v1238 = vld [vmem:[%s7 + $0x10] sm:$0x44]
      %v1239 = vunpack.c.l.bf16 %v1238
      %v1240 = vunpack.c.h.bf16 %v1238
      %v1241 = vperm.slane %v1239, 4
      %v1242 = vperm.slane %v1240, 4
      %v1243 = vmul.f32 %v468, %v1241
      %v1244 = vmul.f32 %v470, %v1242
      %v1245 = vmul.f32 %v469, %v1241
      %v1246 = vmul.f32 %v471, %v1242
      %v1247 = vpack.c.bf16 %v1244, %v1243
      %v1248 = vpack.c.bf16 %v1246, %v1245
      %1249 = vst [vmem:[#allocation2 + $0x20] sm:$0xff] %v1247
      %1250 = vst [vmem:[#allocation2 + $0x28] sm:$0xff] %v1248
      %v1251 = vld [vmem:[%s7 + $0x10] sm:$0x44]
      %v1252 = vunpack.c.l.bf16 %v1251
      %v1253 = vunpack.c.h.bf16 %v1251
      %v1254 = vperm.slane %v1252, 5
      %v1255 = vperm.slane %v1253, 5
      %v1256 = vmul.f32 %v494, %v1254
      %v1257 = vmul.f32 %v496, %v1255
      %v1258 = vmul.f32 %v495, %v1254
      %v1259 = vmul.f32 %v497, %v1255
      %v1260 = vpack.c.bf16 %v1257, %v1256
      %v1261 = vpack.c.bf16 %v1259, %v1258
      %1262 = vst [vmem:[#allocation2 + $0x30] sm:$0xff] %v1260
      %1263 = vst [vmem:[#allocation2 + $0x38] sm:$0xff] %v1261
      %v1264 = vld [vmem:[%s7 + $0x10] sm:$0x88]
      %v1265 = vunpack.c.l.bf16 %v1264
      %v1266 = vunpack.c.h.bf16 %v1264
      %v1267 = vperm.slane %v1265, 6
      %v1268 = vperm.slane %v1266, 6
      %v1269 = vmul.f32 %v520, %v1267
      %v1270 = vmul.f32 %v522, %v1268
      %v1271 = vmul.f32 %v521, %v1267
      %v1272 = vmul.f32 %v523, %v1268
      %v1273 = vpack.c.bf16 %v1270, %v1269
      %v1274 = vpack.c.bf16 %v1272, %v1271
      %1275 = vst [vmem:[#allocation2 + $0x40] sm:$0xff] %v1273
      %1276 = vst [vmem:[#allocation2 + $0x48] sm:$0xff] %v1274
      %v1277 = vld [vmem:[%s7 + $0x10] sm:$0x88]
      %v1278 = vunpack.c.l.bf16 %v1277
      %v1279 = vunpack.c.h.bf16 %v1277
      %v1280 = vperm.slane %v1278, 7
      %v1281 = vperm.slane %v1279, 7
      %v1282 = vmul.f32 %v546, %v1280
      %v1283 = vmul.f32 %v548, %v1281
      %v1284 = vmul.f32 %v547, %v1280
      %v1285 = vmul.f32 %v549, %v1281
      %v1286 = vpack.c.bf16 %v1283, %v1282
      %v1287 = vpack.c.bf16 %v1285, %v1284
      %1288 = vst [vmem:[#allocation2 + $0x50] sm:$0xff] %v1286
      %1289 = vst [vmem:[#allocation2 + $0x58] sm:$0xff] %v1287
      %v1290 = vld [vmem:[%s7 + $0x18] sm:$0x11]
      %v1291 = vunpack.c.l.bf16 %v1290
      %v1292 = vunpack.c.h.bf16 %v1290
      %v1293 = vperm.slane %v1291, 0
      %v1294 = vperm.slane %v1292, 0
      %v1295 = vmul.f32 %v572, %v1293
      %v1296 = vmul.f32 %v574, %v1294
      %v1297 = vmul.f32 %v573, %v1293
      %v1298 = vmul.f32 %v575, %v1294
      %v1299 = vpack.c.bf16 %v1296, %v1295
      %v1300 = vpack.c.bf16 %v1298, %v1297
      %1301 = vst [vmem:[#allocation2 + $0x60] sm:$0xff] %v1299
      %1302 = vst [vmem:[#allocation2 + $0x68] sm:$0xff] %v1300
      %v1303 = vld [vmem:[%s7 + $0x18] sm:$0x11]
      %v1304 = vunpack.c.l.bf16 %v1303
      %v1305 = vunpack.c.h.bf16 %v1303
      %v1306 = vperm.slane %v1304, 1
      %v1307 = vperm.slane %v1305, 1
      %v1308 = vmul.f32 %v598, %v1306
      %v1309 = vmul.f32 %v600, %v1307
      %v1310 = vmul.f32 %v599, %v1306
      %v1311 = vmul.f32 %v601, %v1307
      %v1312 = vpack.c.bf16 %v1309, %v1308
      %v1313 = vpack.c.bf16 %v1311, %v1310
      %1314 = vst [vmem:[#allocation2 + $0x70] sm:$0xff] %v1312
      %1315 = vst [vmem:[#allocation2 + $0x78] sm:$0xff] %v1313
      %v1316 = vld [vmem:[%s7 + $0x18] sm:$0x22]
      %v1317 = vunpack.c.l.bf16 %v1316
      %v1318 = vunpack.c.h.bf16 %v1316
      %v1319 = vperm.slane %v1317, 2
      %v1320 = vperm.slane %v1318, 2
      %v1321 = vmul.f32 %v624, %v1319
      %v1322 = vmul.f32 %v626, %v1320
      %v1323 = vmul.f32 %v625, %v1319
      %v1324 = vmul.f32 %v627, %v1320
      %v1325 = vpack.c.bf16 %v1322, %v1321
      %v1326 = vpack.c.bf16 %v1324, %v1323
      %1327 = vst [vmem:[#allocation2 + $0x80] sm:$0xff] %v1325
      %1328 = vst [vmem:[#allocation2 + $0x88] sm:$0xff] %v1326
      %s1329 = scalar_lea.vmem %s3, 32
      %v1330 = vld [vmem:[%s1329] sm:$0xff]
      %v1331 = vld [vmem:[%s1329 + $0x8] sm:$0xff]
      %v1332 = vld [vmem:[#allocation2] sm:$0xff]
      %v1333 = vld [vmem:[#allocation2 + $0x8] sm:$0xff]
      %v1334 = vld [vmem:[#allocation2 + $0x10] sm:$0xff]
      %v1335 = vld [vmem:[#allocation2 + $0x18] sm:$0xff]
      %v1336 = vld [vmem:[#allocation2 + $0x20] sm:$0xff]
      %v1337 = vld [vmem:[#allocation2 + $0x28] sm:$0xff]
      %v1338 = vld [vmem:[#allocation2 + $0x30] sm:$0xff]
      %v1339 = vld [vmem:[#allocation2 + $0x38] sm:$0xff]
      %v1340 = vld [vmem:[#allocation2 + $0x40] sm:$0xff]
      %v1341 = vld [vmem:[#allocation2 + $0x48] sm:$0xff]
      %v1342 = vld [vmem:[#allocation2 + $0x50] sm:$0xff]
      %v1343 = vld [vmem:[#allocation2 + $0x58] sm:$0xff]
      %v1344 = vld [vmem:[#allocation2 + $0x60] sm:$0xff]
      %v1345 = vld [vmem:[#allocation2 + $0x68] sm:$0xff]
      %v1346 = vld [vmem:[#allocation2 + $0x70] sm:$0xff]
      %v1347 = vld [vmem:[#allocation2 + $0x78] sm:$0xff]
      %v1348 = vld [vmem:[#allocation2 + $0x80] sm:$0xff]
      %v1349 = vld [vmem:[#allocation2 + $0x88] sm:$0xff]
      %v1352 = vunpack.c.l.b16 %v1330
      %v1353 = vunpack.c.h.b16 %v1330
      %v1354 = vunpack.c.l.b16 %v1331
      %v1355 = vunpack.c.h.b16 %v1331
      %v1356 = vpack.c.b16 %v1354, %v1352
      %v1357 = vpack.c.b16 %v1355, %v1353
      %v1377 = vunpack.c.l.b16 %v1332
      %v1378 = vunpack.c.h.b16 %v1332
      %v1379 = vunpack.c.l.b16 %v1333
      %v1380 = vunpack.c.h.b16 %v1333
      %v1381 = vunpack.c.l.b16 %v1334
      %v1382 = vunpack.c.h.b16 %v1334
      %v1383 = vunpack.c.l.b16 %v1335
      %v1384 = vunpack.c.h.b16 %v1335
      %v1385 = vunpack.c.l.b16 %v1336
      %v1386 = vunpack.c.h.b16 %v1336
      %v1387 = vunpack.c.l.b16 %v1337
      %v1388 = vunpack.c.h.b16 %v1337
      %v1389 = vunpack.c.l.b16 %v1338
      %v1390 = vunpack.c.h.b16 %v1338
      %v1391 = vunpack.c.l.b16 %v1339
      %v1392 = vunpack.c.h.b16 %v1339
      %v1393 = vunpack.c.l.b16 %v1340
      %v1394 = vunpack.c.h.b16 %v1340
      %v1395 = vunpack.c.l.b16 %v1341
      %v1396 = vunpack.c.h.b16 %v1341
      %v1397 = vunpack.c.l.b16 %v1342
      %v1398 = vunpack.c.h.b16 %v1342
      %v1399 = vunpack.c.l.b16 %v1343
      %v1400 = vunpack.c.h.b16 %v1343
      %v1401 = vunpack.c.l.b16 %v1344
      %v1402 = vunpack.c.h.b16 %v1344
      %v1403 = vunpack.c.l.b16 %v1345
      %v1404 = vunpack.c.h.b16 %v1345
      %v1405 = vunpack.c.l.b16 %v1346
      %v1406 = vunpack.c.h.b16 %v1346
      %v1407 = vunpack.c.l.b16 %v1347
      %v1408 = vunpack.c.h.b16 %v1347
      %v1409 = vunpack.c.l.b16 %v1348
      %v1410 = vunpack.c.h.b16 %v1348
      %v1411 = vunpack.c.l.b16 %v1349
      %v1412 = vunpack.c.h.b16 %v1349
      %v1413 = vpack.c.b16 %v1379, %v1377
      %v1414 = vpack.c.b16 %v1380, %v1378
      %v1415 = vpack.c.b16 %v1383, %v1381
      %v1416 = vpack.c.b16 %v1384, %v1382
      %v1417 = vpack.c.b16 %v1387, %v1385
      %v1418 = vpack.c.b16 %v1388, %v1386
      %v1419 = vpack.c.b16 %v1391, %v1389
      %v1420 = vpack.c.b16 %v1392, %v1390
      %v1421 = vpack.c.b16 %v1395, %v1393
      %v1422 = vpack.c.b16 %v1396, %v1394
      %v1423 = vpack.c.b16 %v1399, %v1397
      %v1424 = vpack.c.b16 %v1400, %v1398
      %v1425 = vpack.c.b16 %v1403, %v1401
      %v1426 = vpack.c.b16 %v1404, %v1402
      %v1427 = vpack.c.b16 %v1407, %v1405
      %v1428 = vpack.c.b16 %v1408, %v1406
      %v1429 = vpack.c.b16 %v1411, %v1409
      %v1430 = vpack.c.b16 %v1412, %v1410
      %v1450 = vsel %vm994, %v1357, 0
      %1452 = vmatpush.bf16.msra.mxu0 %v1427
      %1453 = vmatpush.bf16.msra.mxu0 %v1425
      %1454 = vmatpush.bf16.msra.mxu0 %v1423
      %1455 = vmatpush.bf16.msra.mxu0 %v1421
      %1456 = vmatpush.bf16.msra.mxu0 %v1419
      %1457 = vmatpush.bf16.msra.mxu0 %v1417
      %1458 = vmatpush.bf16.msra.mxu0 %v1415
      %1459 = vmatpush.bf16.msra.mxu0 %v1413
      %1460 = vmatmul.bf16.gmra.mxu0 %v1356
      %v1461 = vpop.f32.mrf.mxu0
      %v1462 = vadd.f32 0.0, %v1461
      %v1463 = vpop.f32.mrf.mxu0
      %v1464 = vadd.f32 0.0, %v1463
      %1465 = vdwg.mxu0
      %1466 = vmatpush.bf16.msra.mxu0 0
      %1467 = vmatpush.bf16.msra.mxu0 0
      %1468 = vmatpush.bf16.msra.mxu0 0
      %1469 = vmatpush.bf16.msra.mxu0 0
      %1470 = vmatpush.bf16.msra.mxu0 0
      %1471 = vmatpush.bf16.msra.mxu0 0
      %1472 = vmatpush.bf16.msra.mxu0 0
      %1473 = vmatpush.bf16.msra.mxu0 %v1429
      %1474 = vmatmul.bf16.gmra.mxu0 %v1450
      %v1475 = vpop.f32.mrf.mxu0
      %v1476 = vadd.f32 %v1462, %v1475
      %v1477 = vpop.f32.mrf.mxu0
      %v1478 = vadd.f32 %v1464, %v1477
      %1479 = vdwg.mxu0
      %1480 = vmatpush.bf16.msra.mxu0 %v1428
      %1481 = vmatpush.bf16.msra.mxu0 %v1426
      %1482 = vmatpush.bf16.msra.mxu0 %v1424
      %1483 = vmatpush.bf16.msra.mxu0 %v1422
      %1484 = vmatpush.bf16.msra.mxu0 %v1420
      %1485 = vmatpush.bf16.msra.mxu0 %v1418
      %1486 = vmatpush.bf16.msra.mxu0 %v1416
      %1487 = vmatpush.bf16.msra.mxu0 %v1414
      %1488 = vmatmul.bf16.gmra.mxu0 %v1356
      %v1489 = vpop.f32.mrf.mxu0
      %v1490 = vadd.f32 0.0, %v1489
      %v1491 = vpop.f32.mrf.mxu0
      %v1492 = vadd.f32 0.0, %v1491
      %1493 = vdwg.mxu0
      %1494 = vmatpush.bf16.msra.mxu0 0
      %1495 = vmatpush.bf16.msra.mxu0 0
      %1496 = vmatpush.bf16.msra.mxu0 0
      %1497 = vmatpush.bf16.msra.mxu0 0
      %1498 = vmatpush.bf16.msra.mxu0 0
      %1499 = vmatpush.bf16.msra.mxu0 0
      %1500 = vmatpush.bf16.msra.mxu0 0
      %1501 = vmatpush.bf16.msra.mxu0 %v1430
      %1502 = vmatmul.bf16.gmra.mxu0 %v1450
      %v1503 = vpop.f32.mrf.mxu0
      %v1504 = vadd.f32 %v1490, %v1503
      %v1505 = vpop.f32.mrf.mxu0
      %v1506 = vadd.f32 %v1492, %v1505
      %1507 = vdwg.mxu0
      %v1508 = vadd.f32 %v1180, %v1476
      %v1509 = vadd.f32 %v1208, %v1504
      %v1510 = vadd.f32 %v1182, %v1478
      %v1511 = vadd.f32 %v1210, %v1506
      %v1512 = vadd.f32 %v1508, %v1509
      %1513 = vadd.xlane.f32.xlu0 %v1512
      %v1514 = vpop.xlane.xlu0 %1513
      %v1515 = vadd.f32 %v1510, %v1511
      %1516 = vadd.xlane.f32.xlu0 %v1515
      %v1517 = vpop.xlane.xlu0 %1516
      %v1518 = vmul.f32 %v1508, %v1508
      %v1519 = vmul.f32 %v1509, %v1509
      %v1520 = vmul.f32 %v1510, %v1510
      %v1521 = vmul.f32 %v1511, %v1511
      %v1522 = vadd.f32 %v1518, %v1519
      %1523 = vadd.xlane.f32.xlu0 %v1522
      %v1524 = vpop.xlane.xlu0 %1523
      %v1525 = vadd.f32 %v1520, %v1521
      %1526 = vadd.xlane.f32.xlu0 %v1525
      %v1527 = vpop.xlane.xlu0 %1526
      %v1528 = vmul.f32 %v1514, 0.00390625
      %v1529 = vmul.f32 %v1517, 0.00390625
      %v1530 = vmul.f32 %v1524, 0.00390625
      %v1531 = vmul.f32 %v1527, 0.00390625
      %v1532 = vmul.f32 %v1528, %v1528
      %v1533 = vmul.f32 %v1529, %v1529
      %v1534 = vsub.f32 %v1530, %v1532
      %v1535 = vsub.f32 %v1531, %v1533
      %v1536 = vmax.f32 %v1534, 0.0
      %v1537 = vmax.f32 %v1535, 0.0
      %v1538 = vld [vmem:[%s4] sm:$0xff]
      %v1539 = vld [vmem:[%s4 + $0x8] sm:$0xff]
      %v1540 = vadd.f32 %v1536, 1e-05
      %v1541 = vadd.f32 %v1537, 1e-05
      %v1542 = vrsqrt.pop %v1540
      %v1543 = vmul.f32 %v1542, %v1540
      %v1544 = vmul.f32 %v1543, %v1542
      %v1545 = vmul.f32 0.5, %v1544
      %v1546 = vsub.f32 1.5, %v1545
      %v1547 = vmul.f32 %v1542, %v1546
      %vm1548 = vweird.f32 %v1540
      %vm1549 = vweird.f32 %v1542
      %vm1550 = vmor %vm1548, %vm1549
      %v1551 = vsel %vm1550, %v1542, %v1547
      %v1552 = vrsqrt.pop %v1541
      %v1553 = vmul.f32 %v1552, %v1541
      %v1554 = vmul.f32 %v1553, %v1552
      %v1555 = vmul.f32 0.5, %v1554
      %v1556 = vsub.f32 1.5, %v1555
      %v1557 = vmul.f32 %v1552, %v1556
      %vm1558 = vweird.f32 %v1541
      %vm1559 = vweird.f32 %v1552
      %vm1560 = vmor %vm1558, %vm1559
      %v1561 = vsel %vm1560, %v1552, %v1557
      %v1562 = vmul.f32 %v1538, %v1551
      %v1563 = vmul.f32 %v1539, %v1561
      %v1564 = vld [vmem:[%s5] sm:$0xff]
      %v1565 = vld [vmem:[%s5 + $0x8] sm:$0xff]
      %v1566 = vmul.f32 %v1528, %v1562
      %v1567 = vmul.f32 %v1529, %v1563
      %v1568 = vsub.f32 %v1564, %v1566
      %v1569 = vsub.f32 %v1565, %v1567
      %1571 = vset.pattern.permute.xlu0 0
      %1572 = vperm.xlu0 %1571, %v1562
      %v1573 = vpop.permute.xlu0 %1572
      %1576 = vset.pattern.permute.xlu0 0
      %1577 = vperm.xlu0 %1576, %v1563
      %v1578 = vpop.permute.xlu0 %1577
      %v1580 = vmul.f32 %v1508, %v1573
      %v1581 = vmul.f32 %v1509, %v1573
      %v1582 = vmul.f32 %v1510, %v1578
      %v1583 = vmul.f32 %v1511, %v1578
      %1585 = vset.pattern.permute.xlu0 0
      %1586 = vperm.xlu0 %1585, %v1568
      %v1587 = vpop.permute.xlu0 %1586
      %1590 = vset.pattern.permute.xlu0 0
      %1591 = vperm.xlu0 %1590, %v1569
      %v1592 = vpop.permute.xlu0 %1591
      %v1594 = vadd.f32 %v1580, %v1587
      %v1595 = vadd.f32 %v1581, %v1587
      %v1596 = vadd.f32 %v1582, %v1592
      %v1597 = vadd.f32 %v1583, %v1592
      %v1598 = vmul.f32 %v1594, 0.1
      %v1599 = vmul.f32 %v1595, 0.1
      %v1600 = vmul.f32 %v1596, 0.1
      %v1601 = vmul.f32 %v1597, 0.1
      %v1602 = vmax.f32 %v1594, %v1598
      %v1603 = vmax.f32 %v1595, %v1599
      %v1604 = vmax.f32 %v1596, %v1600
      %v1605 = vmax.f32 %v1597, %v1601
      %1606 = vrot.lane.b32.xlu0 %v1602, 73
      %v1607 = vpop.permute.xlu0 %1606
      %1608 = vrot.lane.b32.xlu0 %v1604, 73
      %v1609 = vpop.permute.xlu0 %1608
      %1610 = vrot.lane.b32.xlu0 %v1603, 73
      %v1611 = vpop.permute.xlu0 %1610
      %1612 = vrot.lane.b32.xlu0 %v1605, 73
      %v1613 = vpop.permute.xlu0 %1612
      %v1614 = vsel %vm415, %v1607, %v1611
      %v1615 = vsel %vm415, %v1609, %v1613
      %v1616 = vsel %vm415, %v1611, %v1607
      %v1617 = vsel %vm415, %v1613, %v1609
      %v1618 = vld [vmem:[%s7] sm:$0x11]
      %v1619 = vunpack.c.l.bf16 %v1618
      %v1620 = vunpack.c.h.bf16 %v1618
      %v1621 = vperm.slane %v1619, 0
      %v1622 = vperm.slane %v1620, 0
      %v1623 = vmul.f32 %v1616, %v1621
      %v1624 = vmul.f32 %v1614, %v1622
      %v1625 = vmul.f32 %v1617, %v1621
      %v1626 = vmul.f32 %v1615, %v1622
      %v1627 = vpack.c.bf16 %v1624, %v1623
      %v1628 = vpack.c.bf16 %v1626, %v1625
      %1629 = vst [vmem:[#allocation2] sm:$0xff] %v1627
      %1630 = vst [vmem:[#allocation2 + $0x8] sm:$0xff] %v1628
      %1631 = vrot.lane.b32.xlu0 %v1602, 72
      %v1632 = vpop.permute.xlu0 %1631
      %1633 = vrot.lane.b32.xlu0 %v1604, 72
      %v1634 = vpop.permute.xlu0 %1633
      %1635 = vrot.lane.b32.xlu0 %v1603, 72
      %v1636 = vpop.permute.xlu0 %1635
      %1637 = vrot.lane.b32.xlu0 %v1605, 72
      %v1638 = vpop.permute.xlu0 %1637
      %v1639 = vsel %vm441, %v1632, %v1636
      %v1640 = vsel %vm441, %v1634, %v1638
      %v1641 = vsel %vm441, %v1636, %v1632
      %v1642 = vsel %vm441, %v1638, %v1634
      %v1643 = vld [vmem:[%s7] sm:$0x11]
      %v1644 = vunpack.c.l.bf16 %v1643
      %v1645 = vunpack.c.h.bf16 %v1643
      %v1646 = vperm.slane %v1644, 1
      %v1647 = vperm.slane %v1645, 1
      %v1648 = vmul.f32 %v1641, %v1646
      %v1649 = vmul.f32 %v1639, %v1647
      %v1650 = vmul.f32 %v1642, %v1646
      %v1651 = vmul.f32 %v1640, %v1647
      %v1652 = vpack.c.bf16 %v1649, %v1648
      %v1653 = vpack.c.bf16 %v1651, %v1650
      %1654 = vst [vmem:[#allocation2 + $0x10] sm:$0xff] %v1652
      %1655 = vst [vmem:[#allocation2 + $0x18] sm:$0xff] %v1653
      %1656 = vrot.lane.b32.xlu0 %v1602, 71
      %v1657 = vpop.permute.xlu0 %1656
      %1658 = vrot.lane.b32.xlu0 %v1604, 71
      %v1659 = vpop.permute.xlu0 %1658
      %1660 = vrot.lane.b32.xlu0 %v1603, 71
      %v1661 = vpop.permute.xlu0 %1660
      %1662 = vrot.lane.b32.xlu0 %v1605, 71
      %v1663 = vpop.permute.xlu0 %1662
      %v1664 = vsel %vm467, %v1657, %v1661
      %v1665 = vsel %vm467, %v1659, %v1663
      %v1666 = vsel %vm467, %v1661, %v1657
      %v1667 = vsel %vm467, %v1663, %v1659
      %v1668 = vld [vmem:[%s7] sm:$0x22]
      %v1669 = vunpack.c.l.bf16 %v1668
      %v1670 = vunpack.c.h.bf16 %v1668
      %v1671 = vperm.slane %v1669, 2
      %v1672 = vperm.slane %v1670, 2
      %v1673 = vmul.f32 %v1666, %v1671
      %v1674 = vmul.f32 %v1664, %v1672
      %v1675 = vmul.f32 %v1667, %v1671
      %v1676 = vmul.f32 %v1665, %v1672
      %v1677 = vpack.c.bf16 %v1674, %v1673
      %v1678 = vpack.c.bf16 %v1676, %v1675
      %1679 = vst [vmem:[#allocation2 + $0x20] sm:$0xff] %v1677
      %1680 = vst [vmem:[#allocation2 + $0x28] sm:$0xff] %v1678
      %1681 = vrot.lane.b32.xlu0 %v1602, 65
      %v1682 = vpop.permute.xlu0 %1681
      %1683 = vrot.lane.b32.xlu0 %v1604, 65
      %v1684 = vpop.permute.xlu0 %1683
      %1685 = vrot.lane.b32.xlu0 %v1603, 65
      %v1686 = vpop.permute.xlu0 %1685
      %1687 = vrot.lane.b32.xlu0 %v1605, 65
      %v1688 = vpop.permute.xlu0 %1687
      %v1689 = vsel %vm493, %v1682, %v1686
      %v1690 = vsel %vm493, %v1684, %v1688
      %v1691 = vsel %vm493, %v1686, %v1682
      %v1692 = vsel %vm493, %v1688, %v1684
      %v1693 = vld [vmem:[%s7] sm:$0x22]
      %v1694 = vunpack.c.l.bf16 %v1693
      %v1695 = vunpack.c.h.bf16 %v1693
      %v1696 = vperm.slane %v1694, 3
      %v1697 = vperm.slane %v1695, 3
      %v1698 = vmul.f32 %v1691, %v1696
      %v1699 = vmul.f32 %v1689, %v1697
      %v1700 = vmul.f32 %v1692, %v1696
      %v1701 = vmul.f32 %v1690, %v1697
      %v1702 = vpack.c.bf16 %v1699, %v1698
      %v1703 = vpack.c.bf16 %v1701, %v1700
      %1704 = vst [vmem:[#allocation2 + $0x30] sm:$0xff] %v1702
      %1705 = vst [vmem:[#allocation2 + $0x38] sm:$0xff] %v1703
      %1706 = vrot.lane.b32.xlu0 %v1602, 64
      %v1707 = vpop.permute.xlu0 %1706
      %1708 = vrot.lane.b32.xlu0 %v1604, 64
      %v1709 = vpop.permute.xlu0 %1708
      %1710 = vrot.lane.b32.xlu0 %v1603, 64
      %v1711 = vpop.permute.xlu0 %1710
      %1712 = vrot.lane.b32.xlu0 %v1605, 64
      %v1713 = vpop.permute.xlu0 %1712
      %v1714 = vsel %vm519, %v1707, %v1711
      %v1715 = vsel %vm519, %v1709, %v1713
      %v1716 = vsel %vm519, %v1711, %v1707
      %v1717 = vsel %vm519, %v1713, %v1709
      %v1718 = vld [vmem:[%s7] sm:$0x44]
      %v1719 = vunpack.c.l.bf16 %v1718
      %v1720 = vunpack.c.h.bf16 %v1718
      %v1721 = vperm.slane %v1719, 4
      %v1722 = vperm.slane %v1720, 4
      %v1723 = vmul.f32 %v1716, %v1721
      %v1724 = vmul.f32 %v1714, %v1722
      %v1725 = vmul.f32 %v1717, %v1721
      %v1726 = vmul.f32 %v1715, %v1722
      %v1727 = vpack.c.bf16 %v1724, %v1723
      %v1728 = vpack.c.bf16 %v1726, %v1725
      %1729 = vst [vmem:[#allocation2 + $0x40] sm:$0xff] %v1727
      %1730 = vst [vmem:[#allocation2 + $0x48] sm:$0xff] %v1728
      %1731 = vrot.lane.b32.xlu0 %v1602, 63
      %v1732 = vpop.permute.xlu0 %1731
      %1733 = vrot.lane.b32.xlu0 %v1604, 63
      %v1734 = vpop.permute.xlu0 %1733
      %1735 = vrot.lane.b32.xlu0 %v1603, 63
      %v1736 = vpop.permute.xlu0 %1735
      %1737 = vrot.lane.b32.xlu0 %v1605, 63
      %v1738 = vpop.permute.xlu0 %1737
      %v1739 = vsel %vm545, %v1732, %v1736
      %v1740 = vsel %vm545, %v1734, %v1738
      %v1741 = vsel %vm545, %v1736, %v1732
      %v1742 = vsel %vm545, %v1738, %v1734
      %v1743 = vld [vmem:[%s7] sm:$0x44]
      %v1744 = vunpack.c.l.bf16 %v1743
      %v1745 = vunpack.c.h.bf16 %v1743
      %v1746 = vperm.slane %v1744, 5
      %v1747 = vperm.slane %v1745, 5
      %v1748 = vmul.f32 %v1741, %v1746
      %v1749 = vmul.f32 %v1739, %v1747
      %v1750 = vmul.f32 %v1742, %v1746
      %v1751 = vmul.f32 %v1740, %v1747
      %v1752 = vpack.c.bf16 %v1749, %v1748
      %v1753 = vpack.c.bf16 %v1751, %v1750
      %1754 = vst [vmem:[#allocation2 + $0x50] sm:$0xff] %v1752
      %1755 = vst [vmem:[#allocation2 + $0x58] sm:$0xff] %v1753
      %1756 = vrot.lane.b32.xlu0 %v1602, 57
      %v1757 = vpop.permute.xlu0 %1756
      %1758 = vrot.lane.b32.xlu0 %v1604, 57
      %v1759 = vpop.permute.xlu0 %1758
      %1760 = vrot.lane.b32.xlu0 %v1603, 57
      %v1761 = vpop.permute.xlu0 %1760
      %1762 = vrot.lane.b32.xlu0 %v1605, 57
      %v1763 = vpop.permute.xlu0 %1762
      %v1764 = vsel %vm571, %v1757, %v1761
      %v1765 = vsel %vm571, %v1759, %v1763
      %v1766 = vsel %vm571, %v1761, %v1757
      %v1767 = vsel %vm571, %v1763, %v1759
      %v1768 = vld [vmem:[%s7] sm:$0x88]
      %v1769 = vunpack.c.l.bf16 %v1768
      %v1770 = vunpack.c.h.bf16 %v1768
      %v1771 = vperm.slane %v1769, 6
      %v1772 = vperm.slane %v1770, 6
      %v1773 = vmul.f32 %v1766, %v1771
      %v1774 = vmul.f32 %v1764, %v1772
      %v1775 = vmul.f32 %v1767, %v1771
      %v1776 = vmul.f32 %v1765, %v1772
      %v1777 = vpack.c.bf16 %v1774, %v1773
      %v1778 = vpack.c.bf16 %v1776, %v1775
      %1779 = vst [vmem:[#allocation2 + $0x60] sm:$0xff] %v1777
      %1780 = vst [vmem:[#allocation2 + $0x68] sm:$0xff] %v1778
      %1781 = vrot.lane.b32.xlu0 %v1602, 56
      %v1782 = vpop.permute.xlu0 %1781
      %1783 = vrot.lane.b32.xlu0 %v1604, 56
      %v1784 = vpop.permute.xlu0 %1783
      %1785 = vrot.lane.b32.xlu0 %v1603, 56
      %v1786 = vpop.permute.xlu0 %1785
      %1787 = vrot.lane.b32.xlu0 %v1605, 56
      %v1788 = vpop.permute.xlu0 %1787
      %v1789 = vsel %vm597, %v1782, %v1786
      %v1790 = vsel %vm597, %v1784, %v1788
      %v1791 = vsel %vm597, %v1786, %v1782
      %v1792 = vsel %vm597, %v1788, %v1784
      %v1793 = vld [vmem:[%s7] sm:$0x88]
      %v1794 = vunpack.c.l.bf16 %v1793
      %v1795 = vunpack.c.h.bf16 %v1793
      %v1796 = vperm.slane %v1794, 7
      %v1797 = vperm.slane %v1795, 7
      %v1798 = vmul.f32 %v1791, %v1796
      %v1799 = vmul.f32 %v1789, %v1797
      %v1800 = vmul.f32 %v1792, %v1796
      %v1801 = vmul.f32 %v1790, %v1797
      %v1802 = vpack.c.bf16 %v1799, %v1798
      %v1803 = vpack.c.bf16 %v1801, %v1800
      %1804 = vst [vmem:[#allocation2 + $0x70] sm:$0xff] %v1802
      %1805 = vst [vmem:[#allocation2 + $0x78] sm:$0xff] %v1803
      %1806 = vrot.lane.b32.xlu0 %v1602, 55
      %v1807 = vpop.permute.xlu0 %1806
      %1808 = vrot.lane.b32.xlu0 %v1604, 55
      %v1809 = vpop.permute.xlu0 %1808
      %1810 = vrot.lane.b32.xlu0 %v1603, 55
      %v1811 = vpop.permute.xlu0 %1810
      %1812 = vrot.lane.b32.xlu0 %v1605, 55
      %v1813 = vpop.permute.xlu0 %1812
      %v1814 = vsel %vm623, %v1807, %v1811
      %v1815 = vsel %vm623, %v1809, %v1813
      %v1816 = vsel %vm623, %v1811, %v1807
      %v1817 = vsel %vm623, %v1813, %v1809
      %v1818 = vld [vmem:[%s7 + $0x8] sm:$0x11]
      %v1819 = vunpack.c.l.bf16 %v1818
      %v1820 = vunpack.c.h.bf16 %v1818
      %v1821 = vperm.slane %v1819, 0
      %v1822 = vperm.slane %v1820, 0
      %v1823 = vmul.f32 %v1816, %v1821
      %v1824 = vmul.f32 %v1814, %v1822
      %v1825 = vmul.f32 %v1817, %v1821
      %v1826 = vmul.f32 %v1815, %v1822
      %v1827 = vpack.c.bf16 %v1824, %v1823
      %v1828 = vpack.c.bf16 %v1826, %v1825
      %1829 = vst [vmem:[#allocation2 + $0x80] sm:$0xff] %v1827
      %1830 = vst [vmem:[#allocation2 + $0x88] sm:$0xff] %v1828
      %v1831 = vld [vmem:[%s6] sm:$0xff]
      %v1832 = vld [vmem:[%s6 + $0x8] sm:$0xff]
      %v1833 = vld [vmem:[#allocation2] sm:$0xff]
      %v1834 = vld [vmem:[#allocation2 + $0x8] sm:$0xff]
      %v1835 = vld [vmem:[#allocation2 + $0x10] sm:$0xff]
      %v1836 = vld [vmem:[#allocation2 + $0x18] sm:$0xff]
      %v1837 = vld [vmem:[#allocation2 + $0x20] sm:$0xff]
      %v1838 = vld [vmem:[#allocation2 + $0x28] sm:$0xff]
      %v1839 = vld [vmem:[#allocation2 + $0x30] sm:$0xff]
      %v1840 = vld [vmem:[#allocation2 + $0x38] sm:$0xff]
      %v1841 = vld [vmem:[#allocation2 + $0x40] sm:$0xff]
      %v1842 = vld [vmem:[#allocation2 + $0x48] sm:$0xff]
      %v1843 = vld [vmem:[#allocation2 + $0x50] sm:$0xff]
      %v1844 = vld [vmem:[#allocation2 + $0x58] sm:$0xff]
      %v1845 = vld [vmem:[#allocation2 + $0x60] sm:$0xff]
      %v1846 = vld [vmem:[#allocation2 + $0x68] sm:$0xff]
      %v1847 = vld [vmem:[#allocation2 + $0x70] sm:$0xff]
      %v1848 = vld [vmem:[#allocation2 + $0x78] sm:$0xff]
      %v1849 = vld [vmem:[#allocation2 + $0x80] sm:$0xff]
      %v1850 = vld [vmem:[#allocation2 + $0x88] sm:$0xff]
      %1851 = vrot.lane.b32.xlu0 %v1602, 9
      %v1852 = vpop.permute.xlu0 %1851
      %1853 = vrot.lane.b32.xlu0 %v1604, 9
      %v1854 = vpop.permute.xlu0 %1853
      %1855 = vrot.lane.b32.xlu0 %v1603, 9
      %v1856 = vpop.permute.xlu0 %1855
      %1857 = vrot.lane.b32.xlu0 %v1605, 9
      %v1858 = vpop.permute.xlu0 %1857
      %v1859 = vsel %vm669, %v1852, %v1856
      %v1860 = vsel %vm669, %v1854, %v1858
      %v1861 = vsel %vm669, %v1856, %v1852
      %v1862 = vsel %vm669, %v1858, %v1854
      %v1863 = vld [vmem:[%s7 + $0x8] sm:$0x11]
      %v1864 = vunpack.c.l.bf16 %v1863
      %v1865 = vunpack.c.h.bf16 %v1863
      %v1866 = vperm.slane %v1864, 1
      %v1867 = vperm.slane %v1865, 1
      %v1868 = vmul.f32 %v1861, %v1866
      %v1869 = vmul.f32 %v1859, %v1867
      %v1870 = vmul.f32 %v1862, %v1866
      %v1871 = vmul.f32 %v1860, %v1867
      %v1872 = vpack.c.bf16 %v1869, %v1868
      %v1873 = vpack.c.bf16 %v1871, %v1870
      %1874 = vst [vmem:[%s685] sm:$0xff] %v1872
      %1875 = vst [vmem:[%s685 + $0x8] sm:$0xff] %v1873
      %1876 = vrot.lane.b32.xlu0 %v1602, 8
      %v1877 = vpop.permute.xlu0 %1876
      %1878 = vrot.lane.b32.xlu0 %v1604, 8
      %v1879 = vpop.permute.xlu0 %1878
      %1880 = vrot.lane.b32.xlu0 %v1603, 8
      %v1881 = vpop.permute.xlu0 %1880
      %1882 = vrot.lane.b32.xlu0 %v1605, 8
      %v1883 = vpop.permute.xlu0 %1882
      %v1884 = vsel %vm696, %v1877, %v1881
      %v1885 = vsel %vm696, %v1879, %v1883
      %v1886 = vsel %vm696, %v1881, %v1877
      %v1887 = vsel %vm696, %v1883, %v1879
      %v1888 = vld [vmem:[%s7 + $0x8] sm:$0x22]
      %v1889 = vunpack.c.l.bf16 %v1888
      %v1890 = vunpack.c.h.bf16 %v1888
      %v1891 = vperm.slane %v1889, 2
      %v1892 = vperm.slane %v1890, 2
      %v1893 = vmul.f32 %v1886, %v1891
      %v1894 = vmul.f32 %v1884, %v1892
      %v1895 = vmul.f32 %v1887, %v1891
      %v1896 = vmul.f32 %v1885, %v1892
      %v1897 = vpack.c.bf16 %v1894, %v1893
      %v1898 = vpack.c.bf16 %v1896, %v1895
      %1899 = vst [vmem:[%s685 + $0x10] sm:$0xff] %v1897
      %1900 = vst [vmem:[%s685 + $0x18] sm:$0xff] %v1898
      %1901 = vrot.lane.b32.xlu0 %v1602, 7
      %v1902 = vpop.permute.xlu0 %1901
      %1903 = vrot.lane.b32.xlu0 %v1604, 7
      %v1904 = vpop.permute.xlu0 %1903
      %1905 = vrot.lane.b32.xlu0 %v1603, 7
      %v1906 = vpop.permute.xlu0 %1905
      %1907 = vrot.lane.b32.xlu0 %v1605, 7
      %v1908 = vpop.permute.xlu0 %1907
      %v1909 = vsel %vm722, %v1902, %v1906
      %v1910 = vsel %vm722, %v1904, %v1908
      %v1911 = vsel %vm722, %v1906, %v1902
      %v1912 = vsel %vm722, %v1908, %v1904
      %v1913 = vld [vmem:[%s7 + $0x8] sm:$0x22]
      %v1914 = vunpack.c.l.bf16 %v1913
      %v1915 = vunpack.c.h.bf16 %v1913
      %v1916 = vperm.slane %v1914, 3
      %v1917 = vperm.slane %v1915, 3
      %v1918 = vmul.f32 %v1911, %v1916
      %v1919 = vmul.f32 %v1909, %v1917
      %v1920 = vmul.f32 %v1912, %v1916
      %v1921 = vmul.f32 %v1910, %v1917
      %v1922 = vpack.c.bf16 %v1919, %v1918
      %v1923 = vpack.c.bf16 %v1921, %v1920
      %1924 = vst [vmem:[%s685 + $0x20] sm:$0xff] %v1922
      %1925 = vst [vmem:[%s685 + $0x28] sm:$0xff] %v1923
      %1926 = vrot.lane.b32.xlu0 %v1602, 1
      %v1927 = vpop.permute.xlu0 %1926
      %1928 = vrot.lane.b32.xlu0 %v1604, 1
      %v1929 = vpop.permute.xlu0 %1928
      %1930 = vrot.lane.b32.xlu0 %v1603, 1
      %v1931 = vpop.permute.xlu0 %1930
      %1932 = vrot.lane.b32.xlu0 %v1605, 1
      %v1933 = vpop.permute.xlu0 %1932
      %v1934 = vsel %vm748, %v1927, %v1931
      %v1935 = vsel %vm748, %v1929, %v1933
      %v1936 = vsel %vm748, %v1931, %v1927
      %v1937 = vsel %vm748, %v1933, %v1929
      %v1938 = vld [vmem:[%s7 + $0x8] sm:$0x44]
      %v1939 = vunpack.c.l.bf16 %v1938
      %v1940 = vunpack.c.h.bf16 %v1938
      %v1941 = vperm.slane %v1939, 4
      %v1942 = vperm.slane %v1940, 4
      %v1943 = vmul.f32 %v1936, %v1941
      %v1944 = vmul.f32 %v1934, %v1942
      %v1945 = vmul.f32 %v1937, %v1941
      %v1946 = vmul.f32 %v1935, %v1942
      %v1947 = vpack.c.bf16 %v1944, %v1943
      %v1948 = vpack.c.bf16 %v1946, %v1945
      %1949 = vst [vmem:[%s685 + $0x30] sm:$0xff] %v1947
      %1950 = vst [vmem:[%s685 + $0x38] sm:$0xff] %v1948
      %v1951 = vpack.c.bf16 %v1603, %v1602
      %v1952 = vpack.c.bf16 %v1605, %v1604
      %1953 = vst [vmem:[%s685 + $0x40] sm:$0xff] %v1951
      %1954 = vst [vmem:[%s685 + $0x48] sm:$0xff] %v1952
      %1955 = vrot.lane.b32.xlu0 %v1602, 127
      %v1956 = vpop.permute.xlu0 %1955
      %1957 = vrot.lane.b32.xlu0 %v1604, 127
      %v1958 = vpop.permute.xlu0 %1957
      %1959 = vrot.lane.b32.xlu0 %v1603, 127
      %v1960 = vpop.permute.xlu0 %1959
      %1961 = vrot.lane.b32.xlu0 %v1605, 127
      %v1962 = vpop.permute.xlu0 %1961
      %v1963 = vsel %vm778, %v1956, %v1960
      %v1964 = vsel %vm778, %v1958, %v1962
      %v1965 = vsel %vm778, %v1960, %v1956
      %v1966 = vsel %vm778, %v1962, %v1958
      %v1967 = vld [vmem:[%s7 + $0x8] sm:$0x88]
      %v1968 = vunpack.c.l.bf16 %v1967
      %v1969 = vunpack.c.h.bf16 %v1967
      %v1970 = vperm.slane %v1968, 6
      %v1971 = vperm.slane %v1969, 6
      %v1972 = vmul.f32 %v1963, %v1970
      %v1973 = vmul.f32 %v1965, %v1971
      %v1974 = vmul.f32 %v1964, %v1970
      %v1975 = vmul.f32 %v1966, %v1971
      %v1976 = vpack.c.bf16 %v1973, %v1972
      %v1977 = vpack.c.bf16 %v1975, %v1974
      %1978 = vst [vmem:[%s685 + $0x50] sm:$0xff] %v1976
      %1979 = vst [vmem:[%s685 + $0x58] sm:$0xff] %v1977
      %1980 = vrot.lane.b32.xlu0 %v1602, 121
      %v1981 = vpop.permute.xlu0 %1980
      %1982 = vrot.lane.b32.xlu0 %v1604, 121
      %v1983 = vpop.permute.xlu0 %1982
      %1984 = vrot.lane.b32.xlu0 %v1603, 121
      %v1985 = vpop.permute.xlu0 %1984
      %1986 = vrot.lane.b32.xlu0 %v1605, 121
      %v1987 = vpop.permute.xlu0 %1986
      %v1988 = vsel %vm804, %v1981, %v1985
      %v1989 = vsel %vm804, %v1983, %v1987
      %v1990 = vsel %vm804, %v1985, %v1981
      %v1991 = vsel %vm804, %v1987, %v1983
      %v1992 = vld [vmem:[%s7 + $0x8] sm:$0x88]
      %v1993 = vunpack.c.l.bf16 %v1992
      %v1994 = vunpack.c.h.bf16 %v1992
      %v1995 = vperm.slane %v1993, 7
      %v1996 = vperm.slane %v1994, 7
      %v1997 = vmul.f32 %v1988, %v1995
      %v1998 = vmul.f32 %v1990, %v1996
      %v1999 = vmul.f32 %v1989, %v1995
      %v2000 = vmul.f32 %v1991, %v1996
      %v2001 = vpack.c.bf16 %v1998, %v1997
      %v2002 = vpack.c.bf16 %v2000, %v1999
      %2003 = vst [vmem:[%s685 + $0x60] sm:$0xff] %v2001
      %2004 = vst [vmem:[%s685 + $0x68] sm:$0xff] %v2002
      %2005 = vrot.lane.b32.xlu0 %v1602, 120
      %v2006 = vpop.permute.xlu0 %2005
      %2007 = vrot.lane.b32.xlu0 %v1604, 120
      %v2008 = vpop.permute.xlu0 %2007
      %2009 = vrot.lane.b32.xlu0 %v1603, 120
      %v2010 = vpop.permute.xlu0 %2009
      %2011 = vrot.lane.b32.xlu0 %v1605, 120
      %v2012 = vpop.permute.xlu0 %2011
      %v2013 = vsel %vm830, %v2006, %v2010
      %v2014 = vsel %vm830, %v2008, %v2012
      %v2015 = vsel %vm830, %v2010, %v2006
      %v2016 = vsel %vm830, %v2012, %v2008
      %v2017 = vld [vmem:[%s7 + $0x10] sm:$0x11]
      %v2018 = vunpack.c.l.bf16 %v2017
      %v2019 = vunpack.c.h.bf16 %v2017
      %v2020 = vperm.slane %v2018, 0
      %v2021 = vperm.slane %v2019, 0
      %v2022 = vmul.f32 %v2013, %v2020
      %v2023 = vmul.f32 %v2015, %v2021
      %v2024 = vmul.f32 %v2014, %v2020
      %v2025 = vmul.f32 %v2016, %v2021
      %v2026 = vpack.c.bf16 %v2023, %v2022
      %v2027 = vpack.c.bf16 %v2025, %v2024
      %2028 = vst [vmem:[%s685 + $0x70] sm:$0xff] %v2026
      %2029 = vst [vmem:[%s685 + $0x78] sm:$0xff] %v2027
      %2030 = vrot.lane.b32.xlu0 %v1602, 119
      %v2031 = vpop.permute.xlu0 %2030
      %2032 = vrot.lane.b32.xlu0 %v1604, 119
      %v2033 = vpop.permute.xlu0 %2032
      %2034 = vrot.lane.b32.xlu0 %v1603, 119
      %v2035 = vpop.permute.xlu0 %2034
      %2036 = vrot.lane.b32.xlu0 %v1605, 119
      %v2037 = vpop.permute.xlu0 %2036
      %v2038 = vsel %vm856, %v2031, %v2035
      %v2039 = vsel %vm856, %v2033, %v2037
      %v2040 = vsel %vm856, %v2035, %v2031
      %v2041 = vsel %vm856, %v2037, %v2033
      %v2042 = vld [vmem:[%s7 + $0x10] sm:$0x11]
      %v2043 = vunpack.c.l.bf16 %v2042
      %v2044 = vunpack.c.h.bf16 %v2042
      %v2045 = vperm.slane %v2043, 1
      %v2046 = vperm.slane %v2044, 1
      %v2047 = vmul.f32 %v2038, %v2045
      %v2048 = vmul.f32 %v2040, %v2046
      %v2049 = vmul.f32 %v2039, %v2045
      %v2050 = vmul.f32 %v2041, %v2046
      %v2051 = vpack.c.bf16 %v2048, %v2047
      %v2052 = vpack.c.bf16 %v2050, %v2049
      %2053 = vst [vmem:[%s685 + $0x80] sm:$0xff] %v2051
      %2054 = vst [vmem:[%s685 + $0x88] sm:$0xff] %v2052
      %s2055 = scalar_lea.vmem %s6, 16
      %v2056 = vld [vmem:[%s2055] sm:$0xff]
      %v2057 = vld [vmem:[%s2055 + $0x8] sm:$0xff]
      %v2058 = vld [vmem:[%s685] sm:$0xff]
      %v2059 = vld [vmem:[%s685 + $0x8] sm:$0xff]
      %v2060 = vld [vmem:[%s685 + $0x10] sm:$0xff]
      %v2061 = vld [vmem:[%s685 + $0x18] sm:$0xff]
      %v2062 = vld [vmem:[%s685 + $0x20] sm:$0xff]
      %v2063 = vld [vmem:[%s685 + $0x28] sm:$0xff]
      %v2064 = vld [vmem:[%s685 + $0x30] sm:$0xff]
      %v2065 = vld [vmem:[%s685 + $0x38] sm:$0xff]
      %v2066 = vld [vmem:[%s685 + $0x40] sm:$0xff]
      %v2067 = vld [vmem:[%s685 + $0x48] sm:$0xff]
      %v2068 = vld [vmem:[%s685 + $0x50] sm:$0xff]
      %v2069 = vld [vmem:[%s685 + $0x58] sm:$0xff]
      %v2070 = vld [vmem:[%s685 + $0x60] sm:$0xff]
      %v2071 = vld [vmem:[%s685 + $0x68] sm:$0xff]
      %v2072 = vld [vmem:[%s685 + $0x70] sm:$0xff]
      %v2073 = vld [vmem:[%s685 + $0x78] sm:$0xff]
      %v2074 = vld [vmem:[%s685 + $0x80] sm:$0xff]
      %v2075 = vld [vmem:[%s685 + $0x88] sm:$0xff]
      %v2078 = vunpack.c.l.b16 %v2056
      %v2079 = vunpack.c.h.b16 %v2056
      %v2080 = vunpack.c.l.b16 %v2057
      %v2081 = vunpack.c.h.b16 %v2057
      %v2082 = vpack.c.b16 %v2080, %v2078
      %v2083 = vpack.c.b16 %v2081, %v2079
      %v2103 = vunpack.c.l.b16 %v2058
      %v2104 = vunpack.c.h.b16 %v2058
      %v2105 = vunpack.c.l.b16 %v2059
      %v2106 = vunpack.c.h.b16 %v2059
      %v2107 = vunpack.c.l.b16 %v2060
      %v2108 = vunpack.c.h.b16 %v2060
      %v2109 = vunpack.c.l.b16 %v2061
      %v2110 = vunpack.c.h.b16 %v2061
      %v2111 = vunpack.c.l.b16 %v2062
      %v2112 = vunpack.c.h.b16 %v2062
      %v2113 = vunpack.c.l.b16 %v2063
      %v2114 = vunpack.c.h.b16 %v2063
      %v2115 = vunpack.c.l.b16 %v2064
      %v2116 = vunpack.c.h.b16 %v2064
      %v2117 = vunpack.c.l.b16 %v2065
      %v2118 = vunpack.c.h.b16 %v2065
      %v2119 = vunpack.c.l.b16 %v2066
      %v2120 = vunpack.c.h.b16 %v2066
      %v2121 = vunpack.c.l.b16 %v2067
      %v2122 = vunpack.c.h.b16 %v2067
      %v2123 = vunpack.c.l.b16 %v2068
      %v2124 = vunpack.c.h.b16 %v2068
      %v2125 = vunpack.c.l.b16 %v2069
      %v2126 = vunpack.c.h.b16 %v2069
      %v2127 = vunpack.c.l.b16 %v2070
      %v2128 = vunpack.c.h.b16 %v2070
      %v2129 = vunpack.c.l.b16 %v2071
      %v2130 = vunpack.c.h.b16 %v2071
      %v2131 = vunpack.c.l.b16 %v2072
      %v2132 = vunpack.c.h.b16 %v2072
      %v2133 = vunpack.c.l.b16 %v2073
      %v2134 = vunpack.c.h.b16 %v2073
      %v2135 = vunpack.c.l.b16 %v2074
      %v2136 = vunpack.c.h.b16 %v2074
      %v2137 = vunpack.c.l.b16 %v2075
      %v2138 = vunpack.c.h.b16 %v2075
      %v2139 = vpack.c.b16 %v2105, %v2103
      %v2140 = vpack.c.b16 %v2106, %v2104
      %v2141 = vpack.c.b16 %v2109, %v2107
      %v2142 = vpack.c.b16 %v2110, %v2108
      %v2143 = vpack.c.b16 %v2113, %v2111
      %v2144 = vpack.c.b16 %v2114, %v2112
      %v2145 = vpack.c.b16 %v2117, %v2115
      %v2146 = vpack.c.b16 %v2118, %v2116
      %v2147 = vpack.c.b16 %v2121, %v2119
      %v2148 = vpack.c.b16 %v2122, %v2120
      %v2149 = vpack.c.b16 %v2125, %v2123
      %v2150 = vpack.c.b16 %v2126, %v2124
      %v2151 = vpack.c.b16 %v2129, %v2127
      %v2152 = vpack.c.b16 %v2130, %v2128
      %v2153 = vpack.c.b16 %v2133, %v2131
      %v2154 = vpack.c.b16 %v2134, %v2132
      %v2155 = vpack.c.b16 %v2137, %v2135
      %v2156 = vpack.c.b16 %v2138, %v2136
      %v2176 = vsel %vm994, %v2083, 0
      %2178 = vmatpush.bf16.msra.mxu0 %v2153
      %2179 = vmatpush.bf16.msra.mxu0 %v2151
      %2180 = vmatpush.bf16.msra.mxu0 %v2149
      %2181 = vmatpush.bf16.msra.mxu0 %v2147
      %2182 = vmatpush.bf16.msra.mxu0 %v2145
      %2183 = vmatpush.bf16.msra.mxu0 %v2143
      %2184 = vmatpush.bf16.msra.mxu0 %v2141
      %2185 = vmatpush.bf16.msra.mxu0 %v2139
      %2186 = vmatmul.bf16.gmra.mxu0 %v2082
      %v2187 = vpop.f32.mrf.mxu0
      %v2188 = vadd.f32 0.0, %v2187
      %v2189 = vpop.f32.mrf.mxu0
      %v2190 = vadd.f32 0.0, %v2189
      %2191 = vdwg.mxu0
      %2192 = vmatpush.bf16.msra.mxu0 0
      %2193 = vmatpush.bf16.msra.mxu0 0
      %2194 = vmatpush.bf16.msra.mxu0 0
      %2195 = vmatpush.bf16.msra.mxu0 0
      %2196 = vmatpush.bf16.msra.mxu0 0
      %2197 = vmatpush.bf16.msra.mxu0 0
      %2198 = vmatpush.bf16.msra.mxu0 0
      %2199 = vmatpush.bf16.msra.mxu0 %v2155
      %2200 = vmatmul.bf16.gmra.mxu0 %v2176
      %v2201 = vpop.f32.mrf.mxu0
      %v2202 = vadd.f32 %v2188, %v2201
      %v2203 = vpop.f32.mrf.mxu0
      %v2204 = vadd.f32 %v2190, %v2203
      %2205 = vdwg.mxu0
      %2206 = vmatpush.bf16.msra.mxu0 %v2154
      %2207 = vmatpush.bf16.msra.mxu0 %v2152
      %2208 = vmatpush.bf16.msra.mxu0 %v2150
      %2209 = vmatpush.bf16.msra.mxu0 %v2148
      %2210 = vmatpush.bf16.msra.mxu0 %v2146
      %2211 = vmatpush.bf16.msra.mxu0 %v2144
      %2212 = vmatpush.bf16.msra.mxu0 %v2142
      %2213 = vmatpush.bf16.msra.mxu0 %v2140
      %2214 = vmatmul.bf16.gmra.mxu0 %v2082
      %v2215 = vpop.f32.mrf.mxu0
      %v2216 = vadd.f32 0.0, %v2215
      %v2217 = vpop.f32.mrf.mxu0
      %v2218 = vadd.f32 0.0, %v2217
      %2219 = vdwg.mxu0
      %2220 = vmatpush.bf16.msra.mxu0 0
      %2221 = vmatpush.bf16.msra.mxu0 0
      %2222 = vmatpush.bf16.msra.mxu0 0
      %2223 = vmatpush.bf16.msra.mxu0 0
      %2224 = vmatpush.bf16.msra.mxu0 0
      %2225 = vmatpush.bf16.msra.mxu0 0
      %2226 = vmatpush.bf16.msra.mxu0 0
      %2227 = vmatpush.bf16.msra.mxu0 %v2156
      %2228 = vmatmul.bf16.gmra.mxu0 %v2176
      %v2229 = vpop.f32.mrf.mxu0
      %v2230 = vadd.f32 %v2216, %v2229
      %v2231 = vpop.f32.mrf.mxu0
      %v2232 = vadd.f32 %v2218, %v2231
      %2233 = vdwg.mxu0
      %v2236 = vunpack.c.l.b16 %v1831
      %v2237 = vunpack.c.h.b16 %v1831
      %v2238 = vunpack.c.l.b16 %v1832
      %v2239 = vunpack.c.h.b16 %v1832
      %v2240 = vpack.c.b16 %v2238, %v2236
      %v2241 = vpack.c.b16 %v2239, %v2237
      %v2261 = vunpack.c.l.b16 %v1833
      %v2262 = vunpack.c.h.b16 %v1833
      %v2263 = vunpack.c.l.b16 %v1834
      %v2264 = vunpack.c.h.b16 %v1834
      %v2265 = vunpack.c.l.b16 %v1835
      %v2266 = vunpack.c.h.b16 %v1835
      %v2267 = vunpack.c.l.b16 %v1836
      %v2268 = vunpack.c.h.b16 %v1836
      %v2269 = vunpack.c.l.b16 %v1837
      %v2270 = vunpack.c.h.b16 %v1837
      %v2271 = vunpack.c.l.b16 %v1838
      %v2272 = vunpack.c.h.b16 %v1838
      %v2273 = vunpack.c.l.b16 %v1839
      %v2274 = vunpack.c.h.b16 %v1839
      %v2275 = vunpack.c.l.b16 %v1840
      %v2276 = vunpack.c.h.b16 %v1840
      %v2277 = vunpack.c.l.b16 %v1841
      %v2278 = vunpack.c.h.b16 %v1841
      %v2279 = vunpack.c.l.b16 %v1842
      %v2280 = vunpack.c.h.b16 %v1842
      %v2281 = vunpack.c.l.b16 %v1843
      %v2282 = vunpack.c.h.b16 %v1843
      %v2283 = vunpack.c.l.b16 %v1844
      %v2284 = vunpack.c.h.b16 %v1844
      %v2285 = vunpack.c.l.b16 %v1845
      %v2286 = vunpack.c.h.b16 %v1845
      %v2287 = vunpack.c.l.b16 %v1846
      %v2288 = vunpack.c.h.b16 %v1846
      %v2289 = vunpack.c.l.b16 %v1847
      %v2290 = vunpack.c.h.b16 %v1847
      %v2291 = vunpack.c.l.b16 %v1848
      %v2292 = vunpack.c.h.b16 %v1848
      %v2293 = vunpack.c.l.b16 %v1849
      %v2294 = vunpack.c.h.b16 %v1849
      %v2295 = vunpack.c.l.b16 %v1850
      %v2296 = vunpack.c.h.b16 %v1850
      %v2297 = vpack.c.b16 %v2263, %v2261
      %v2298 = vpack.c.b16 %v2264, %v2262
      %v2299 = vpack.c.b16 %v2267, %v2265
      %v2300 = vpack.c.b16 %v2268, %v2266
      %v2301 = vpack.c.b16 %v2271, %v2269
      %v2302 = vpack.c.b16 %v2272, %v2270
      %v2303 = vpack.c.b16 %v2275, %v2273
      %v2304 = vpack.c.b16 %v2276, %v2274
      %v2305 = vpack.c.b16 %v2279, %v2277
      %v2306 = vpack.c.b16 %v2280, %v2278
      %v2307 = vpack.c.b16 %v2283, %v2281
      %v2308 = vpack.c.b16 %v2284, %v2282
      %v2309 = vpack.c.b16 %v2287, %v2285
      %v2310 = vpack.c.b16 %v2288, %v2286
      %v2311 = vpack.c.b16 %v2291, %v2289
      %v2312 = vpack.c.b16 %v2292, %v2290
      %v2313 = vpack.c.b16 %v2295, %v2293
      %v2314 = vpack.c.b16 %v2296, %v2294
      %v2334 = vsel %vm994, %v2241, 0
      %2336 = vmatpush.bf16.msra.mxu0 %v2311
      %2337 = vmatpush.bf16.msra.mxu0 %v2309
      %2338 = vmatpush.bf16.msra.mxu0 %v2307
      %2339 = vmatpush.bf16.msra.mxu0 %v2305
      %2340 = vmatpush.bf16.msra.mxu0 %v2303
      %2341 = vmatpush.bf16.msra.mxu0 %v2301
      %2342 = vmatpush.bf16.msra.mxu0 %v2299
      %2343 = vmatpush.bf16.msra.mxu0 %v2297
      %2344 = vmatmul.bf16.gmra.mxu0 %v2240
      %v2345 = vpop.f32.mrf.mxu0
      %v2346 = vadd.f32 %v2202, %v2345
      %v2347 = vpop.f32.mrf.mxu0
      %v2348 = vadd.f32 %v2204, %v2347
      %2349 = vdwg.mxu0
      %2350 = vmatpush.bf16.msra.mxu0 0
      %2351 = vmatpush.bf16.msra.mxu0 0
      %2352 = vmatpush.bf16.msra.mxu0 0
      %2353 = vmatpush.bf16.msra.mxu0 0
      %2354 = vmatpush.bf16.msra.mxu0 0
      %2355 = vmatpush.bf16.msra.mxu0 0
      %2356 = vmatpush.bf16.msra.mxu0 0
      %2357 = vmatpush.bf16.msra.mxu0 %v2313
      %2358 = vmatmul.bf16.gmra.mxu0 %v2334
      %v2359 = vpop.f32.mrf.mxu0
      %v2360 = vadd.f32 %v2346, %v2359
      %v2361 = vpop.f32.mrf.mxu0
      %v2362 = vadd.f32 %v2348, %v2361
      %2363 = vdwg.mxu0
      %2364 = vmatpush.bf16.msra.mxu0 %v2312
      %2365 = vmatpush.bf16.msra.mxu0 %v2310
      %2366 = vmatpush.bf16.msra.mxu0 %v2308
      %2367 = vmatpush.bf16.msra.mxu0 %v2306
      %2368 = vmatpush.bf16.msra.mxu0 %v2304
      %2369 = vmatpush.bf16.msra.mxu0 %v2302
      %2370 = vmatpush.bf16.msra.mxu0 %v2300
      %2371 = vmatpush.bf16.msra.mxu0 %v2298
      %2372 = vmatmul.bf16.gmra.mxu0 %v2240
      %v2373 = vpop.f32.mrf.mxu0
      %v2374 = vadd.f32 %v2230, %v2373
      %v2375 = vpop.f32.mrf.mxu0
      %v2376 = vadd.f32 %v2232, %v2375
      %2377 = vdwg.mxu0
      %2378 = vmatpush.bf16.msra.mxu0 0
      %2379 = vmatpush.bf16.msra.mxu0 0
      %2380 = vmatpush.bf16.msra.mxu0 0
      %2381 = vmatpush.bf16.msra.mxu0 0
      %2382 = vmatpush.bf16.msra.mxu0 0
      %2383 = vmatpush.bf16.msra.mxu0 0
      %2384 = vmatpush.bf16.msra.mxu0 0
      %2385 = vmatpush.bf16.msra.mxu0 %v2314
      %2386 = vmatmul.bf16.gmra.mxu0 %v2334
      %v2387 = vpop.f32.mrf.mxu0
      %v2388 = vadd.f32 %v2374, %v2387
      %v2389 = vpop.f32.mrf.mxu0
      %v2390 = vadd.f32 %v2376, %v2389
      %2391 = vdwg.mxu0
      %v2392 = vld [vmem:[%s7 + $0x10] sm:$0x22]
      %v2393 = vunpack.c.l.bf16 %v2392
      %v2394 = vunpack.c.h.bf16 %v2392
      %v2395 = vperm.slane %v2393, 2
      %v2396 = vperm.slane %v2394, 2
      %v2397 = vmul.f32 %v1614, %v2395
      %v2398 = vmul.f32 %v1616, %v2396
      %v2399 = vmul.f32 %v1615, %v2395
      %v2400 = vmul.f32 %v1617, %v2396
      %v2401 = vpack.c.bf16 %v2398, %v2397
      %v2402 = vpack.c.bf16 %v2400, %v2399
      %2403 = vst [vmem:[#allocation2] sm:$0xff] %v2401
      %2404 = vst [vmem:[#allocation2 + $0x8] sm:$0xff] %v2402
      %v2405 = vld [vmem:[%s7 + $0x10] sm:$0x22]
      %v2406 = vunpack.c.l.bf16 %v2405
      %v2407 = vunpack.c.h.bf16 %v2405
      %v2408 = vperm.slane %v2406, 3
      %v2409 = vperm.slane %v2407, 3
      %v2410 = vmul.f32 %v1639, %v2408
      %v2411 = vmul.f32 %v1641, %v2409
      %v2412 = vmul.f32 %v1640, %v2408
      %v2413 = vmul.f32 %v1642, %v2409
      %v2414 = vpack.c.bf16 %v2411, %v2410
      %v2415 = vpack.c.bf16 %v2413, %v2412
      %2416 = vst [vmem:[#allocation2 + $0x10] sm:$0xff] %v2414
      %2417 = vst [vmem:[#allocation2 + $0x18] sm:$0xff] %v2415
      %v2418 = vld [vmem:[%s7 + $0x10] sm:$0x44]
      %v2419 = vunpack.c.l.bf16 %v2418
      %v2420 = vunpack.c.h.bf16 %v2418
      %v2421 = vperm.slane %v2419, 4
      %v2422 = vperm.slane %v2420, 4
      %v2423 = vmul.f32 %v1664, %v2421
      %v2424 = vmul.f32 %v1666, %v2422
      %v2425 = vmul.f32 %v1665, %v2421
      %v2426 = vmul.f32 %v1667, %v2422
      %v2427 = vpack.c.bf16 %v2424, %v2423
      %v2428 = vpack.c.bf16 %v2426, %v2425
      %2429 = vst [vmem:[#allocation2 + $0x20] sm:$0xff] %v2427
      %2430 = vst [vmem:[#allocation2 + $0x28] sm:$0xff] %v2428
      %v2431 = vld [vmem:[%s7 + $0x10] sm:$0x44]
      %v2432 = vunpack.c.l.bf16 %v2431
      %v2433 = vunpack.c.h.bf16 %v2431
      %v2434 = vperm.slane %v2432, 5
      %v2435 = vperm.slane %v2433, 5
      %v2436 = vmul.f32 %v1689, %v2434
      %v2437 = vmul.f32 %v1691, %v2435
      %v2438 = vmul.f32 %v1690, %v2434
      %v2439 = vmul.f32 %v1692, %v2435
      %v2440 = vpack.c.bf16 %v2437, %v2436
      %v2441 = vpack.c.bf16 %v2439, %v2438
      %2442 = vst [vmem:[#allocation2 + $0x30] sm:$0xff] %v2440
      %2443 = vst [vmem:[#allocation2 + $0x38] sm:$0xff] %v2441
      %v2444 = vld [vmem:[%s7 + $0x10] sm:$0x88]
      %v2445 = vunpack.c.l.bf16 %v2444
      %v2446 = vunpack.c.h.bf16 %v2444
      %v2447 = vperm.slane %v2445, 6
      %v2448 = vperm.slane %v2446, 6
      %v2449 = vmul.f32 %v1714, %v2447
      %v2450 = vmul.f32 %v1716, %v2448
      %v2451 = vmul.f32 %v1715, %v2447
      %v2452 = vmul.f32 %v1717, %v2448
      %v2453 = vpack.c.bf16 %v2450, %v2449
      %v2454 = vpack.c.bf16 %v2452, %v2451
      %2455 = vst [vmem:[#allocation2 + $0x40] sm:$0xff] %v2453
      %2456 = vst [vmem:[#allocation2 + $0x48] sm:$0xff] %v2454
      %v2457 = vld [vmem:[%s7 + $0x10] sm:$0x88]
      %v2458 = vunpack.c.l.bf16 %v2457
      %v2459 = vunpack.c.h.bf16 %v2457
      %v2460 = vperm.slane %v2458, 7
      %v2461 = vperm.slane %v2459, 7
      %v2462 = vmul.f32 %v1739, %v2460
      %v2463 = vmul.f32 %v1741, %v2461
      %v2464 = vmul.f32 %v1740, %v2460
      %v2465 = vmul.f32 %v1742, %v2461
      %v2466 = vpack.c.bf16 %v2463, %v2462
      %v2467 = vpack.c.bf16 %v2465, %v2464
      %2468 = vst [vmem:[#allocation2 + $0x50] sm:$0xff] %v2466
      %2469 = vst [vmem:[#allocation2 + $0x58] sm:$0xff] %v2467
      %v2470 = vld [vmem:[%s7 + $0x18] sm:$0x11]
      %v2471 = vunpack.c.l.bf16 %v2470
      %v2472 = vunpack.c.h.bf16 %v2470
      %v2473 = vperm.slane %v2471, 0
      %v2474 = vperm.slane %v2472, 0
      %v2475 = vmul.f32 %v1764, %v2473
      %v2476 = vmul.f32 %v1766, %v2474
      %v2477 = vmul.f32 %v1765, %v2473
      %v2478 = vmul.f32 %v1767, %v2474
      %v2479 = vpack.c.bf16 %v2476, %v2475
      %v2480 = vpack.c.bf16 %v2478, %v2477
      %2481 = vst [vmem:[#allocation2 + $0x60] sm:$0xff] %v2479
      %2482 = vst [vmem:[#allocation2 + $0x68] sm:$0xff] %v2480
      %v2483 = vld [vmem:[%s7 + $0x18] sm:$0x11]
      %v2484 = vunpack.c.l.bf16 %v2483
      %v2485 = vunpack.c.h.bf16 %v2483
      %v2486 = vperm.slane %v2484, 1
      %v2487 = vperm.slane %v2485, 1
      %v2488 = vmul.f32 %v1789, %v2486
      %v2489 = vmul.f32 %v1791, %v2487
      %v2490 = vmul.f32 %v1790, %v2486
      %v2491 = vmul.f32 %v1792, %v2487
      %v2492 = vpack.c.bf16 %v2489, %v2488
      %v2493 = vpack.c.bf16 %v2491, %v2490
      %2494 = vst [vmem:[#allocation2 + $0x70] sm:$0xff] %v2492
      %2495 = vst [vmem:[#allocation2 + $0x78] sm:$0xff] %v2493
      %v2496 = vld [vmem:[%s7 + $0x18] sm:$0x22]
      %v2497 = vunpack.c.l.bf16 %v2496
      %v2498 = vunpack.c.h.bf16 %v2496
      %v2499 = vperm.slane %v2497, 2
      %v2500 = vperm.slane %v2498, 2
      %v2501 = vmul.f32 %v1814, %v2499
      %v2502 = vmul.f32 %v1816, %v2500
      %v2503 = vmul.f32 %v1815, %v2499
      %v2504 = vmul.f32 %v1817, %v2500
      %v2505 = vpack.c.bf16 %v2502, %v2501
      %v2506 = vpack.c.bf16 %v2504, %v2503
      %2507 = vst [vmem:[#allocation2 + $0x80] sm:$0xff] %v2505
      %2508 = vst [vmem:[#allocation2 + $0x88] sm:$0xff] %v2506
      %s2509 = scalar_lea.vmem %s6, 32
      %v2510 = vld [vmem:[%s2509] sm:$0xff]
      %v2511 = vld [vmem:[%s2509 + $0x8] sm:$0xff]
      %v2512 = vld [vmem:[#allocation2] sm:$0xff]
      %v2513 = vld [vmem:[#allocation2 + $0x8] sm:$0xff]
      %v2514 = vld [vmem:[#allocation2 + $0x10] sm:$0xff]
      %v2515 = vld [vmem:[#allocation2 + $0x18] sm:$0xff]
      %v2516 = vld [vmem:[#allocation2 + $0x20] sm:$0xff]
      %v2517 = vld [vmem:[#allocation2 + $0x28] sm:$0xff]
      %v2518 = vld [vmem:[#allocation2 + $0x30] sm:$0xff]
      %v2519 = vld [vmem:[#allocation2 + $0x38] sm:$0xff]
      %v2520 = vld [vmem:[#allocation2 + $0x40] sm:$0xff]
      %v2521 = vld [vmem:[#allocation2 + $0x48] sm:$0xff]
      %v2522 = vld [vmem:[#allocation2 + $0x50] sm:$0xff]
      %v2523 = vld [vmem:[#allocation2 + $0x58] sm:$0xff]
      %v2524 = vld [vmem:[#allocation2 + $0x60] sm:$0xff]
      %v2525 = vld [vmem:[#allocation2 + $0x68] sm:$0xff]
      %v2526 = vld [vmem:[#allocation2 + $0x70] sm:$0xff]
      %v2527 = vld [vmem:[#allocation2 + $0x78] sm:$0xff]
      %v2528 = vld [vmem:[#allocation2 + $0x80] sm:$0xff]
      %v2529 = vld [vmem:[#allocation2 + $0x88] sm:$0xff]
      %v2532 = vunpack.c.l.b16 %v2510
      %v2533 = vunpack.c.h.b16 %v2510
      %v2534 = vunpack.c.l.b16 %v2511
      %v2535 = vunpack.c.h.b16 %v2511
      %v2536 = vpack.c.b16 %v2534, %v2532
      %v2537 = vpack.c.b16 %v2535, %v2533
      %v2557 = vunpack.c.l.b16 %v2512
      %v2558 = vunpack.c.h.b16 %v2512
      %v2559 = vunpack.c.l.b16 %v2513
      %v2560 = vunpack.c.h.b16 %v2513
      %v2561 = vunpack.c.l.b16 %v2514
      %v2562 = vunpack.c.h.b16 %v2514
      %v2563 = vunpack.c.l.b16 %v2515
      %v2564 = vunpack.c.h.b16 %v2515
      %v2565 = vunpack.c.l.b16 %v2516
      %v2566 = vunpack.c.h.b16 %v2516
      %v2567 = vunpack.c.l.b16 %v2517
      %v2568 = vunpack.c.h.b16 %v2517
      %v2569 = vunpack.c.l.b16 %v2518
      %v2570 = vunpack.c.h.b16 %v2518
      %v2571 = vunpack.c.l.b16 %v2519
      %v2572 = vunpack.c.h.b16 %v2519
      %v2573 = vunpack.c.l.b16 %v2520
      %v2574 = vunpack.c.h.b16 %v2520
      %v2575 = vunpack.c.l.b16 %v2521
      %v2576 = vunpack.c.h.b16 %v2521
      %v2577 = vunpack.c.l.b16 %v2522
      %v2578 = vunpack.c.h.b16 %v2522
      %v2579 = vunpack.c.l.b16 %v2523
      %v2580 = vunpack.c.h.b16 %v2523
      %v2581 = vunpack.c.l.b16 %v2524
      %v2582 = vunpack.c.h.b16 %v2524
      %v2583 = vunpack.c.l.b16 %v2525
      %v2584 = vunpack.c.h.b16 %v2525
      %v2585 = vunpack.c.l.b16 %v2526
      %v2586 = vunpack.c.h.b16 %v2526
      %v2587 = vunpack.c.l.b16 %v2527
      %v2588 = vunpack.c.h.b16 %v2527
      %v2589 = vunpack.c.l.b16 %v2528
      %v2590 = vunpack.c.h.b16 %v2528
      %v2591 = vunpack.c.l.b16 %v2529
      %v2592 = vunpack.c.h.b16 %v2529
      %v2593 = vpack.c.b16 %v2559, %v2557
      %v2594 = vpack.c.b16 %v2560, %v2558
      %v2595 = vpack.c.b16 %v2563, %v2561
      %v2596 = vpack.c.b16 %v2564, %v2562
      %v2597 = vpack.c.b16 %v2567, %v2565
      %v2598 = vpack.c.b16 %v2568, %v2566
      %v2599 = vpack.c.b16 %v2571, %v2569
      %v2600 = vpack.c.b16 %v2572, %v2570
      %v2601 = vpack.c.b16 %v2575, %v2573
      %v2602 = vpack.c.b16 %v2576, %v2574
      %v2603 = vpack.c.b16 %v2579, %v2577
      %v2604 = vpack.c.b16 %v2580, %v2578
      %v2605 = vpack.c.b16 %v2583, %v2581
      %v2606 = vpack.c.b16 %v2584, %v2582
      %v2607 = vpack.c.b16 %v2587, %v2585
      %v2608 = vpack.c.b16 %v2588, %v2586
      %v2609 = vpack.c.b16 %v2591, %v2589
      %v2610 = vpack.c.b16 %v2592, %v2590
      %v2630 = vsel %vm994, %v2537, 0
      %2632 = vmatpush.bf16.msra.mxu0 %v2607
      %2633 = vmatpush.bf16.msra.mxu0 %v2605
      %2634 = vmatpush.bf16.msra.mxu0 %v2603
      %2635 = vmatpush.bf16.msra.mxu0 %v2601
      %2636 = vmatpush.bf16.msra.mxu0 %v2599
      %2637 = vmatpush.bf16.msra.mxu0 %v2597
      %2638 = vmatpush.bf16.msra.mxu0 %v2595
      %2639 = vmatpush.bf16.msra.mxu0 %v2593
      %2640 = vmatmul.bf16.gmra.mxu0 %v2536
      %v2641 = vpop.f32.mrf.mxu0
      %v2642 = vadd.f32 0.0, %v2641
      %v2643 = vpop.f32.mrf.mxu0
      %v2644 = vadd.f32 0.0, %v2643
      %2645 = vdwg.mxu0
      %2646 = vmatpush.bf16.msra.mxu0 0
      %2647 = vmatpush.bf16.msra.mxu0 0
      %2648 = vmatpush.bf16.msra.mxu0 0
      %2649 = vmatpush.bf16.msra.mxu0 0
      %2650 = vmatpush.bf16.msra.mxu0 0
      %2651 = vmatpush.bf16.msra.mxu0 0
      %2652 = vmatpush.bf16.msra.mxu0 0
      %2653 = vmatpush.bf16.msra.mxu0 %v2609
      %2654 = vmatmul.bf16.gmra.mxu0 %v2630
      %v2655 = vpop.f32.mrf.mxu0
      %v2656 = vadd.f32 %v2642, %v2655
      %v2657 = vpop.f32.mrf.mxu0
      %v2658 = vadd.f32 %v2644, %v2657
      %2659 = vdwg.mxu0
      %2660 = vmatpush.bf16.msra.mxu0 %v2608
      %2661 = vmatpush.bf16.msra.mxu0 %v2606
      %2662 = vmatpush.bf16.msra.mxu0 %v2604
      %2663 = vmatpush.bf16.msra.mxu0 %v2602
      %2664 = vmatpush.bf16.msra.mxu0 %v2600
      %2665 = vmatpush.bf16.msra.mxu0 %v2598
      %2666 = vmatpush.bf16.msra.mxu0 %v2596
      %2667 = vmatpush.bf16.msra.mxu0 %v2594
      %2668 = vmatmul.bf16.gmra.mxu0 %v2536
      %v2669 = vpop.f32.mrf.mxu0
      %v2670 = vadd.f32 0.0, %v2669
      %v2671 = vpop.f32.mrf.mxu0
      %v2672 = vadd.f32 0.0, %v2671
      %2673 = vdwg.mxu0
      %2674 = vmatpush.bf16.msra.mxu0 0
      %2675 = vmatpush.bf16.msra.mxu0 0
      %2676 = vmatpush.bf16.msra.mxu0 0
      %2677 = vmatpush.bf16.msra.mxu0 0
      %2678 = vmatpush.bf16.msra.mxu0 0
      %2679 = vmatpush.bf16.msra.mxu0 0
      %2680 = vmatpush.bf16.msra.mxu0 0
      %2681 = vmatpush.bf16.msra.mxu0 %v2610
      %2682 = vmatmul.bf16.gmra.mxu0 %v2630
      %v2683 = vpop.f32.mrf.mxu0
      %v2684 = vadd.f32 %v2670, %v2683
      %v2685 = vpop.f32.mrf.mxu0
      %v2686 = vadd.f32 %v2672, %v2685
      %2687 = vdwg.mxu0
      %v2688 = vadd.f32 %v2360, %v2656
      %v2689 = vadd.f32 %v2388, %v2684
      %v2690 = vadd.f32 %v2362, %v2658
      %v2691 = vadd.f32 %v2390, %v2686
      %v2692 = vadd.f32 %v2688, %v307
      %v2693 = vadd.f32 %v2689, %v308
      %v2694 = vadd.f32 %v2690, %v309
      %v2695 = vadd.f32 %v2691, %v310
      %2696 = vst [vmem:[%s305] sm:$0xff] %v2692
      %2697 = vst [vmem:[%s305 + $0x8] sm:$0xff] %v2693
      %2698 = vst [vmem:[%s305 + $0x10] sm:$0xff] %v2694
      %2699 = vst [vmem:[%s305 + $0x18] sm:$0xff] %v2695
      %p2700 = scmp.lt.s32.totalorder %s19, 1
      %s2701 = scalar_select %p2700, %s19, 1
      %s2702 = smul.addr %s2701, 4
      %s2703 = smul.addr %s2702, 8
      %s2704 = scalar_lea.vmem %s8, %s2703
      // Predicated region
      $region53: #{no_bottleneck_forward.1} parent=51 // pred_check
        %p2705 = pneg %p210
      $region54: #{no_bottleneck_forward.1} parent=51 // pred_check_branch
        %2707 = sbr.rel (%p2705) target = $region56
      $region55: #{no_bottleneck_forward.1} parent=51 // pred_region
        _
      $region56: #{no_bottleneck_forward.1} parent=51 // pred_fallthru
        _
    $region52: #{no_bottleneck_forward.1} parent=5 // pred_fallthru
      _
    %p2708 = scmp.le.s32.totalorder 2, %s14
    // Predicated region
    $region57: #{no_bottleneck_forward.1} parent=5 // pred_check
      %p2709 = pneg %p2708
    $region58: #{no_bottleneck_forward.1} parent=5 // pred_check_branch
      %2711 = sbr.rel (%p2709) target = $region60
    $region59: #{no_bottleneck_forward.1} parent=5 // pred_region
      %s2712 = ssub.s32 %s14, 2
      // Predicated region
      $region61: #{no_bottleneck_forward.1} parent=59 // pred_check
        %p2713 = pneg %p216
      $region62: #{no_bottleneck_forward.1} parent=59 // pred_check_branch
        %2715 = sbr.rel (%p2713) target = $region64
      $region63: #{no_bottleneck_forward.1} parent=59 // pred_region
        %p2716 = scmp.lt.s32.totalorder %s20, 1
        %s2717 = scalar_select %p2716, %s20, 1
        %s2718 = smul.addr %s2717, 4
        %s2719 = smul.addr %s2718, 8
        %s2720 = scalar_lea.vmem %s8, %s2719
      $region64: #{no_bottleneck_forward.1} parent=59 // pred_fallthru
        _
    $region60: #{no_bottleneck_forward.1} parent=5 // pred_fallthru
      _
  $region6: #{no_bottleneck_forward.1} parent=0 // loop_footer
    %s18 = sadd.s32 1, %s14
  $region7: #{no_bottleneck_forward.1} parent=0 // loop_footer_branch
    %13 = sbr.rel target = $region3
  $region8: #{no_bottleneck_forward.1} parent=0 // loop_exit
    _

</llo_original>
